<compile_context>
chip_gen: v7x
topology: tpu7x:2x2x1
jax: 0.10.0
libtpu: 0.0.40
codegen_flags: <defaults>
</compile_context>

<pallas_src>
import numpy as np
import jax
import jax.numpy as jnp
from jax.experimental import pallas as pl
from jax.experimental.pallas import tpu as pltpu


# ----------------------------------------------------------------------------
# In-kernel helpers
# ----------------------------------------------------------------------------
def _mm_bf16(x, w_ref):
    # bf16 MXU matmul with f32 accumulation (w stored in bf16).
    return jnp.dot(x.astype(jnp.bfloat16), w_ref[...],
                   preferred_element_type=jnp.float32)


def _mm_f32(x, w_ref):
    # full-precision matmul for the tiny weight blocks (stats/aleph/fc2/fa23).
    return jnp.dot(x, w_ref[...], preferred_element_type=jnp.float32)


def _sigmoid_softmax(logits):
    s = jax.nn.sigmoid(logits)
    # sigmoid output is in (0,1): max-shift is unnecessary (softmax is
    # shift-invariant and exp is well-conditioned here).
    e = jnp.exp(s)
    denom = jnp.sum(e, axis=-1, keepdims=True)
    return e * pl.reciprocal(denom, approx=True)


def _conv_trunk(x1p_ref, w1_ref, b1_ref, w2_ref, b2_ref, w3_ref, b3_ref,
                h1w_ref):
    """conv1 (per-patch tiny matmul) + conv2/conv3 (pre-scattered dense matmuls).

    x1p_ref: (S1, B, k*k) im2col'd conv1 patches (built in the JAX wrapper).
    h1w_ref: (B, S1*C1) f32 VMEM scratch holding the conv1 output in
             (spatial, channel) column order, as expected by the conv2 matrix.
    """
    S1 = x1p_ref.shape[0]
    C1 = w1_ref.shape[1]
    for p in range(S1):                               # static unroll (25 iters)
        h1p = jnp.maximum(
            jnp.dot(x1p_ref[p], w1_ref[...],
                    preferred_element_type=jnp.float32) + b1_ref[...], 0.0)
        h1w_ref[:, p * C1:(p + 1) * C1] = h1p         # conv1 + ReLU
    h1 = h1w_ref[...]                                 # (B, 800)
    h2 = jnp.maximum(_mm_bf16(h1, w2_ref) + b2_ref[...], 0.0)   # conv2 + ReLU
    h3 = jnp.maximum(_mm_bf16(h2, w3_ref) + b3_ref[...], 0.0)   # conv3 + ReLU
    return h3


def _fc_head(h, x2_ref, wf1c_ref, wf1s_ref, bf1_ref, wf2_ref, bf2_ref):
    a = jnp.maximum(_mm_bf16(h, wf1c_ref) + _mm_f32(x2_ref[...], wf1s_ref)
                    + bf1_ref[...], 0.0)                         # fc1 + ReLU
    return _mm_f32(a, wf2_ref) + bf2_ref[...]                    # fc2


def _aleph_head(h, x2_ref, x3_ref, wa1c_ref, wa1s_ref, wa1a_ref, ba1_ref,
                wa23_ref, ba23_ref):
    a = jnp.maximum(_mm_bf16(h, wa1c_ref) + _mm_f32(x2_ref[...], wa1s_ref)
                    + _mm_f32(x3_ref[...], wa1a_ref) + ba1_ref[...], 0.0)  # fa1
    return _mm_f32(a, wa23_ref) + ba23_ref[...]      # fa2∘fa3 folded offline


# ----------------------------------------------------------------------------
# Fused kernels (single block, everything VMEM-resident)
# ----------------------------------------------------------------------------
def _fc_kernel(x1p_ref, x2_ref,
               w1_ref, b1_ref, w2_ref, b2_ref, w3_ref, b3_ref,
               wf1c_ref, wf1s_ref, bf1_ref, wf2_ref, bf2_ref,
               o_ref, h1w_ref):
    h = _conv_trunk(x1p_ref, w1_ref, b1_ref, w2_ref, b2_ref, w3_ref, b3_ref,
                    h1w_ref)
    logits = _fc_head(h, x2_ref, wf1c_ref, wf1s_ref, bf1_ref, wf2_ref, bf2_ref)
    o_ref[...] = _sigmoid_softmax(logits).astype(o_ref.dtype)


def _aleph_kernel(x1p_ref, x2_ref, x3_ref,
                  w1_ref, b1_ref, w2_ref, b2_ref, w3_ref, b3_ref,
                  wa1c_ref, wa1s_ref, wa1a_ref, ba1_ref, wa23_ref, ba23_ref,
                  o_ref, h1w_ref):
    h = _conv_trunk(x1p_ref, w1_ref, b1_ref, w2_ref, b2_ref, w3_ref, b3_ref,
                    h1w_ref)
    logits = _aleph_head(h, x2_ref, x3_ref, wa1c_ref, wa1s_ref, wa1a_ref,
                         ba1_ref, wa23_ref, ba23_ref)
    o_ref[...] = _sigmoid_softmax(logits).astype(o_ref.dtype)


def _dual_kernel(x1p_ref, x2_ref, x3_ref,
                 w1_ref, b1_ref, w2_ref, b2_ref, w3_ref, b3_ref,
                 wf1c_ref, wf1s_ref, bf1_ref, wf2_ref, bf2_ref,
                 wa1c_ref, wa1s_ref, wa1a_ref, ba1_ref, wa23_ref, ba23_ref,
                 o_fc_ref, o_al_ref, h1w_ref):
    # Shared conv trunk, both heads, one launch, conv weights DMA'd once.
    h = _conv_trunk(x1p_ref, w1_ref, b1_ref, w2_ref, b2_ref, w3_ref, b3_ref,
                    h1w_ref)
    fc_logits = _fc_head(h, x2_ref, wf1c_ref, wf1s_ref, bf1_ref, wf2_ref,
                         bf2_ref)
    al_logits = _aleph_head(h, x2_ref, x3_ref, wa1c_ref, wa1s_ref, wa1a_ref,
                            ba1_ref, wa23_ref, ba23_ref)
    o_fc_ref[...] = _sigmoid_softmax(fc_logits).astype(o_fc_ref.dtype)
    o_al_ref[...] = _sigmoid_softmax(al_logits).astype(o_al_ref.dtype)


def _call_fused(kernel, args, out_shapes, scratch_cols, batch):
    in_specs = [pl.BlockSpec(a.shape, (lambda i, _n=a.ndim: (0,) * _n))
                for a in args]
    out_specs = tuple(
        pl.BlockSpec(s.shape, (lambda i, _n=len(s.shape): (0,) * _n))
        for s in out_shapes)
    multi = len(out_shapes) > 1
    return pl.pallas_call(
        kernel,
        out_shape=tuple(out_shapes) if multi else out_shapes[0],
        grid=(1,),
        in_specs=in_specs,
        out_specs=out_specs if multi else out_specs[0],
        scratch_shapes=[pltpu.VMEM((batch, scratch_cols), jnp.float32)],
        compiler_params=pltpu.CompilerParams(dimension_semantics=("arbitrary",)),
    )(*args)


# ----------------------------------------------------------------------------
# Parameter init (PyTorch layout) and one-time lowering to kernel-ready form
# ----------------------------------------------------------------------------
def _conv_size_out(size, kernel_size, stride):
    return (size - kernel_size) // stride + 1


def _uniform(key, shape, fan_in):
    bound = 1.0 / np.sqrt(float(fan_in))
    return jax.random.uniform(key, shape, jnp.float32, -bound, bound)


def init_params(key, H, W, stats_size, n_actions, aleph_extra=25):
    """Raw params in PyTorch layout (conv: (O,C,kh,kw); linear stored as W.T)."""
    convw = _conv_size_out(_conv_size_out(_conv_size_out(H, 4, 3), 3, 2), 2, 1)
    convh = _conv_size_out(_conv_size_out(_conv_size_out(W, 4, 3), 3, 2), 2, 1)
    conv_out_size = convw * convh * 64

    keys = jax.random.split(key, 16)
    p = {}
    p["conv1_w"] = _uniform(keys[0], (32, 1, 4, 4), 1 * 4 * 4)
    p["conv1_b"] = _uniform(keys[1], (32,), 1 * 4 * 4)
    p["conv2_w"] = _uniform(keys[2], (64, 32, 3, 3), 32 * 3 * 3)
    p["conv2_b"] = _uniform(keys[3], (64,), 32 * 3 * 3)
    p["conv3_w"] = _uniform(keys[4], (64, 64, 2, 2), 64 * 2 * 2)
    p["conv3_b"] = _uniform(keys[5], (64,), 64 * 2 * 2)
    fc_in = conv_out_size + stats_size
    p["fc1_w"] = _uniform(keys[6], (fc_in, 512), fc_in)
    p["fc1_b"] = _uniform(keys[7], (512,), fc_in)
    p["fc2_w"] = _uniform(keys[8], (512, n_actions), 512)
    p["fc2_b"] = _uniform(keys[9], (n_actions,), 512)
    fa_in = conv_out_size + stats_size + aleph_extra
    p["fa1_w"] = _uniform(keys[10], (fa_in, 512), fa_in)
    p["fa1_b"] = _uniform(keys[11], (512,), fa_in)
    p["fa2_w"] = _uniform(keys[12], (512, 256), 512)
    p["fa2_b"] = _uniform(keys[13], (256,), 512)
    p["fa3_w"] = _uniform(keys[14], (256, n_actions), 256)
    p["fa3_b"] = _uniform(keys[15], (n_actions,), 256)
    return p


def _scatter_conv_as_matmul(w, b, in_h, in_w, stride):
    """Lower Conv2d(valid) to a dense (in_h*in_w*C, out_h*out_w*O) matrix acting
    on a channels-last flattened activation (columns ordered (spatial, chan))."""
    w = np.asarray(w, np.float32)
    b = np.asarray(b, np.float32)
    O, C, k, _ = w.shape
    out_h = _conv_size_out(in_h, k, stride)
    out_w = _conv_size_out(in_w, k, stride)
    big = np.zeros((in_h * in_w * C, out_h * out_w * O), np.float32)
    for oh in range(out_h):
        for ow in range(out_w):
            pcol = oh * out_w + ow
            for di in range(k):
                for dj in range(k):
                    s_in = (oh * stride + di) * in_w + (ow * stride + dj)
                    big[s_in * C:(s_in + 1) * C, pcol * O:(pcol + 1) * O] = \
                        w[:, :, di, dj].T
                    # big[s_in*C + c, pcol*O + o] = w[o, c, di, dj]
    b_big = np.tile(b, out_h * out_w)
    return big, b_big, out_h, out_w


def prepare_params(p, H, W, stats_size):
    """One-time lowering:
       * conv1 kept as a tiny (k*k, 32) matmul (patches built in the wrapper),
       * conv2/conv3 scattered into dense matmuls,
       * fc/fa conv row-blocks reordered to (spatial, channel),
       * fa2/fa3 folded into a single layer (composed in f32),
       * only the large matrices cast to bf16; everything else stays f32."""
    oh1 = _conv_size_out(H, 4, 3)
    ow1 = _conv_size_out(W, 4, 3)
    cw2, cb2, oh2, ow2 = _scatter_conv_as_matmul(p["conv2_w"], p["conv2_b"],
                                                 oh1, ow1, 2)
    cw3, cb3, oh3, ow3 = _scatter_conv_as_matmul(p["conv3_w"], p["conv3_b"],
                                                 oh2, ow2, 1)
    n_ch = p["conv3_w"].shape[0]
    s3 = oh3 * ow3
    conv_out = s3 * n_ch

    # conv1: (O=32, C=1, 4, 4) -> (16, 32) matmul on im2col patches.
    w1 = np.asarray(p["conv1_w"], np.float32)
    w1m = w1.reshape(w1.shape[0], -1).T                      # rows = (di*4+dj)

    def reorder(fc_conv_rows):
        # PyTorch .view(B,-1) of the NCHW conv output flattens as (chan, spatial);
        # the kernel's conv activation columns are (spatial, chan) -> permute rows.
        n = fc_conv_rows.shape[1]
        return fc_conv_rows.reshape(n_ch, s3, n).transpose(1, 0, 2).reshape(
            conv_out, n)

    fc1 = np.asarray(p["fc1_w"], np.float32)
    fa1 = np.asarray(p["fa1_w"], np.float32)

    # fa2 ∘ fa3 fold (no nonlinearity between them), composed in f32.
    fa2w = np.asarray(p["fa2_w"], np.float32)
    fa2b = np.asarray(p["fa2_b"], np.float32)
    fa3w = np.asarray(p["fa3_w"], np.float32)
    fa3b = np.asarray(p["fa3_b"], np.float32)
    w23 = fa2w @ fa3w
    b23 = fa2b @ fa3w + fa3b

    def bf16(x):
        return jnp.asarray(np.asarray(x, np.float32), jnp.bfloat16)

    def f32(x):
        return jnp.asarray(np.asarray(x, np.float32), jnp.float32)

    def brow(x):
        return jnp.asarray(np.asarray(x, np.float32).reshape(1, -1))

    return {
        "w1": f32(w1m), "b1": brow(p["conv1_b"]),
        "w2": bf16(cw2), "b2": brow(cb2),
        "w3": bf16(cw3), "b3": brow(cb3),
        "fc1_wc": bf16(reorder(fc1[:conv_out])),
        "fc1_ws": f32(fc1[conv_out:conv_out + stats_size]),
        "fc1_b": brow(p["fc1_b"]),
        "fc2_w": f32(p["fc2_w"]), "fc2_b": brow(p["fc2_b"]),
        "fa1_wc": bf16(reorder(fa1[:conv_out])),
        "fa1_ws": f32(fa1[conv_out:conv_out + stats_size]),
        "fa1_wa": f32(fa1[conv_out + stats_size:]),
        "fa1_b": brow(p["fa1_b"]),
        "fa23_w": f32(w23), "fa23_b": brow(b23),
    }


# ----------------------------------------------------------------------------
# Forward (mirrors Policy.forward) — one pallas_call per invocation
# ----------------------------------------------------------------------------
def _im2col_conv1(x1, k=4, stride=3):
    """C=1 im2col with static slices: (B,1,H,W) -> (out_h*out_w, B, k*k)."""
    B, _, H, W = x1.shape
    oh = _conv_size_out(H, k, stride)
    ow = _conv_size_out(W, k, stride)
    x = x1[:, 0]                                              # (B, H, W)
    patches = []
    for i in range(oh):
        for j in range(ow):
            patches.append(
                x[:, i * stride:i * stride + k,
                  j * stride:j * stride + k].reshape(B, k * k))
    return jnp.stack(patches, axis=0)                         # (S1, B, k*k)


def policy_forward(kp, x1, x2, x3=None):
    """Matches Policy.forward: fc head if x3 is None, else aleph head (.flatten())."""
    B = x1.shape[0]
    x1p = _im2col_conv1(x1)
    conv_args = (kp["w1"], kp["b1"], kp["w2"], kp["b2"], kp["w3"], kp["b3"])
    n_actions = kp["fc2_w"].shape[1]
    scratch_cols = kp["w2"].shape[0]                          # S1 * 32
    out_sds = jax.ShapeDtypeStruct((B, n_actions), jnp.float32)
    if x3 is None:
        args = (x1p, x2) + conv_args + (
            kp["fc1_wc"], kp["fc1_ws"], kp["fc1_b"], kp["fc2_w"], kp["fc2_b"])
        return _call_fused(_fc_kernel, args, (out_sds,), scratch_cols, B)
    else:
        args = (x1p, x2, x3) + conv_args + (
            kp["fa1_wc"], kp["fa1_ws"], kp["fa1_wa"], kp["fa1_b"],
            kp["fa23_w"], kp["fa23_b"])
        out = _call_fused(_aleph_kernel, args, (out_sds,), scratch_cols, B)
        return out.reshape(-1)                                # .flatten()


def policy_forward_both(kp, x1, x2, x3):
    """Fused dual-head evaluation: conv trunk shared, one pallas_call."""
    B = x1.shape[0]
    x1p = _im2col_conv1(x1)
    n_actions = kp["fc2_w"].shape[1]
    scratch_cols = kp["w2"].shape[0]
    args = (x1p, x2, x3,
            kp["w1"], kp["b1"], kp["w2"], kp["b2"], kp["w3"], kp["b3"],
            kp["fc1_wc"], kp["fc1_ws"], kp["fc1_b"], kp["fc2_w"], kp["fc2_b"],
            kp["fa1_wc"], kp["fa1_ws"], kp["fa1_wa"], kp["fa1_b"],
            kp["fa23_w"], kp["fa23_b"])
    sds = jax.ShapeDtypeStruct((B, n_actions), jnp.float32)
    out_fc, out_al = _call_fused(_dual_kernel, args, (sds, sds), scratch_cols, B)
    return out_fc, out_al.reshape(-1)


# ----------------------------------------------------------------------------
# Pure-JAX reference (f32) for validation of the fused lowering
# ----------------------------------------------------------------------------
def reference_forward(p, x1, x2, x3=None):
    def conv(x, w, b, stride):
        y = jax.lax.conv_general_dilated(
            x, w, window_strides=(stride, stride), padding="VALID",
            dimension_numbers=("NCHW", "OIHW", "NCHW"))
        return jax.nn.relu(y + b.reshape(1, -1, 1, 1))

    def sig_softmax(z):
        return jax.nn.softmax(jax.nn.sigmoid(z), axis=1)

    h = conv(x1, p["conv1_w"], p["conv1_b"], 3)
    h = conv(h, p["conv2_w"], p["conv2_b"], 2)
    h = conv(h, p["conv3_w"], p["conv3_b"], 1)
    conv_out = h.reshape(x1.shape[0], -1)
    if x3 is None:
        z = jnp.concatenate([conv_out, x2], axis=1)
        z = jax.nn.relu(z @ p["fc1_w"] + p["fc1_b"])
        return sig_softmax(z @ p["fc2_w"] + p["fc2_b"])
    else:
        z = jnp.concatenate([conv_out, x2, x3], axis=1)
        z = jax.nn.relu(z @ p["fa1_w"] + p["fa1_b"])
        z = z @ p["fa2_w"] + p["fa2_b"]
        return sig_softmax(z @ p["fa3_w"] + p["fa3_b"]).reshape(-1)


if __name__ == "__main__":
    B, H, W = 2, 16, 16          # observation map 16x16, 1 channel
    stats_size = 8
    n_actions = 4

    key = jax.random.PRNGKey(0)
    kp_key, k1, k2, k3 = jax.random.split(key, 4)

    raw_params = init_params(kp_key, H, W, stats_size, n_actions)
    kparams = prepare_params(raw_params, H, W, stats_size)

    x1 = jax.random.normal(k1, (B, 1, H, W), jnp.float32)       # NCHW map obs
    x2 = jax.random.normal(k2, (B, stats_size), jnp.float32)    # stats obs
    x3 = jax.random.normal(k3, (B, 25), jnp.float32)            # aleph obs

    fwd_fc = jax.jit(lambda p, a, b: policy_forward(p, a, b, None))
    fwd_aleph = jax.jit(lambda p, a, b, c: policy_forward(p, a, b, c))
    fwd_both = jax.jit(policy_forward_both)

    out_fc = jax.block_until_ready(fwd_fc(kparams, x1, x2))            # (B, A)
    out_aleph = jax.block_until_ready(fwd_aleph(kparams, x1, x2, x3))  # (B*A,)
    both_fc, both_al = fwd_both(kparams, x1, x2, x3)                   # fused
    jax.block_until_ready((both_fc, both_al))

    assert out_fc.shape == (B, n_actions)
    assert out_aleph.shape == (B * n_actions,)
    assert both_fc.shape == (B, n_actions)
    assert both_al.shape == (B * n_actions,)
    # approx-reciprocal softmax: sums are ~1 within the approximation error.
    assert jnp.allclose(jnp.sum(out_fc, axis=-1), 1.0, atol=3e-2)
    assert bool(jnp.all(jnp.isfinite(out_aleph)))

    # Validate the fused/scattered/folded lowering against a plain-JAX f32
    # reference (tolerance accounts for bf16 weights + approx reciprocal).
    ref_fc = reference_forward(raw_params, x1, x2)
    ref_al = reference_forward(raw_params, x1, x2, x3)
    assert jnp.allclose(out_fc, ref_fc, atol=3e-2)
    assert jnp.allclose(out_aleph, ref_al, atol=3e-2)
    assert jnp.allclose(both_fc, ref_fc, atol=3e-2)
    assert jnp.allclose(both_al, ref_al, atol=3e-2)

    print("KERNEL_OK")
</pallas_src>

<mosaic_0001>
module attributes {stable_mosaic.version = 11 : i64} {
  func.func @_fc_kernel(%arg0: i32, %arg1: memref<25x2x16xf32, #tpu.memory_space<vmem>>, %arg2: memref<2x8xf32, #tpu.memory_space<vmem>>, %arg3: memref<16x32xf32, #tpu.memory_space<vmem>>, %arg4: memref<1x32xf32, #tpu.memory_space<vmem>>, %arg5: memref<800x256xbf16, #tpu.memory_space<vmem>>, %arg6: memref<1x256xf32, #tpu.memory_space<vmem>>, %arg7: memref<256x64xbf16, #tpu.memory_space<vmem>>, %arg8: memref<1x64xf32, #tpu.memory_space<vmem>>, %arg9: memref<64x512xbf16, #tpu.memory_space<vmem>>, %arg10: memref<8x512xf32, #tpu.memory_space<vmem>>, %arg11: memref<1x512xf32, #tpu.memory_space<vmem>>, %arg12: memref<512x4xf32, #tpu.memory_space<vmem>>, %arg13: memref<1x4xf32, #tpu.memory_space<vmem>>, %arg14: memref<2x4xf32, #tpu.memory_space<vmem>>, %arg15: memref<2x800xf32, #tpu.memory_space<vmem>>) attributes {dimension_semantics = [#tpu.dimension_semantics<arbitrary>], iteration_bounds = array<i64: 1>, scalar_prefetch = 0 : i64, scratch_operands = 1 : i64, tpu.core_type = #tpu.core_type<tc>, window_params = [{pipeline_mode = #tpu.pipeline_mode<synchronous>, transform_indices = @transform_0, window_bounds = array<i64: 25, 2, 16>}, {pipeline_mode = #tpu.pipeline_mode<synchronous>, transform_indices = @transform_1, window_bounds = array<i64: 2, 8>}, {pipeline_mode = #tpu.pipeline_mode<synchronous>, transform_indices = @transform_2, window_bounds = array<i64: 16, 32>}, {pipeline_mode = #tpu.pipeline_mode<synchronous>, transform_indices = @transform_3, window_bounds = array<i64: 1, 32>}, {pipeline_mode = #tpu.pipeline_mode<synchronous>, transform_indices = @transform_4, window_bounds = array<i64: 800, 256>}, {pipeline_mode = #tpu.pipeline_mode<synchronous>, transform_indices = @transform_5, window_bounds = array<i64: 1, 256>}, {pipeline_mode = #tpu.pipeline_mode<synchronous>, transform_indices = @transform_6, window_bounds = array<i64: 256, 64>}, {pipeline_mode = #tpu.pipeline_mode<synchronous>, transform_indices = @transform_7, window_bounds = array<i64: 1, 64>}, {pipeline_mode = #tpu.pipeline_mode<synchronous>, transform_indices = @transform_8, window_bounds = array<i64: 64, 512>}, {pipeline_mode = #tpu.pipeline_mode<synchronous>, transform_indices = @transform_9, window_bounds = array<i64: 8, 512>}, {pipeline_mode = #tpu.pipeline_mode<synchronous>, transform_indices = @transform_10, window_bounds = array<i64: 1, 512>}, {pipeline_mode = #tpu.pipeline_mode<synchronous>, transform_indices = @transform_11, window_bounds = array<i64: 512, 4>}, {pipeline_mode = #tpu.pipeline_mode<synchronous>, transform_indices = @transform_12, window_bounds = array<i64: 1, 4>}, {pipeline_mode = #tpu.pipeline_mode<synchronous>, transform_indices = @transform_13, window_bounds = array<i64: 2, 4>}]} {
    %c0 = arith.constant 0 : index
    %c0_0 = arith.constant 0 : index
    %c0_1 = arith.constant 0 : index
    %0 = vector.load %arg1[%c0, %c0_0, %c0_1] : memref<25x2x16xf32, #tpu.memory_space<vmem>>, vector<1x2x16xf32>
    %1 = vector.shape_cast %0 : vector<1x2x16xf32> to vector<2x16xf32>
    %c0_2 = arith.constant 0 : index
    %c0_3 = arith.constant 0 : index
    %2 = vector.load %arg3[%c0_2, %c0_3] : memref<16x32xf32, #tpu.memory_space<vmem>>, vector<16x32xf32>
    %cst = arith.constant dense<0.000000e+00> : vector<2x32xf32>
    %3 = tpu.matmul %1, %2, %cst {dimension_numbers = #tpu.dot_dimension_numbers<[1], [0], [0], [1], [0, 0, 1, 1], [], []>} : vector<2x16xf32>, vector<16x32xf32>, vector<2x32xf32> -> vector<2x32xf32>
    %c0_4 = arith.constant 0 : index
    %c0_5 = arith.constant 0 : index
    %4 = vector.load %arg4[%c0_4, %c0_5] : memref<1x32xf32, #tpu.memory_space<vmem>>, vector<1x32xf32>
    %5 = vector.broadcast %4 : vector<1x32xf32> to vector<2x32xf32>
    %6 = arith.addf %3, %5 : vector<2x32xf32>
    %cst_6 = arith.constant 0.000000e+00 : f32
    %7 = vector.broadcast %cst_6 : f32 to vector<2x32xf32>
    %8 = arith.maximumf %6, %7 : vector<2x32xf32>
    %c0_7 = arith.constant 0 : index
    %c0_8 = arith.constant 0 : index
    %9 = vector.load %arg15[%c0_7, %c0_8] : memref<2x800xf32, #tpu.memory_space<vmem>>, vector<2x32xf32>
    tpu.vector_store %arg15[%c0_7, %c0_8], %8 {strides = array<i32>} : memref<2x800xf32, #tpu.memory_space<vmem>>, vector<2x32xf32>,
    %c1 = arith.constant 1 : index
    %c0_9 = arith.constant 0 : index
    %c0_10 = arith.constant 0 : index
    %10 = vector.load %arg1[%c1, %c0_9, %c0_10] : memref<25x2x16xf32, #tpu.memory_space<vmem>>, vector<1x2x16xf32>
    %11 = vector.shape_cast %10 : vector<1x2x16xf32> to vector<2x16xf32>
    %c0_11 = arith.constant 0 : index
    %c0_12 = arith.constant 0 : index
    %12 = vector.load %arg3[%c0_11, %c0_12] : memref<16x32xf32, #tpu.memory_space<vmem>>, vector<16x32xf32>
    %cst_13 = arith.constant dense<0.000000e+00> : vector<2x32xf32>
    %13 = tpu.matmul %11, %12, %cst_13 {dimension_numbers = #tpu.dot_dimension_numbers<[1], [0], [0], [1], [0, 0, 1, 1], [], []>} : vector<2x16xf32>, vector<16x32xf32>, vector<2x32xf32> -> vector<2x32xf32>
    %c0_14 = arith.constant 0 : index
    %c0_15 = arith.constant 0 : index
    %14 = vector.load %arg4[%c0_14, %c0_15] : memref<1x32xf32, #tpu.memory_space<vmem>>, vector<1x32xf32>
    %15 = vector.broadcast %14 : vector<1x32xf32> to vector<2x32xf32>
    %16 = arith.addf %13, %15 : vector<2x32xf32>
    %cst_16 = arith.constant 0.000000e+00 : f32
    %17 = vector.broadcast %cst_16 : f32 to vector<2x32xf32>
    %18 = arith.maximumf %16, %17 : vector<2x32xf32>
    %c0_17 = arith.constant 0 : index
    %c32 = arith.constant 32 : index
    %19 = vector.load %arg15[%c0_17, %c32] : memref<2x800xf32, #tpu.memory_space<vmem>>, vector<2x32xf32>
    tpu.vector_store %arg15[%c0_17, %c32], %18 {strides = array<i32>} : memref<2x800xf32, #tpu.memory_space<vmem>>, vector<2x32xf32>,
    %c2 = arith.constant 2 : index
    %c0_18 = arith.constant 0 : index
    %c0_19 = arith.constant 0 : index
    %20 = vector.load %arg1[%c2, %c0_18, %c0_19] : memref<25x2x16xf32, #tpu.memory_space<vmem>>, vector<1x2x16xf32>
    %21 = vector.shape_cast %20 : vector<1x2x16xf32> to vector<2x16xf32>
    %c0_20 = arith.constant 0 : index
    %c0_21 = arith.constant 0 : index
    %22 = vector.load %arg3[%c0_20, %c0_21] : memref<16x32xf32, #tpu.memory_space<vmem>>, vector<16x32xf32>
    %cst_22 = arith.constant dense<0.000000e+00> : vector<2x32xf32>
    %23 = tpu.matmul %21, %22, %cst_22 {dimension_numbers = #tpu.dot_dimension_numbers<[1], [0], [0], [1], [0, 0, 1, 1], [], []>} : vector<2x16xf32>, vector<16x32xf32>, vector<2x32xf32> -> vector<2x32xf32>
    %c0_23 = arith.constant 0 : index
    %c0_24 = arith.constant 0 : index
    %24 = vector.load %arg4[%c0_23, %c0_24] : memref<1x32xf32, #tpu.memory_space<vmem>>, vector<1x32xf32>
    %25 = vector.broadcast %24 : vector<1x32xf32> to vector<2x32xf32>
    %26 = arith.addf %23, %25 : vector<2x32xf32>
    %cst_25 = arith.constant 0.000000e+00 : f32
    %27 = vector.broadcast %cst_25 : f32 to vector<2x32xf32>
    %28 = arith.maximumf %26, %27 : vector<2x32xf32>
    %c0_26 = arith.constant 0 : index
    %c64 = arith.constant 64 : index
    %29 = vector.load %arg15[%c0_26, %c64] : memref<2x800xf32, #tpu.memory_space<vmem>>, vector<2x32xf32>
    tpu.vector_store %arg15[%c0_26, %c64], %28 {strides = array<i32>} : memref<2x800xf32, #tpu.memory_space<vmem>>, vector<2x32xf32>,
    %c3 = arith.constant 3 : index
    %c0_27 = arith.constant 0 : index
    %c0_28 = arith.constant 0 : index
    %30 = vector.load %arg1[%c3, %c0_27, %c0_28] : memref<25x2x16xf32, #tpu.memory_space<vmem>>, vector<1x2x16xf32>
    %31 = vector.shape_cast %30 : vector<1x2x16xf32> to vector<2x16xf32>
    %c0_29 = arith.constant 0 : index
    %c0_30 = arith.constant 0 : index
    %32 = vector.load %arg3[%c0_29, %c0_30] : memref<16x32xf32, #tpu.memory_space<vmem>>, vector<16x32xf32>
    %cst_31 = arith.constant dense<0.000000e+00> : vector<2x32xf32>
    %33 = tpu.matmul %31, %32, %cst_31 {dimension_numbers = #tpu.dot_dimension_numbers<[1], [0], [0], [1], [0, 0, 1, 1], [], []>} : vector<2x16xf32>, vector<16x32xf32>, vector<2x32xf32> -> vector<2x32xf32>
    %c0_32 = arith.constant 0 : index
    %c0_33 = arith.constant 0 : index
    %34 = vector.load %arg4[%c0_32, %c0_33] : memref<1x32xf32, #tpu.memory_space<vmem>>, vector<1x32xf32>
    %35 = vector.broadcast %34 : vector<1x32xf32> to vector<2x32xf32>
    %36 = arith.addf %33, %35 : vector<2x32xf32>
    %cst_34 = arith.constant 0.000000e+00 : f32
    %37 = vector.broadcast %cst_34 : f32 to vector<2x32xf32>
    %38 = arith.maximumf %36, %37 : vector<2x32xf32>
    %c0_35 = arith.constant 0 : index
    %c96 = arith.constant 96 : index
    %39 = vector.load %arg15[%c0_35, %c96] : memref<2x800xf32, #tpu.memory_space<vmem>>, vector<2x32xf32>
    tpu.vector_store %arg15[%c0_35, %c96], %38 {strides = array<i32>} : memref<2x800xf32, #tpu.memory_space<vmem>>, vector<2x32xf32>,
    %c4 = arith.constant 4 : index
    %c0_36 = arith.constant 0 : index
    %c0_37 = arith.constant 0 : index
    %40 = vector.load %arg1[%c4, %c0_36, %c0_37] : memref<25x2x16xf32, #tpu.memory_space<vmem>>, vector<1x2x16xf32>
    %41 = vector.shape_cast %40 : vector<1x2x16xf32> to vector<2x16xf32>
    %c0_38 = arith.constant 0 : index
    %c0_39 = arith.constant 0 : index
    %42 = vector.load %arg3[%c0_38, %c0_39] : memref<16x32xf32, #tpu.memory_space<vmem>>, vector<16x32xf32>
    %cst_40 = arith.constant dense<0.000000e+00> : vector<2x32xf32>
    %43 = tpu.matmul %41, %42, %cst_40 {dimension_numbers = #tpu.dot_dimension_numbers<[1], [0], [0], [1], [0, 0, 1, 1], [], []>} : vector<2x16xf32>, vector<16x32xf32>, vector<2x32xf32> -> vector<2x32xf32>
    %c0_41 = arith.constant 0 : index
    %c0_42 = arith.constant 0 : index
    %44 = vector.load %arg4[%c0_41, %c0_42] : memref<1x32xf32, #tpu.memory_space<vmem>>, vector<1x32xf32>
    %45 = vector.broadcast %44 : vector<1x32xf32> to vector<2x32xf32>
    %46 = arith.addf %43, %45 : vector<2x32xf32>
    %cst_43 = arith.constant 0.000000e+00 : f32
    %47 = vector.broadcast %cst_43 : f32 to vector<2x32xf32>
    %48 = arith.maximumf %46, %47 : vector<2x32xf32>
    %c0_44 = arith.constant 0 : index
    %c128 = arith.constant 128 : index
    %49 = vector.load %arg15[%c0_44, %c128] : memref<2x800xf32, #tpu.memory_space<vmem>>, vector<2x32xf32>
    tpu.vector_store %arg15[%c0_44, %c128], %48 {strides = array<i32>} : memref<2x800xf32, #tpu.memory_space<vmem>>, vector<2x32xf32>,
    %c5 = arith.constant 5 : index
    %c0_45 = arith.constant 0 : index
    %c0_46 = arith.constant 0 : index
    %50 = vector.load %arg1[%c5, %c0_45, %c0_46] : memref<25x2x16xf32, #tpu.memory_space<vmem>>, vector<1x2x16xf32>
    %51 = vector.shape_cast %50 : vector<1x2x16xf32> to vector<2x16xf32>
    %c0_47 = arith.constant 0 : index
    %c0_48 = arith.constant 0 : index
    %52 = vector.load %arg3[%c0_47, %c0_48] : memref<16x32xf32, #tpu.memory_space<vmem>>, vector<16x32xf32>
    %cst_49 = arith.constant dense<0.000000e+00> : vector<2x32xf32>
    %53 = tpu.matmul %51, %52, %cst_49 {dimension_numbers = #tpu.dot_dimension_numbers<[1], [0], [0], [1], [0, 0, 1, 1], [], []>} : vector<2x16xf32>, vector<16x32xf32>, vector<2x32xf32> -> vector<2x32xf32>
    %c0_50 = arith.constant 0 : index
    %c0_51 = arith.constant 0 : index
    %54 = vector.load %arg4[%c0_50, %c0_51] : memref<1x32xf32, #tpu.memory_space<vmem>>, vector<1x32xf32>
    %55 = vector.broadcast %54 : vector<1x32xf32> to vector<2x32xf32>
    %56 = arith.addf %53, %55 : vector<2x32xf32>
    %cst_52 = arith.constant 0.000000e+00 : f32
    %57 = vector.broadcast %cst_52 : f32 to vector<2x32xf32>
    %58 = arith.maximumf %56, %57 : vector<2x32xf32>
    %c0_53 = arith.constant 0 : index
    %c160 = arith.constant 160 : index
    %59 = vector.load %arg15[%c0_53, %c160] : memref<2x800xf32, #tpu.memory_space<vmem>>, vector<2x32xf32>
    tpu.vector_store %arg15[%c0_53, %c160], %58 {strides = array<i32>} : memref<2x800xf32, #tpu.memory_space<vmem>>, vector<2x32xf32>,
    %c6 = arith.constant 6 : index
    %c0_54 = arith.constant 0 : index
    %c0_55 = arith.constant 0 : index
    %60 = vector.load %arg1[%c6, %c0_54, %c0_55] : memref<25x2x16xf32, #tpu.memory_space<vmem>>, vector<1x2x16xf32>
    %61 = vector.shape_cast %60 : vector<1x2x16xf32> to vector<2x16xf32>
    %c0_56 = arith.constant 0 : index
    %c0_57 = arith.constant 0 : index
    %62 = vector.load %arg3[%c0_56, %c0_57] : memref<16x32xf32, #tpu.memory_space<vmem>>, vector<16x32xf32>
    %cst_58 = arith.constant dense<0.000000e+00> : vector<2x32xf32>
    %63 = tpu.matmul %61, %62, %cst_58 {dimension_numbers = #tpu.dot_dimension_numbers<[1], [0], [0], [1], [0, 0, 1, 1], [], []>} : vector<2x16xf32>, vector<16x32xf32>, vector<2x32xf32> -> vector<2x32xf32>
    %c0_59 = arith.constant 0 : index
    %c0_60 = arith.constant 0 : index
    %64 = vector.load %arg4[%c0_59, %c0_60] : memref<1x32xf32, #tpu.memory_space<vmem>>, vector<1x32xf32>
    %65 = vector.broadcast %64 : vector<1x32xf32> to vector<2x32xf32>
    %66 = arith.addf %63, %65 : vector<2x32xf32>
    %cst_61 = arith.constant 0.000000e+00 : f32
    %67 = vector.broadcast %cst_61 : f32 to vector<2x32xf32>
    %68 = arith.maximumf %66, %67 : vector<2x32xf32>
    %c0_62 = arith.constant 0 : index
    %c192 = arith.constant 192 : index
    %69 = vector.load %arg15[%c0_62, %c192] : memref<2x800xf32, #tpu.memory_space<vmem>>, vector<2x32xf32>
    tpu.vector_store %arg15[%c0_62, %c192], %68 {strides = array<i32>} : memref<2x800xf32, #tpu.memory_space<vmem>>, vector<2x32xf32>,
    %c7 = arith.constant 7 : index
    %c0_63 = arith.constant 0 : index
    %c0_64 = arith.constant 0 : index
    %70 = vector.load %arg1[%c7, %c0_63, %c0_64] : memref<25x2x16xf32, #tpu.memory_space<vmem>>, vector<1x2x16xf32>
    %71 = vector.shape_cast %70 : vector<1x2x16xf32> to vector<2x16xf32>
    %c0_65 = arith.constant 0 : index
    %c0_66 = arith.constant 0 : index
    %72 = vector.load %arg3[%c0_65, %c0_66] : memref<16x32xf32, #tpu.memory_space<vmem>>, vector<16x32xf32>
    %cst_67 = arith.constant dense<0.000000e+00> : vector<2x32xf32>
    %73 = tpu.matmul %71, %72, %cst_67 {dimension_numbers = #tpu.dot_dimension_numbers<[1], [0], [0], [1], [0, 0, 1, 1], [], []>} : vector<2x16xf32>, vector<16x32xf32>, vector<2x32xf32> -> vector<2x32xf32>
    %c0_68 = arith.constant 0 : index
    %c0_69 = arith.constant 0 : index
    %74 = vector.load %arg4[%c0_68, %c0_69] : memref<1x32xf32, #tpu.memory_space<vmem>>, vector<1x32xf32>
    %75 = vector.broadcast %74 : vector<1x32xf32> to vector<2x32xf32>
    %76 = arith.addf %73, %75 : vector<2x32xf32>
    %cst_70 = arith.constant 0.000000e+00 : f32
    %77 = vector.broadcast %cst_70 : f32 to vector<2x32xf32>
    %78 = arith.maximumf %76, %77 : vector<2x32xf32>
    %c0_71 = arith.constant 0 : index
    %c224 = arith.constant 224 : index
    %79 = vector.load %arg15[%c0_71, %c224] : memref<2x800xf32, #tpu.memory_space<vmem>>, vector<2x32xf32>
    tpu.vector_store %arg15[%c0_71, %c224], %78 {strides = array<i32>} : memref<2x800xf32, #tpu.memory_space<vmem>>, vector<2x32xf32>,
    %c8 = arith.constant 8 : index
    %c0_72 = arith.constant 0 : index
    %c0_73 = arith.constant 0 : index
    %80 = vector.load %arg1[%c8, %c0_72, %c0_73] : memref<25x2x16xf32, #tpu.memory_space<vmem>>, vector<1x2x16xf32>
    %81 = vector.shape_cast %80 : vector<1x2x16xf32> to vector<2x16xf32>
    %c0_74 = arith.constant 0 : index
    %c0_75 = arith.constant 0 : index
    %82 = vector.load %arg3[%c0_74, %c0_75] : memref<16x32xf32, #tpu.memory_space<vmem>>, vector<16x32xf32>
    %cst_76 = arith.constant dense<0.000000e+00> : vector<2x32xf32>
    %83 = tpu.matmul %81, %82, %cst_76 {dimension_numbers = #tpu.dot_dimension_numbers<[1], [0], [0], [1], [0, 0, 1, 1], [], []>} : vector<2x16xf32>, vector<16x32xf32>, vector<2x32xf32> -> vector<2x32xf32>
    %c0_77 = arith.constant 0 : index
    %c0_78 = arith.constant 0 : index
    %84 = vector.load %arg4[%c0_77, %c0_78] : memref<1x32xf32, #tpu.memory_space<vmem>>, vector<1x32xf32>
    %85 = vector.broadcast %84 : vector<1x32xf32> to vector<2x32xf32>
    %86 = arith.addf %83, %85 : vector<2x32xf32>
    %cst_79 = arith.constant 0.000000e+00 : f32
    %87 = vector.broadcast %cst_79 : f32 to vector<2x32xf32>
    %88 = arith.maximumf %86, %87 : vector<2x32xf32>
    %c0_80 = arith.constant 0 : index
    %c256 = arith.constant 256 : index
    %89 = vector.load %arg15[%c0_80, %c256] : memref<2x800xf32, #tpu.memory_space<vmem>>, vector<2x32xf32>
    tpu.vector_store %arg15[%c0_80, %c256], %88 {strides = array<i32>} : memref<2x800xf32, #tpu.memory_space<vmem>>, vector<2x32xf32>,
    %c9 = arith.constant 9 : index
    %c0_81 = arith.constant 0 : index
    %c0_82 = arith.constant 0 : index
    %90 = vector.load %arg1[%c9, %c0_81, %c0_82] : memref<25x2x16xf32, #tpu.memory_space<vmem>>, vector<1x2x16xf32>
    %91 = vector.shape_cast %90 : vector<1x2x16xf32> to vector<2x16xf32>
    %c0_83 = arith.constant 0 : index
    %c0_84 = arith.constant 0 : index
    %92 = vector.load %arg3[%c0_83, %c0_84] : memref<16x32xf32, #tpu.memory_space<vmem>>, vector<16x32xf32>
    %cst_85 = arith.constant dense<0.000000e+00> : vector<2x32xf32>
    %93 = tpu.matmul %91, %92, %cst_85 {dimension_numbers = #tpu.dot_dimension_numbers<[1], [0], [0], [1], [0, 0, 1, 1], [], []>} : vector<2x16xf32>, vector<16x32xf32>, vector<2x32xf32> -> vector<2x32xf32>
    %c0_86 = arith.constant 0 : index
    %c0_87 = arith.constant 0 : index
    %94 = vector.load %arg4[%c0_86, %c0_87] : memref<1x32xf32, #tpu.memory_space<vmem>>, vector<1x32xf32>
    %95 = vector.broadcast %94 : vector<1x32xf32> to vector<2x32xf32>
    %96 = arith.addf %93, %95 : vector<2x32xf32>
    %cst_88 = arith.constant 0.000000e+00 : f32
    %97 = vector.broadcast %cst_88 : f32 to vector<2x32xf32>
    %98 = arith.maximumf %96, %97 : vector<2x32xf32>
    %c0_89 = arith.constant 0 : index
    %c288 = arith.constant 288 : index
    %99 = vector.load %arg15[%c0_89, %c288] : memref<2x800xf32, #tpu.memory_space<vmem>>, vector<2x32xf32>
    tpu.vector_store %arg15[%c0_89, %c288], %98 {strides = array<i32>} : memref<2x800xf32, #tpu.memory_space<vmem>>, vector<2x32xf32>,
    %c10 = arith.constant 10 : index
    %c0_90 = arith.constant 0 : index
    %c0_91 = arith.constant 0 : index
    %100 = vector.load %arg1[%c10, %c0_90, %c0_91] : memref<25x2x16xf32, #tpu.memory_space<vmem>>, vector<1x2x16xf32>
    %101 = vector.shape_cast %100 : vector<1x2x16xf32> to vector<2x16xf32>
    %c0_92 = arith.constant 0 : index
    %c0_93 = arith.constant 0 : index
    %102 = vector.load %arg3[%c0_92, %c0_93] : memref<16x32xf32, #tpu.memory_space<vmem>>, vector<16x32xf32>
    %cst_94 = arith.constant dense<0.000000e+00> : vector<2x32xf32>
    %103 = tpu.matmul %101, %102, %cst_94 {dimension_numbers = #tpu.dot_dimension_numbers<[1], [0], [0], [1], [0, 0, 1, 1], [], []>} : vector<2x16xf32>, vector<16x32xf32>, vector<2x32xf32> -> vector<2x32xf32>
    %c0_95 = arith.constant 0 : index
    %c0_96 = arith.constant 0 : index
    %104 = vector.load %arg4[%c0_95, %c0_96] : memref<1x32xf32, #tpu.memory_space<vmem>>, vector<1x32xf32>
    %105 = vector.broadcast %104 : vector<1x32xf32> to vector<2x32xf32>
    %106 = arith.addf %103, %105 : vector<2x32xf32>
    %cst_97 = arith.constant 0.000000e+00 : f32
    %107 = vector.broadcast %cst_97 : f32 to vector<2x32xf32>
    %108 = arith.maximumf %106, %107 : vector<2x32xf32>
    %c0_98 = arith.constant 0 : index
    %c320 = arith.constant 320 : index
    %109 = vector.load %arg15[%c0_98, %c320] : memref<2x800xf32, #tpu.memory_space<vmem>>, vector<2x32xf32>
    tpu.vector_store %arg15[%c0_98, %c320], %108 {strides = array<i32>} : memref<2x800xf32, #tpu.memory_space<vmem>>, vector<2x32xf32>,
    %c11 = arith.constant 11 : index
    %c0_99 = arith.constant 0 : index
    %c0_100 = arith.constant 0 : index
    %110 = vector.load %arg1[%c11, %c0_99, %c0_100] : memref<25x2x16xf32, #tpu.memory_space<vmem>>, vector<1x2x16xf32>
    %111 = vector.shape_cast %110 : vector<1x2x16xf32> to vector<2x16xf32>
    %c0_101 = arith.constant 0 : index
    %c0_102 = arith.constant 0 : index
    %112 = vector.load %arg3[%c0_101, %c0_102] : memref<16x32xf32, #tpu.memory_space<vmem>>, vector<16x32xf32>
    %cst_103 = arith.constant dense<0.000000e+00> : vector<2x32xf32>
    %113 = tpu.matmul %111, %112, %cst_103 {dimension_numbers = #tpu.dot_dimension_numbers<[1], [0], [0], [1], [0, 0, 1, 1], [], []>} : vector<2x16xf32>, vector<16x32xf32>, vector<2x32xf32> -> vector<2x32xf32>
    %c0_104 = arith.constant 0 : index
    %c0_105 = arith.constant 0 : index
    %114 = vector.load %arg4[%c0_104, %c0_105] : memref<1x32xf32, #tpu.memory_space<vmem>>, vector<1x32xf32>
    %115 = vector.broadcast %114 : vector<1x32xf32> to vector<2x32xf32>
    %116 = arith.addf %113, %115 : vector<2x32xf32>
    %cst_106 = arith.constant 0.000000e+00 : f32
    %117 = vector.broadcast %cst_106 : f32 to vector<2x32xf32>
    %118 = arith.maximumf %116, %117 : vector<2x32xf32>
    %c0_107 = arith.constant 0 : index
    %c352 = arith.constant 352 : index
    %119 = vector.load %arg15[%c0_107, %c352] : memref<2x800xf32, #tpu.memory_space<vmem>>, vector<2x32xf32>
    tpu.vector_store %arg15[%c0_107, %c352], %118 {strides = array<i32>} : memref<2x800xf32, #tpu.memory_space<vmem>>, vector<2x32xf32>,
    %c12 = arith.constant 12 : index
    %c0_108 = arith.constant 0 : index
    %c0_109 = arith.constant 0 : index
    %120 = vector.load %arg1[%c12, %c0_108, %c0_109] : memref<25x2x16xf32, #tpu.memory_space<vmem>>, vector<1x2x16xf32>
    %121 = vector.shape_cast %120 : vector<1x2x16xf32> to vector<2x16xf32>
    %c0_110 = arith.constant 0 : index
    %c0_111 = arith.constant 0 : index
    %122 = vector.load %arg3[%c0_110, %c0_111] : memref<16x32xf32, #tpu.memory_space<vmem>>, vector<16x32xf32>
    %cst_112 = arith.constant dense<0.000000e+00> : vector<2x32xf32>
    %123 = tpu.matmul %121, %122, %cst_112 {dimension_numbers = #tpu.dot_dimension_numbers<[1], [0], [0], [1], [0, 0, 1, 1], [], []>} : vector<2x16xf32>, vector<16x32xf32>, vector<2x32xf32> -> vector<2x32xf32>
    %c0_113 = arith.constant 0 : index
    %c0_114 = arith.constant 0 : index
    %124 = vector.load %arg4[%c0_113, %c0_114] : memref<1x32xf32, #tpu.memory_space<vmem>>, vector<1x32xf32>
    %125 = vector.broadcast %124 : vector<1x32xf32> to vector<2x32xf32>
    %126 = arith.addf %123, %125 : vector<2x32xf32>
    %cst_115 = arith.constant 0.000000e+00 : f32
    %127 = vector.broadcast %cst_115 : f32 to vector<2x32xf32>
    %128 = arith.maximumf %126, %127 : vector<2x32xf32>
    %c0_116 = arith.constant 0 : index
    %c384 = arith.constant 384 : index
    %129 = vector.load %arg15[%c0_116, %c384] : memref<2x800xf32, #tpu.memory_space<vmem>>, vector<2x32xf32>
    tpu.vector_store %arg15[%c0_116, %c384], %128 {strides = array<i32>} : memref<2x800xf32, #tpu.memory_space<vmem>>, vector<2x32xf32>,
    %c13 = arith.constant 13 : index
    %c0_117 = arith.constant 0 : index
    %c0_118 = arith.constant 0 : index
    %130 = vector.load %arg1[%c13, %c0_117, %c0_118] : memref<25x2x16xf32, #tpu.memory_space<vmem>>, vector<1x2x16xf32>
    %131 = vector.shape_cast %130 : vector<1x2x16xf32> to vector<2x16xf32>
    %c0_119 = arith.constant 0 : index
    %c0_120 = arith.constant 0 : index
    %132 = vector.load %arg3[%c0_119, %c0_120] : memref<16x32xf32, #tpu.memory_space<vmem>>, vector<16x32xf32>
    %cst_121 = arith.constant dense<0.000000e+00> : vector<2x32xf32>
    %133 = tpu.matmul %131, %132, %cst_121 {dimension_numbers = #tpu.dot_dimension_numbers<[1], [0], [0], [1], [0, 0, 1, 1], [], []>} : vector<2x16xf32>, vector<16x32xf32>, vector<2x32xf32> -> vector<2x32xf32>
    %c0_122 = arith.constant 0 : index
    %c0_123 = arith.constant 0 : index
    %134 = vector.load %arg4[%c0_122, %c0_123] : memref<1x32xf32, #tpu.memory_space<vmem>>, vector<1x32xf32>
    %135 = vector.broadcast %134 : vector<1x32xf32> to vector<2x32xf32>
    %136 = arith.addf %133, %135 : vector<2x32xf32>
    %cst_124 = arith.constant 0.000000e+00 : f32
    %137 = vector.broadcast %cst_124 : f32 to vector<2x32xf32>
    %138 = arith.maximumf %136, %137 : vector<2x32xf32>
    %c0_125 = arith.constant 0 : index
    %c416 = arith.constant 416 : index
    %139 = vector.load %arg15[%c0_125, %c416] : memref<2x800xf32, #tpu.memory_space<vmem>>, vector<2x32xf32>
    tpu.vector_store %arg15[%c0_125, %c416], %138 {strides = array<i32>} : memref<2x800xf32, #tpu.memory_space<vmem>>, vector<2x32xf32>,
    %c14 = arith.constant 14 : index
    %c0_126 = arith.constant 0 : index
    %c0_127 = arith.constant 0 : index
    %140 = vector.load %arg1[%c14, %c0_126, %c0_127] : memref<25x2x16xf32, #tpu.memory_space<vmem>>, vector<1x2x16xf32>
    %141 = vector.shape_cast %140 : vector<1x2x16xf32> to vector<2x16xf32>
    %c0_128 = arith.constant 0 : index
    %c0_129 = arith.constant 0 : index
    %142 = vector.load %arg3[%c0_128, %c0_129] : memref<16x32xf32, #tpu.memory_space<vmem>>, vector<16x32xf32>
    %cst_130 = arith.constant dense<0.000000e+00> : vector<2x32xf32>
    %143 = tpu.matmul %141, %142, %cst_130 {dimension_numbers = #tpu.dot_dimension_numbers<[1], [0], [0], [1], [0, 0, 1, 1], [], []>} : vector<2x16xf32>, vector<16x32xf32>, vector<2x32xf32> -> vector<2x32xf32>
    %c0_131 = arith.constant 0 : index
    %c0_132 = arith.constant 0 : index
    %144 = vector.load %arg4[%c0_131, %c0_132] : memref<1x32xf32, #tpu.memory_space<vmem>>, vector<1x32xf32>
    %145 = vector.broadcast %144 : vector<1x32xf32> to vector<2x32xf32>
    %146 = arith.addf %143, %145 : vector<2x32xf32>
    %cst_133 = arith.constant 0.000000e+00 : f32
    %147 = vector.broadcast %cst_133 : f32 to vector<2x32xf32>
    %148 = arith.maximumf %146, %147 : vector<2x32xf32>
    %c0_134 = arith.constant 0 : index
    %c448 = arith.constant 448 : index
    %149 = vector.load %arg15[%c0_134, %c448] : memref<2x800xf32, #tpu.memory_space<vmem>>, vector<2x32xf32>
    tpu.vector_store %arg15[%c0_134, %c448], %148 {strides = array<i32>} : memref<2x800xf32, #tpu.memory_space<vmem>>, vector<2x32xf32>,
    %c15 = arith.constant 15 : index
    %c0_135 = arith.constant 0 : index
    %c0_136 = arith.constant 0 : index
    %150 = vector.load %arg1[%c15, %c0_135, %c0_136] : memref<25x2x16xf32, #tpu.memory_space<vmem>>, vector<1x2x16xf32>
    %151 = vector.shape_cast %150 : vector<1x2x16xf32> to vector<2x16xf32>
    %c0_137 = arith.constant 0 : index
    %c0_138 = arith.constant 0 : index
    %152 = vector.load %arg3[%c0_137, %c0_138] : memref<16x32xf32, #tpu.memory_space<vmem>>, vector<16x32xf32>
    %cst_139 = arith.constant dense<0.000000e+00> : vector<2x32xf32>
    %153 = tpu.matmul %151, %152, %cst_139 {dimension_numbers = #tpu.dot_dimension_numbers<[1], [0], [0], [1], [0, 0, 1, 1], [], []>} : vector<2x16xf32>, vector<16x32xf32>, vector<2x32xf32> -> vector<2x32xf32>
    %c0_140 = arith.constant 0 : index
    %c0_141 = arith.constant 0 : index
    %154 = vector.load %arg4[%c0_140, %c0_141] : memref<1x32xf32, #tpu.memory_space<vmem>>, vector<1x32xf32>
    %155 = vector.broadcast %154 : vector<1x32xf32> to vector<2x32xf32>
    %156 = arith.addf %153, %155 : vector<2x32xf32>
    %cst_142 = arith.constant 0.000000e+00 : f32
    %157 = vector.broadcast %cst_142 : f32 to vector<2x32xf32>
    %158 = arith.maximumf %156, %157 : vector<2x32xf32>
    %c0_143 = arith.constant 0 : index
    %c480 = arith.constant 480 : index
    %159 = vector.load %arg15[%c0_143, %c480] : memref<2x800xf32, #tpu.memory_space<vmem>>, vector<2x32xf32>
    tpu.vector_store %arg15[%c0_143, %c480], %158 {strides = array<i32>} : memref<2x800xf32, #tpu.memory_space<vmem>>, vector<2x32xf32>,
    %c16 = arith.constant 16 : index
    %c0_144 = arith.constant 0 : index
    %c0_145 = arith.constant 0 : index
    %160 = vector.load %arg1[%c16, %c0_144, %c0_145] : memref<25x2x16xf32, #tpu.memory_space<vmem>>, vector<1x2x16xf32>
    %161 = vector.shape_cast %160 : vector<1x2x16xf32> to vector<2x16xf32>
    %c0_146 = arith.constant 0 : index
    %c0_147 = arith.constant 0 : index
    %162 = vector.load %arg3[%c0_146, %c0_147] : memref<16x32xf32, #tpu.memory_space<vmem>>, vector<16x32xf32>
    %cst_148 = arith.constant dense<0.000000e+00> : vector<2x32xf32>
    %163 = tpu.matmul %161, %162, %cst_148 {dimension_numbers = #tpu.dot_dimension_numbers<[1], [0], [0], [1], [0, 0, 1, 1], [], []>} : vector<2x16xf32>, vector<16x32xf32>, vector<2x32xf32> -> vector<2x32xf32>
    %c0_149 = arith.constant 0 : index
    %c0_150 = arith.constant 0 : index
    %164 = vector.load %arg4[%c0_149, %c0_150] : memref<1x32xf32, #tpu.memory_space<vmem>>, vector<1x32xf32>
    %165 = vector.broadcast %164 : vector<1x32xf32> to vector<2x32xf32>
    %166 = arith.addf %163, %165 : vector<2x32xf32>
    %cst_151 = arith.constant 0.000000e+00 : f32
    %167 = vector.broadcast %cst_151 : f32 to vector<2x32xf32>
    %168 = arith.maximumf %166, %167 : vector<2x32xf32>
    %c0_152 = arith.constant 0 : index
    %c512 = arith.constant 512 : index
    %169 = vector.load %arg15[%c0_152, %c512] : memref<2x800xf32, #tpu.memory_space<vmem>>, vector<2x32xf32>
    tpu.vector_store %arg15[%c0_152, %c512], %168 {strides = array<i32>} : memref<2x800xf32, #tpu.memory_space<vmem>>, vector<2x32xf32>,
    %c17 = arith.constant 17 : index
    %c0_153 = arith.constant 0 : index
    %c0_154 = arith.constant 0 : index
    %170 = vector.load %arg1[%c17, %c0_153, %c0_154] : memref<25x2x16xf32, #tpu.memory_space<vmem>>, vector<1x2x16xf32>
    %171 = vector.shape_cast %170 : vector<1x2x16xf32> to vector<2x16xf32>
    %c0_155 = arith.constant 0 : index
    %c0_156 = arith.constant 0 : index
    %172 = vector.load %arg3[%c0_155, %c0_156] : memref<16x32xf32, #tpu.memory_space<vmem>>, vector<16x32xf32>
    %cst_157 = arith.constant dense<0.000000e+00> : vector<2x32xf32>
    %173 = tpu.matmul %171, %172, %cst_157 {dimension_numbers = #tpu.dot_dimension_numbers<[1], [0], [0], [1], [0, 0, 1, 1], [], []>} : vector<2x16xf32>, vector<16x32xf32>, vector<2x32xf32> -> vector<2x32xf32>
    %c0_158 = arith.constant 0 : index
    %c0_159 = arith.constant 0 : index
    %174 = vector.load %arg4[%c0_158, %c0_159] : memref<1x32xf32, #tpu.memory_space<vmem>>, vector<1x32xf32>
    %175 = vector.broadcast %174 : vector<1x32xf32> to vector<2x32xf32>
    %176 = arith.addf %173, %175 : vector<2x32xf32>
    %cst_160 = arith.constant 0.000000e+00 : f32
    %177 = vector.broadcast %cst_160 : f32 to vector<2x32xf32>
    %178 = arith.maximumf %176, %177 : vector<2x32xf32>
    %c0_161 = arith.constant 0 : index
    %c544 = arith.constant 544 : index
    %179 = vector.load %arg15[%c0_161, %c544] : memref<2x800xf32, #tpu.memory_space<vmem>>, vector<2x32xf32>
    tpu.vector_store %arg15[%c0_161, %c544], %178 {strides = array<i32>} : memref<2x800xf32, #tpu.memory_space<vmem>>, vector<2x32xf32>,
    %c18 = arith.constant 18 : index
    %c0_162 = arith.constant 0 : index
    %c0_163 = arith.constant 0 : index
    %180 = vector.load %arg1[%c18, %c0_162, %c0_163] : memref<25x2x16xf32, #tpu.memory_space<vmem>>, vector<1x2x16xf32>
    %181 = vector.shape_cast %180 : vector<1x2x16xf32> to vector<2x16xf32>
    %c0_164 = arith.constant 0 : index
    %c0_165 = arith.constant 0 : index
    %182 = vector.load %arg3[%c0_164, %c0_165] : memref<16x32xf32, #tpu.memory_space<vmem>>, vector<16x32xf32>
    %cst_166 = arith.constant dense<0.000000e+00> : vector<2x32xf32>
    %183 = tpu.matmul %181, %182, %cst_166 {dimension_numbers = #tpu.dot_dimension_numbers<[1], [0], [0], [1], [0, 0, 1, 1], [], []>} : vector<2x16xf32>, vector<16x32xf32>, vector<2x32xf32> -> vector<2x32xf32>
    %c0_167 = arith.constant 0 : index
    %c0_168 = arith.constant 0 : index
    %184 = vector.load %arg4[%c0_167, %c0_168] : memref<1x32xf32, #tpu.memory_space<vmem>>, vector<1x32xf32>
    %185 = vector.broadcast %184 : vector<1x32xf32> to vector<2x32xf32>
    %186 = arith.addf %183, %185 : vector<2x32xf32>
    %cst_169 = arith.constant 0.000000e+00 : f32
    %187 = vector.broadcast %cst_169 : f32 to vector<2x32xf32>
    %188 = arith.maximumf %186, %187 : vector<2x32xf32>
    %c0_170 = arith.constant 0 : index
    %c576 = arith.constant 576 : index
    %189 = vector.load %arg15[%c0_170, %c576] : memref<2x800xf32, #tpu.memory_space<vmem>>, vector<2x32xf32>
    tpu.vector_store %arg15[%c0_170, %c576], %188 {strides = array<i32>} : memref<2x800xf32, #tpu.memory_space<vmem>>, vector<2x32xf32>,
    %c19 = arith.constant 19 : index
    %c0_171 = arith.constant 0 : index
    %c0_172 = arith.constant 0 : index
    %190 = vector.load %arg1[%c19, %c0_171, %c0_172] : memref<25x2x16xf32, #tpu.memory_space<vmem>>, vector<1x2x16xf32>
    %191 = vector.shape_cast %190 : vector<1x2x16xf32> to vector<2x16xf32>
    %c0_173 = arith.constant 0 : index
    %c0_174 = arith.constant 0 : index
    %192 = vector.load %arg3[%c0_173, %c0_174] : memref<16x32xf32, #tpu.memory_space<vmem>>, vector<16x32xf32>
    %cst_175 = arith.constant dense<0.000000e+00> : vector<2x32xf32>
    %193 = tpu.matmul %191, %192, %cst_175 {dimension_numbers = #tpu.dot_dimension_numbers<[1], [0], [0], [1], [0, 0, 1, 1], [], []>} : vector<2x16xf32>, vector<16x32xf32>, vector<2x32xf32> -> vector<2x32xf32>
    %c0_176 = arith.constant 0 : index
    %c0_177 = arith.constant 0 : index
    %194 = vector.load %arg4[%c0_176, %c0_177] : memref<1x32xf32, #tpu.memory_space<vmem>>, vector<1x32xf32>
    %195 = vector.broadcast %194 : vector<1x32xf32> to vector<2x32xf32>
    %196 = arith.addf %193, %195 : vector<2x32xf32>
    %cst_178 = arith.constant 0.000000e+00 : f32
    %197 = vector.broadcast %cst_178 : f32 to vector<2x32xf32>
    %198 = arith.maximumf %196, %197 : vector<2x32xf32>
    %c0_179 = arith.constant 0 : index
    %c608 = arith.constant 608 : index
    %199 = vector.load %arg15[%c0_179, %c608] : memref<2x800xf32, #tpu.memory_space<vmem>>, vector<2x32xf32>
    tpu.vector_store %arg15[%c0_179, %c608], %198 {strides = array<i32>} : memref<2x800xf32, #tpu.memory_space<vmem>>, vector<2x32xf32>,
    %c20 = arith.constant 20 : index
    %c0_180 = arith.constant 0 : index
    %c0_181 = arith.constant 0 : index
    %200 = vector.load %arg1[%c20, %c0_180, %c0_181] : memref<25x2x16xf32, #tpu.memory_space<vmem>>, vector<1x2x16xf32>
    %201 = vector.shape_cast %200 : vector<1x2x16xf32> to vector<2x16xf32>
    %c0_182 = arith.constant 0 : index
    %c0_183 = arith.constant 0 : index
    %202 = vector.load %arg3[%c0_182, %c0_183] : memref<16x32xf32, #tpu.memory_space<vmem>>, vector<16x32xf32>
    %cst_184 = arith.constant dense<0.000000e+00> : vector<2x32xf32>
    %203 = tpu.matmul %201, %202, %cst_184 {dimension_numbers = #tpu.dot_dimension_numbers<[1], [0], [0], [1], [0, 0, 1, 1], [], []>} : vector<2x16xf32>, vector<16x32xf32>, vector<2x32xf32> -> vector<2x32xf32>
    %c0_185 = arith.constant 0 : index
    %c0_186 = arith.constant 0 : index
    %204 = vector.load %arg4[%c0_185, %c0_186] : memref<1x32xf32, #tpu.memory_space<vmem>>, vector<1x32xf32>
    %205 = vector.broadcast %204 : vector<1x32xf32> to vector<2x32xf32>
    %206 = arith.addf %203, %205 : vector<2x32xf32>
    %cst_187 = arith.constant 0.000000e+00 : f32
    %207 = vector.broadcast %cst_187 : f32 to vector<2x32xf32>
    %208 = arith.maximumf %206, %207 : vector<2x32xf32>
    %c0_188 = arith.constant 0 : index
    %c640 = arith.constant 640 : index
    %209 = vector.load %arg15[%c0_188, %c640] : memref<2x800xf32, #tpu.memory_space<vmem>>, vector<2x32xf32>
    tpu.vector_store %arg15[%c0_188, %c640], %208 {strides = array<i32>} : memref<2x800xf32, #tpu.memory_space<vmem>>, vector<2x32xf32>,
    %c21 = arith.constant 21 : index
    %c0_189 = arith.constant 0 : index
    %c0_190 = arith.constant 0 : index
    %210 = vector.load %arg1[%c21, %c0_189, %c0_190] : memref<25x2x16xf32, #tpu.memory_space<vmem>>, vector<1x2x16xf32>
    %211 = vector.shape_cast %210 : vector<1x2x16xf32> to vector<2x16xf32>
    %c0_191 = arith.constant 0 : index
    %c0_192 = arith.constant 0 : index
    %212 = vector.load %arg3[%c0_191, %c0_192] : memref<16x32xf32, #tpu.memory_space<vmem>>, vector<16x32xf32>
    %cst_193 = arith.constant dense<0.000000e+00> : vector<2x32xf32>
    %213 = tpu.matmul %211, %212, %cst_193 {dimension_numbers = #tpu.dot_dimension_numbers<[1], [0], [0], [1], [0, 0, 1, 1], [], []>} : vector<2x16xf32>, vector<16x32xf32>, vector<2x32xf32> -> vector<2x32xf32>
    %c0_194 = arith.constant 0 : index
    %c0_195 = arith.constant 0 : index
    %214 = vector.load %arg4[%c0_194, %c0_195] : memref<1x32xf32, #tpu.memory_space<vmem>>, vector<1x32xf32>
    %215 = vector.broadcast %214 : vector<1x32xf32> to vector<2x32xf32>
    %216 = arith.addf %213, %215 : vector<2x32xf32>
    %cst_196 = arith.constant 0.000000e+00 : f32
    %217 = vector.broadcast %cst_196 : f32 to vector<2x32xf32>
    %218 = arith.maximumf %216, %217 : vector<2x32xf32>
    %c0_197 = arith.constant 0 : index
    %c672 = arith.constant 672 : index
    %219 = vector.load %arg15[%c0_197, %c672] : memref<2x800xf32, #tpu.memory_space<vmem>>, vector<2x32xf32>
    tpu.vector_store %arg15[%c0_197, %c672], %218 {strides = array<i32>} : memref<2x800xf32, #tpu.memory_space<vmem>>, vector<2x32xf32>,
    %c22 = arith.constant 22 : index
    %c0_198 = arith.constant 0 : index
    %c0_199 = arith.constant 0 : index
    %220 = vector.load %arg1[%c22, %c0_198, %c0_199] : memref<25x2x16xf32, #tpu.memory_space<vmem>>, vector<1x2x16xf32>
    %221 = vector.shape_cast %220 : vector<1x2x16xf32> to vector<2x16xf32>
    %c0_200 = arith.constant 0 : index
    %c0_201 = arith.constant 0 : index
    %222 = vector.load %arg3[%c0_200, %c0_201] : memref<16x32xf32, #tpu.memory_space<vmem>>, vector<16x32xf32>
    %cst_202 = arith.constant dense<0.000000e+00> : vector<2x32xf32>
    %223 = tpu.matmul %221, %222, %cst_202 {dimension_numbers = #tpu.dot_dimension_numbers<[1], [0], [0], [1], [0, 0, 1, 1], [], []>} : vector<2x16xf32>, vector<16x32xf32>, vector<2x32xf32> -> vector<2x32xf32>
    %c0_203 = arith.constant 0 : index
    %c0_204 = arith.constant 0 : index
    %224 = vector.load %arg4[%c0_203, %c0_204] : memref<1x32xf32, #tpu.memory_space<vmem>>, vector<1x32xf32>
    %225 = vector.broadcast %224 : vector<1x32xf32> to vector<2x32xf32>
    %226 = arith.addf %223, %225 : vector<2x32xf32>
    %cst_205 = arith.constant 0.000000e+00 : f32
    %227 = vector.broadcast %cst_205 : f32 to vector<2x32xf32>
    %228 = arith.maximumf %226, %227 : vector<2x32xf32>
    %c0_206 = arith.constant 0 : index
    %c704 = arith.constant 704 : index
    %229 = vector.load %arg15[%c0_206, %c704] : memref<2x800xf32, #tpu.memory_space<vmem>>, vector<2x32xf32>
    tpu.vector_store %arg15[%c0_206, %c704], %228 {strides = array<i32>} : memref<2x800xf32, #tpu.memory_space<vmem>>, vector<2x32xf32>,
    %c23 = arith.constant 23 : index
    %c0_207 = arith.constant 0 : index
    %c0_208 = arith.constant 0 : index
    %230 = vector.load %arg1[%c23, %c0_207, %c0_208] : memref<25x2x16xf32, #tpu.memory_space<vmem>>, vector<1x2x16xf32>
    %231 = vector.shape_cast %230 : vector<1x2x16xf32> to vector<2x16xf32>
    %c0_209 = arith.constant 0 : index
    %c0_210 = arith.constant 0 : index
    %232 = vector.load %arg3[%c0_209, %c0_210] : memref<16x32xf32, #tpu.memory_space<vmem>>, vector<16x32xf32>
    %cst_211 = arith.constant dense<0.000000e+00> : vector<2x32xf32>
    %233 = tpu.matmul %231, %232, %cst_211 {dimension_numbers = #tpu.dot_dimension_numbers<[1], [0], [0], [1], [0, 0, 1, 1], [], []>} : vector<2x16xf32>, vector<16x32xf32>, vector<2x32xf32> -> vector<2x32xf32>
    %c0_212 = arith.constant 0 : index
    %c0_213 = arith.constant 0 : index
    %234 = vector.load %arg4[%c0_212, %c0_213] : memref<1x32xf32, #tpu.memory_space<vmem>>, vector<1x32xf32>
    %235 = vector.broadcast %234 : vector<1x32xf32> to vector<2x32xf32>
    %236 = arith.addf %233, %235 : vector<2x32xf32>
    %cst_214 = arith.constant 0.000000e+00 : f32
    %237 = vector.broadcast %cst_214 : f32 to vector<2x32xf32>
    %238 = arith.maximumf %236, %237 : vector<2x32xf32>
    %c0_215 = arith.constant 0 : index
    %c736 = arith.constant 736 : index
    %239 = vector.load %arg15[%c0_215, %c736] : memref<2x800xf32, #tpu.memory_space<vmem>>, vector<2x32xf32>
    tpu.vector_store %arg15[%c0_215, %c736], %238 {strides = array<i32>} : memref<2x800xf32, #tpu.memory_space<vmem>>, vector<2x32xf32>,
    %c24 = arith.constant 24 : index
    %c0_216 = arith.constant 0 : index
    %c0_217 = arith.constant 0 : index
    %240 = vector.load %arg1[%c24, %c0_216, %c0_217] : memref<25x2x16xf32, #tpu.memory_space<vmem>>, vector<1x2x16xf32>
    %241 = vector.shape_cast %240 : vector<1x2x16xf32> to vector<2x16xf32>
    %c0_218 = arith.constant 0 : index
    %c0_219 = arith.constant 0 : index
    %242 = vector.load %arg3[%c0_218, %c0_219] : memref<16x32xf32, #tpu.memory_space<vmem>>, vector<16x32xf32>
    %cst_220 = arith.constant dense<0.000000e+00> : vector<2x32xf32>
    %243 = tpu.matmul %241, %242, %cst_220 {dimension_numbers = #tpu.dot_dimension_numbers<[1], [0], [0], [1], [0, 0, 1, 1], [], []>} : vector<2x16xf32>, vector<16x32xf32>, vector<2x32xf32> -> vector<2x32xf32>
    %c0_221 = arith.constant 0 : index
    %c0_222 = arith.constant 0 : index
    %244 = vector.load %arg4[%c0_221, %c0_222] : memref<1x32xf32, #tpu.memory_space<vmem>>, vector<1x32xf32>
    %245 = vector.broadcast %244 : vector<1x32xf32> to vector<2x32xf32>
    %246 = arith.addf %243, %245 : vector<2x32xf32>
    %cst_223 = arith.constant 0.000000e+00 : f32
    %247 = vector.broadcast %cst_223 : f32 to vector<2x32xf32>
    %248 = arith.maximumf %246, %247 : vector<2x32xf32>
    %c0_224 = arith.constant 0 : index
    %c768 = arith.constant 768 : index
    %249 = vector.load %arg15[%c0_224, %c768] : memref<2x800xf32, #tpu.memory_space<vmem>>, vector<2x32xf32>
    tpu.vector_store %arg15[%c0_224, %c768], %248 {strides = array<i32>} : memref<2x800xf32, #tpu.memory_space<vmem>>, vector<2x32xf32>,
    %c0_225 = arith.constant 0 : index
    %c0_226 = arith.constant 0 : index
    %250 = vector.load %arg15[%c0_225, %c0_226] : memref<2x800xf32, #tpu.memory_space<vmem>>, vector<2x800xf32>
    %251 = arith.truncf %250 : vector<2x800xf32> to vector<2x800xbf16>
    %c0_227 = arith.constant 0 : index
    %c0_228 = arith.constant 0 : index
    %252 = vector.load %arg5[%c0_227, %c0_228] : memref<800x256xbf16, #tpu.memory_space<vmem>>, vector<800x256xbf16>
    %cst_229 = arith.constant dense<0.000000e+00> : vector<2x256xf32>
    %253 = tpu.matmul %251, %252, %cst_229 {dimension_numbers = #tpu.dot_dimension_numbers<[1], [0], [0], [1], [0, 0, 1, 1], [], []>} : vector<2x800xbf16>, vector<800x256xbf16>, vector<2x256xf32> -> vector<2x256xf32>
    %c0_230 = arith.constant 0 : index
    %c0_231 = arith.constant 0 : index
    %254 = vector.load %arg6[%c0_230, %c0_231] : memref<1x256xf32, #tpu.memory_space<vmem>>, vector<1x256xf32>
    %255 = vector.broadcast %254 : vector<1x256xf32> to vector<2x256xf32>
    %256 = arith.addf %253, %255 : vector<2x256xf32>
    %cst_232 = arith.constant 0.000000e+00 : f32
    %257 = vector.broadcast %cst_232 : f32 to vector<2x256xf32>
    %258 = arith.maximumf %256, %257 : vector<2x256xf32>
    %259 = arith.truncf %258 : vector<2x256xf32> to vector<2x256xbf16>
    %c0_233 = arith.constant 0 : index
    %c0_234 = arith.constant 0 : index
    %260 = vector.load %arg7[%c0_233, %c0_234] : memref<256x64xbf16, #tpu.memory_space<vmem>>, vector<256x64xbf16>
    %cst_235 = arith.constant dense<0.000000e+00> : vector<2x64xf32>
    %261 = tpu.matmul %259, %260, %cst_235 {dimension_numbers = #tpu.dot_dimension_numbers<[1], [0], [0], [1], [0, 0, 1, 1], [], []>} : vector<2x256xbf16>, vector<256x64xbf16>, vector<2x64xf32> -> vector<2x64xf32>
    %c0_236 = arith.constant 0 : index
    %c0_237 = arith.constant 0 : index
    %262 = vector.load %arg8[%c0_236, %c0_237] : memref<1x64xf32, #tpu.memory_space<vmem>>, vector<1x64xf32>
    %263 = vector.broadcast %262 : vector<1x64xf32> to vector<2x64xf32>
    %264 = arith.addf %261, %263 : vector<2x64xf32>
    %cst_238 = arith.constant 0.000000e+00 : f32
    %265 = vector.broadcast %cst_238 : f32 to vector<2x64xf32>
    %266 = arith.maximumf %264, %265 : vector<2x64xf32>
    %267 = arith.truncf %266 : vector<2x64xf32> to vector<2x64xbf16>
    %c0_239 = arith.constant 0 : index
    %c0_240 = arith.constant 0 : index
    %268 = vector.load %arg9[%c0_239, %c0_240] : memref<64x512xbf16, #tpu.memory_space<vmem>>, vector<64x512xbf16>
    %cst_241 = arith.constant dense<0.000000e+00> : vector<2x512xf32>
    %269 = tpu.matmul %267, %268, %cst_241 {dimension_numbers = #tpu.dot_dimension_numbers<[1], [0], [0], [1], [0, 0, 1, 1], [], []>} : vector<2x64xbf16>, vector<64x512xbf16>, vector<2x512xf32> -> vector<2x512xf32>
    %c0_242 = arith.constant 0 : index
    %c0_243 = arith.constant 0 : index
    %270 = vector.load %arg2[%c0_242, %c0_243] : memref<2x8xf32, #tpu.memory_space<vmem>>, vector<2x8xf32>
    %c0_244 = arith.constant 0 : index
    %c0_245 = arith.constant 0 : index
    %271 = vector.load %arg10[%c0_244, %c0_245] : memref<8x512xf32, #tpu.memory_space<vmem>>, vector<8x512xf32>
    %cst_246 = arith.constant dense<0.000000e+00> : vector<2x512xf32>
    %272 = tpu.matmul %270, %271, %cst_246 {dimension_numbers = #tpu.dot_dimension_numbers<[1], [0], [0], [1], [0, 0, 1, 1], [], []>} : vector<2x8xf32>, vector<8x512xf32>, vector<2x512xf32> -> vector<2x512xf32>
    %273 = arith.addf %269, %272 : vector<2x512xf32>
    %c0_247 = arith.constant 0 : index
    %c0_248 = arith.constant 0 : index
    %274 = vector.load %arg11[%c0_247, %c0_248] : memref<1x512xf32, #tpu.memory_space<vmem>>, vector<1x512xf32>
    %275 = vector.broadcast %274 : vector<1x512xf32> to vector<2x512xf32>
    %276 = arith.addf %273, %275 : vector<2x512xf32>
    %cst_249 = arith.constant 0.000000e+00 : f32
    %277 = vector.broadcast %cst_249 : f32 to vector<2x512xf32>
    %278 = arith.maximumf %276, %277 : vector<2x512xf32>
    %c0_250 = arith.constant 0 : index
    %c0_251 = arith.constant 0 : index
    %279 = vector.load %arg12[%c0_250, %c0_251] : memref<512x4xf32, #tpu.memory_space<vmem>>, vector<512x4xf32>
    %cst_252 = arith.constant dense<0.000000e+00> : vector<2x4xf32>
    %280 = tpu.matmul %278, %279, %cst_252 {dimension_numbers = #tpu.dot_dimension_numbers<[1], [0], [0], [1], [0, 0, 1, 1], [], []>} : vector<2x512xf32>, vector<512x4xf32>, vector<2x4xf32> -> vector<2x4xf32>
    %c0_253 = arith.constant 0 : index
    %c0_254 = arith.constant 0 : index
    %281 = vector.load %arg13[%c0_253, %c0_254] : memref<1x4xf32, #tpu.memory_space<vmem>>, vector<1x4xf32>
    %282 = vector.broadcast %281 : vector<1x4xf32> to vector<2x4xf32>
    %283 = arith.addf %280, %282 : vector<2x4xf32>
    %284 = arith.negf %283 : vector<2x4xf32>
    %285 = math.exp %284 : vector<2x4xf32>
    %cst_255 = arith.constant 1.000000e+00 : f32
    %286 = vector.broadcast %cst_255 : f32 to vector<2x4xf32>
    %287 = arith.addf %286, %285 : vector<2x4xf32>
    %288 = arith.divf %286, %287 : vector<2x4xf32>
    %289 = math.exp %288 : vector<2x4xf32>
    %cst_256 = arith.constant dense<0.000000e+00> : vector<2xf32>
    %290 = vector.multi_reduction <add>, %289, %cst_256 [1] : vector<2x4xf32> to vector<2xf32>
    %291 = vector.shape_cast %290 : vector<2xf32> to vector<2x1xf32>
    %292 = tpu.reciprocal %291 {approx = true} : vector<2x1xf32> -> vector<2x1xf32>
    %293 = vector.broadcast %292 : vector<2x1xf32> to vector<2x4xf32>
    %294 = arith.mulf %289, %293 : vector<2x4xf32>
    %c0_257 = arith.constant 0 : index
    %c0_258 = arith.constant 0 : index
    %295 = vector.load %arg14[%c0_257, %c0_258] : memref<2x4xf32, #tpu.memory_space<vmem>>, vector<2x4xf32>
    tpu.vector_store %arg14[%c0_257, %c0_258], %294 {strides = array<i32>} : memref<2x4xf32, #tpu.memory_space<vmem>>, vector<2x4xf32>,
    return
  }
  func.func @transform_0(%arg0: i32) -> (i32, i32, i32) {
    %c0_i32 = arith.constant 0 : i32
    %c0_i32_0 = arith.constant 0 : i32
    %c0_i32_1 = arith.constant 0 : i32
    %c0_i32_2 = arith.constant 0 : i32
    return %c0_i32, %c0_i32_0, %c0_i32_1 : i32, i32, i32
  }
  func.func @transform_1(%arg0: i32) -> (i32, i32) {
    %c0_i32 = arith.constant 0 : i32
    %c0_i32_0 = arith.constant 0 : i32
    %c0_i32_1 = arith.constant 0 : i32
    return %c0_i32, %c0_i32_0 : i32, i32
  }
  func.func @transform_2(%arg0: i32) -> (i32, i32) {
    %c0_i32 = arith.constant 0 : i32
    %c0_i32_0 = arith.constant 0 : i32
    %c0_i32_1 = arith.constant 0 : i32
    return %c0_i32, %c0_i32_0 : i32, i32
  }
  func.func @transform_3(%arg0: i32) -> (i32, i32) {
    %c0_i32 = arith.constant 0 : i32
    %c0_i32_0 = arith.constant 0 : i32
    %c0_i32_1 = arith.constant 0 : i32
    return %c0_i32, %c0_i32_0 : i32, i32
  }
  func.func @transform_4(%arg0: i32) -> (i32, i32) {
    %c0_i32 = arith.constant 0 : i32
    %c0_i32_0 = arith.constant 0 : i32
    %c0_i32_1 = arith.constant 0 : i32
    return %c0_i32, %c0_i32_0 : i32, i32
  }
  func.func @transform_5(%arg0: i32) -> (i32, i32) {
    %c0_i32 = arith.constant 0 : i32
    %c0_i32_0 = arith.constant 0 : i32
    %c0_i32_1 = arith.constant 0 : i32
    return %c0_i32, %c0_i32_0 : i32, i32
  }
  func.func @transform_6(%arg0: i32) -> (i32, i32) {
    %c0_i32 = arith.constant 0 : i32
    %c0_i32_0 = arith.constant 0 : i32
    %c0_i32_1 = arith.constant 0 : i32
    return %c0_i32, %c0_i32_0 : i32, i32
  }
  func.func @transform_7(%arg0: i32) -> (i32, i32) {
    %c0_i32 = arith.constant 0 : i32
    %c0_i32_0 = arith.constant 0 : i32
    %c0_i32_1 = arith.constant 0 : i32
    return %c0_i32, %c0_i32_0 : i32, i32
  }
  func.func @transform_8(%arg0: i32) -> (i32, i32) {
    %c0_i32 = arith.constant 0 : i32
    %c0_i32_0 = arith.constant 0 : i32
    %c0_i32_1 = arith.constant 0 : i32
    return %c0_i32, %c0_i32_0 : i32, i32
  }
  func.func @transform_9(%arg0: i32) -> (i32, i32) {
    %c0_i32 = arith.constant 0 : i32
    %c0_i32_0 = arith.constant 0 : i32
    %c0_i32_1 = arith.constant 0 : i32
    return %c0_i32, %c0_i32_0 : i32, i32
  }
  func.func @transform_10(%arg0: i32) -> (i32, i32) {
    %c0_i32 = arith.constant 0 : i32
    %c0_i32_0 = arith.constant 0 : i32
    %c0_i32_1 = arith.constant 0 : i32
    return %c0_i32, %c0_i32_0 : i32, i32
  }
  func.func @transform_11(%arg0: i32) -> (i32, i32) {
    %c0_i32 = arith.constant 0 : i32
    %c0_i32_0 = arith.constant 0 : i32
    %c0_i32_1 = arith.constant 0 : i32
    return %c0_i32, %c0_i32_0 : i32, i32
  }
  func.func @transform_12(%arg0: i32) -> (i32, i32) {
    %c0_i32 = arith.constant 0 : i32
    %c0_i32_0 = arith.constant 0 : i32
    %c0_i32_1 = arith.constant 0 : i32
    return %c0_i32, %c0_i32_0 : i32, i32
  }
  func.func @transform_13(%arg0: i32) -> (i32, i32) {
    %c0_i32 = arith.constant 0 : i32
    %c0_i32_0 = arith.constant 0 : i32
    %c0_i32_1 = arith.constant 0 : i32
    return %c0_i32, %c0_i32_0 : i32, i32
  }
}

</mosaic_0001>

<llo_original>
// kernel: _lambda_.1
$region0: #{_lambda_.1}
  #allocation0 [shape = 'u32[]', space=smem, size = 0x4, offset = 0x4, fixed_abs, tag = 'smem constant byte address 0x4 - core index']
  #allocation1 [shape = 'u32[144,128]{1,0:T(1,128)}', space=vmem, size = 0x12000, scoped, tag = 'internal scratch']
  #allocation2 [shape = 'f32[2,800]{1,0:T(2,128)}', space=vmem, size = 0x1c00, scoped, tag = 'scratch operand']
  %s0 = inlined_call_operand.vmem [shape: f32[25,2,16], index: 0, kind: input, shape index: {}]
  %s1 = inlined_call_operand.vmem [shape: f32[2,8], index: 1, kind: input, shape index: {}]
  %s2 = inlined_call_operand.vmem [shape: f32[16,32], index: 2, kind: input, shape index: {}]
  %s3 = inlined_call_operand.vmem [shape: f32[1,32], index: 3, kind: input, shape index: {}]
  %s4 = inlined_call_operand.vmem [shape: bf16[800,256], index: 4, kind: input, shape index: {}]
  %s5 = inlined_call_operand.vmem [shape: f32[1,256], index: 5, kind: input, shape index: {}]
  %s6 = inlined_call_operand.vmem [shape: bf16[256,64], index: 6, kind: input, shape index: {}]
  %s7 = inlined_call_operand.vmem [shape: f32[1,64], index: 7, kind: input, shape index: {}]
  %s8 = inlined_call_operand.vmem [shape: bf16[64,512], index: 8, kind: input, shape index: {}]
  %s9 = inlined_call_operand.vmem [shape: f32[8,512], index: 9, kind: input, shape index: {}]
  %s10 = inlined_call_operand.vmem [shape: f32[1,512], index: 10, kind: input, shape index: {}]
  %s11 = inlined_call_operand.vmem [shape: f32[512,4], index: 11, kind: input, shape index: {}]
  %s12 = inlined_call_operand.vmem [shape: f32[1,4], index: 12, kind: input, shape index: {}]
  %s13 = inlined_call_operand.hbm [shape: f32[2,4], index: 13, kind: output, shape index: {}]
  %s14 = sld [smem:[#allocation0]]
  $region62: #{_lambda_.1} parent=0
    _
  %s16 = ssub.s32 1, %s14
  %s17 = scalar_select 0, %s16, %s14
  $region1: #{_lambda_.1} parent=0
    #allocation3 [shape = 'u8[1024]{0}', space=vmem, size = 0x400, scoped, tag = 'output window, operand 0, single buffered']
    #allocation4 [shape = 's32[1]{0}', space=sflag, size = 0x4, scoped, tag = 'scoped memory for _lambda_.1']
    %18 = vsyncpa [#allocation4], 0
    // Predicated region
    $region2: #{_lambda_.1} parent=1 // pred_check
      _
    $region3: #{_lambda_.1} parent=1 // pred_check_branch
      %20 = sbr.rel (0) target = $region5
    $region4: #{_lambda_.1} parent=1 // pred_region
      _
    $region5: #{_lambda_.1} parent=1 // pred_fallthru
      _
    // Predicated region
    $region6: #{_lambda_.1} parent=1 // pred_check
      _
    $region7: #{_lambda_.1} parent=1 // pred_check_branch
      %22 = sbr.rel (0) target = $region9
    $region8: #{_lambda_.1} parent=1 // pred_region
      _
    $region9: #{_lambda_.1} parent=1 // pred_fallthru
      _
    // Predicated region
    $region10: #{_lambda_.1} parent=1 // pred_check
      _
    $region11: #{_lambda_.1} parent=1 // pred_check_branch
      %24 = sbr.rel (0) target = $region13
    $region12: #{_lambda_.1} parent=1 // pred_region
      _
    $region13: #{_lambda_.1} parent=1 // pred_fallthru
      _
    // Predicated region
    $region14: #{_lambda_.1} parent=1 // pred_check
      _
    $region15: #{_lambda_.1} parent=1 // pred_check_branch
      %26 = sbr.rel (0) target = $region17
    $region16: #{_lambda_.1} parent=1 // pred_region
      _
    $region17: #{_lambda_.1} parent=1 // pred_fallthru
      _
    // Predicated region
    $region18: #{_lambda_.1} parent=1 // pred_check
      _
    $region19: #{_lambda_.1} parent=1 // pred_check_branch
      %28 = sbr.rel (0) target = $region21
    $region20: #{_lambda_.1} parent=1 // pred_region
      _
    $region21: #{_lambda_.1} parent=1 // pred_fallthru
      _
    // Predicated region
    $region22: #{_lambda_.1} parent=1 // pred_check
      _
    $region23: #{_lambda_.1} parent=1 // pred_check_branch
      %30 = sbr.rel (0) target = $region25
    $region24: #{_lambda_.1} parent=1 // pred_region
      _
    $region25: #{_lambda_.1} parent=1 // pred_fallthru
      _
    // Predicated region
    $region26: #{_lambda_.1} parent=1 // pred_check
      _
    $region27: #{_lambda_.1} parent=1 // pred_check_branch
      %32 = sbr.rel (0) target = $region29
    $region28: #{_lambda_.1} parent=1 // pred_region
      _
    $region29: #{_lambda_.1} parent=1 // pred_fallthru
      _
    // Predicated region
    $region30: #{_lambda_.1} parent=1 // pred_check
      _
    $region31: #{_lambda_.1} parent=1 // pred_check_branch
      %34 = sbr.rel (0) target = $region33
    $region32: #{_lambda_.1} parent=1 // pred_region
      _
    $region33: #{_lambda_.1} parent=1 // pred_fallthru
      _
    // Predicated region
    $region34: #{_lambda_.1} parent=1 // pred_check
      _
    $region35: #{_lambda_.1} parent=1 // pred_check_branch
      %36 = sbr.rel (0) target = $region37
    $region36: #{_lambda_.1} parent=1 // pred_region
      _
    $region37: #{_lambda_.1} parent=1 // pred_fallthru
      _
    // Predicated region
    $region38: #{_lambda_.1} parent=1 // pred_check
      _
    $region39: #{_lambda_.1} parent=1 // pred_check_branch
      %38 = sbr.rel (0) target = $region41
    $region40: #{_lambda_.1} parent=1 // pred_region
      _
    $region41: #{_lambda_.1} parent=1 // pred_fallthru
      _
    // Predicated region
    $region42: #{_lambda_.1} parent=1 // pred_check
      _
    $region43: #{_lambda_.1} parent=1 // pred_check_branch
      %40 = sbr.rel (0) target = $region45
    $region44: #{_lambda_.1} parent=1 // pred_region
      _
    $region45: #{_lambda_.1} parent=1 // pred_fallthru
      _
    // Predicated region
    $region46: #{_lambda_.1} parent=1 // pred_check
      _
    $region47: #{_lambda_.1} parent=1 // pred_check_branch
      %42 = sbr.rel (0) target = $region49
    $region48: #{_lambda_.1} parent=1 // pred_region
      _
    $region49: #{_lambda_.1} parent=1 // pred_fallthru
      _
    // Predicated region
    $region50: #{_lambda_.1} parent=1 // pred_check
      _
    $region51: #{_lambda_.1} parent=1 // pred_check_branch
      %44 = sbr.rel (0) target = $region53
    $region52: #{_lambda_.1} parent=1 // pred_region
      _
    $region53: #{_lambda_.1} parent=1 // pred_fallthru
      _
    %v46 = vld [vmem:[%s0] sm:$0x3]
    %v47 = vld [vmem:[%s2] sm:$0xff]
    %v48 = vld [vmem:[%s2 + $0x8] sm:$0xff]
    %v49 = vld [vmem:[%s3] sm:$0x1]
    %v51 = vlaneseq
    %v52 = vshrl.u32 %v51, 7
    %v53 = vsub.s32 0, %v52
    %v54 = vrot.slane %v49, %v53
    %vm56 = vcmask 130048
    %v58 = vsel %vm56, %v46, 0
    %60 = vmatprep.subr.mxu0 0.0
    %61 = vmatpush1.msra.mxu0 %v47
    %62 = vmatprep.subr.mxu0 0.0
    %63 = vmatpush1.msra.mxu0 %v48
    %64 = vmatprep.subr.mxu0 0.0
    %65 = vmatpush1.msra.mxu0 0.0
    %66 = vmatprep.subr.mxu0 0.0
    %67 = vmatpush1.msra.mxu0 0.0
    %68 = vmatprep.subr.mxu0 0.0
    %69 = vmatpush1.msra.mxu0 0.0
    %70 = vmatprep.subr.mxu0 0.0
    %71 = vmatpush1.msra.mxu0 0.0
    %72 = vmatprep.subr.mxu0 0.0
    %73 = vmatpush1.msra.mxu0 0.0
    %74 = vmatprep.subr.mxu0 0.0
    %75 = vmatpush1.msra.mxu0 0.0
    %76 = vmatprep.subr.mxu0 0.0
    %77 = vmatpush1.msra.mxu0 0.0
    %78 = vmatprep.subr.mxu0 0.0
    %79 = vmatpush1.msra.mxu0 0.0
    %80 = vmatprep.subr.mxu0 0.0
    %81 = vmatpush1.msra.mxu0 0.0
    %82 = vmatprep.subr.mxu0 0.0
    %83 = vmatpush1.msra.mxu0 0.0
    %84 = vmatprep.subr.mxu0 0.0
    %85 = vmatpush1.msra.mxu0 0.0
    %86 = vmatprep.subr.mxu0 0.0
    %87 = vmatpush1.msra.mxu0 0.0
    %88 = vmatprep.subr.mxu0 0.0
    %89 = vmatpush1.msra.mxu0 0.0
    %90 = vmatprep.subr.mxu0 0.0
    %91 = vmatpush1.msra.mxu0 0.0
    %92 = vmatprep.subr.mxu0 0.0
    %93 = vmatpush1.msra.mxu0 0.0
    %94 = vmatprep.subr.mxu0 0.0
    %95 = vmatpush1.msra.mxu0 0.0
    %96 = vmatprep.subr.mxu0 0.0
    %97 = vmatpush1.msra.mxu0 0.0
    %98 = vmatprep.subr.mxu0 0.0
    %99 = vmatpush1.msra.mxu0 0.0
    %100 = vmatprep.subr.mxu0 0.0
    %101 = vmatpush1.msra.mxu0 0.0
    %102 = vmatprep.subr.mxu0 0.0
    %103 = vmatpush1.msra.mxu0 0.0
    %104 = vmatprep.subr.mxu0 0.0
    %105 = vmatpush1.msra.mxu0 0.0
    %106 = vmatprep.subr.mxu0 0.0
    %107 = vmatpush1.msra.mxu0 0.0
    %108 = vmatprep.subr.mxu0 0.0
    %109 = vmatpush1.msra.mxu0 0.0
    %110 = vmatprep.subr.mxu0 0.0
    %111 = vmatpush1.msra.mxu0 0.0
    %112 = vmatprep.subr.mxu0 0.0
    %113 = vmatpush1.msra.mxu0 0.0
    %114 = vmatprep.subr.mxu0 0.0
    %115 = vmatpush1.msra.mxu0 0.0
    %116 = vmatprep.subr.mxu0 0.0
    %117 = vmatpush1.msra.mxu0 0.0
    %118 = vmatprep.subr.mxu0 0.0
    %119 = vmatpush1.msra.mxu0 0.0
    %120 = vmatprep.subr.mxu0 0.0
    %121 = vmatpush1.msra.mxu0 0.0
    %122 = vmatprep.subr.mxu0 0.0
    %123 = vmatpush1.msra.mxu0 0.0
    %124 = vmatprep.mubr.f32.mxu0 0.0
    %125 = vmatmul.mubr.f32.gmra.mrb[0].mxu0 %v58
    %v126 = vpop.f32.mrb[0].mxu0
    %v127 = vadd.f32 %v54, %v126
    %v128 = vpop.f32.mrb[0].mxu0
    %129 = vdwg.mxu0
    %v130 = vmax.f32 %v127, 0.0
    %vm131 = vcmask 254976
    %132 = vst.msk [vmem:[#allocation2] sm:$0x3] %vm131, %v130
    %s133 = scalar_lea.vmem %s0, 2
    %v134 = vld [vmem:[%s133] sm:$0x3]
    %v135 = vld [vmem:[%s2] sm:$0xff]
    %v136 = vld [vmem:[%s2 + $0x8] sm:$0xff]
    %v137 = vld [vmem:[%s3] sm:$0x1]
    %v139 = vlaneseq
    %v140 = vshrl.u32 %v139, 7
    %v141 = vsub.s32 0, %v140
    %v142 = vrot.slane %v137, %v141
    %v145 = vsel %vm56, %v134, 0
    %147 = vmatprep.subr.mxu0 0.0
    %148 = vmatpush1.msra.mxu0 %v135
    %149 = vmatprep.subr.mxu0 0.0
    %150 = vmatpush1.msra.mxu0 %v136
    %151 = vmatprep.subr.mxu0 0.0
    %152 = vmatpush1.msra.mxu0 0.0
    %153 = vmatprep.subr.mxu0 0.0
    %154 = vmatpush1.msra.mxu0 0.0
    %155 = vmatprep.subr.mxu0 0.0
    %156 = vmatpush1.msra.mxu0 0.0
    %157 = vmatprep.subr.mxu0 0.0
    %158 = vmatpush1.msra.mxu0 0.0
    %159 = vmatprep.subr.mxu0 0.0
    %160 = vmatpush1.msra.mxu0 0.0
    %161 = vmatprep.subr.mxu0 0.0
    %162 = vmatpush1.msra.mxu0 0.0
    %163 = vmatprep.subr.mxu0 0.0
    %164 = vmatpush1.msra.mxu0 0.0
    %165 = vmatprep.subr.mxu0 0.0
    %166 = vmatpush1.msra.mxu0 0.0
    %167 = vmatprep.subr.mxu0 0.0
    %168 = vmatpush1.msra.mxu0 0.0
    %169 = vmatprep.subr.mxu0 0.0
    %170 = vmatpush1.msra.mxu0 0.0
    %171 = vmatprep.subr.mxu0 0.0
    %172 = vmatpush1.msra.mxu0 0.0
    %173 = vmatprep.subr.mxu0 0.0
    %174 = vmatpush1.msra.mxu0 0.0
    %175 = vmatprep.subr.mxu0 0.0
    %176 = vmatpush1.msra.mxu0 0.0
    %177 = vmatprep.subr.mxu0 0.0
    %178 = vmatpush1.msra.mxu0 0.0
    %179 = vmatprep.subr.mxu0 0.0
    %180 = vmatpush1.msra.mxu0 0.0
    %181 = vmatprep.subr.mxu0 0.0
    %182 = vmatpush1.msra.mxu0 0.0
    %183 = vmatprep.subr.mxu0 0.0
    %184 = vmatpush1.msra.mxu0 0.0
    %185 = vmatprep.subr.mxu0 0.0
    %186 = vmatpush1.msra.mxu0 0.0
    %187 = vmatprep.subr.mxu0 0.0
    %188 = vmatpush1.msra.mxu0 0.0
    %189 = vmatprep.subr.mxu0 0.0
    %190 = vmatpush1.msra.mxu0 0.0
    %191 = vmatprep.subr.mxu0 0.0
    %192 = vmatpush1.msra.mxu0 0.0
    %193 = vmatprep.subr.mxu0 0.0
    %194 = vmatpush1.msra.mxu0 0.0
    %195 = vmatprep.subr.mxu0 0.0
    %196 = vmatpush1.msra.mxu0 0.0
    %197 = vmatprep.subr.mxu0 0.0
    %198 = vmatpush1.msra.mxu0 0.0
    %199 = vmatprep.subr.mxu0 0.0
    %200 = vmatpush1.msra.mxu0 0.0
    %201 = vmatprep.subr.mxu0 0.0
    %202 = vmatpush1.msra.mxu0 0.0
    %203 = vmatprep.subr.mxu0 0.0
    %204 = vmatpush1.msra.mxu0 0.0
    %205 = vmatprep.subr.mxu0 0.0
    %206 = vmatpush1.msra.mxu0 0.0
    %207 = vmatprep.subr.mxu0 0.0
    %208 = vmatpush1.msra.mxu0 0.0
    %209 = vmatprep.subr.mxu0 0.0
    %210 = vmatpush1.msra.mxu0 0.0
    %211 = vmatprep.mubr.f32.mxu0 0.0
    %212 = vmatmul.mubr.f32.gmra.mrb[0].mxu0 %v145
    %v213 = vpop.f32.mrb[0].mxu0
    %v214 = vadd.f32 %v142, %v213
    %v215 = vpop.f32.mrb[0].mxu0
    %216 = vdwg.mxu0
    %v217 = vmax.f32 %v214, 0.0
    %v220 = vunpack.c.l.s4 1983009808
    %v221 = vunpack.c.0.s8 %v220
    %v222 = vlaneseq
    %v223 = vshrl.u32 %v222, 7
    %v224 = vsub.s32 %v221, %v223
    %v225 = vrot.slane %v217, %v224
    %226 = vrot.lane.b32.xlu0 %v225, 32
    %v227 = vpop.permute.xlu0 %226
    %vm229 = vcmask 517376
    %230 = vst.msk [vmem:[#allocation2] sm:$0x3] %vm229, %v227
    %s231 = scalar_lea.vmem %s0, 4
    %v232 = vld [vmem:[%s231] sm:$0x3]
    %v233 = vld [vmem:[%s2] sm:$0xff]
    %v234 = vld [vmem:[%s2 + $0x8] sm:$0xff]
    %v235 = vld [vmem:[%s3] sm:$0x1]
    %v237 = vlaneseq
    %v238 = vshrl.u32 %v237, 7
    %v239 = vsub.s32 0, %v238
    %v240 = vrot.slane %v235, %v239
    %v243 = vsel %vm56, %v232, 0
    %245 = vmatprep.subr.mxu0 0.0
    %246 = vmatpush1.msra.mxu0 %v233
    %247 = vmatprep.subr.mxu0 0.0
    %248 = vmatpush1.msra.mxu0 %v234
    %249 = vmatprep.subr.mxu0 0.0
    %250 = vmatpush1.msra.mxu0 0.0
    %251 = vmatprep.subr.mxu0 0.0
    %252 = vmatpush1.msra.mxu0 0.0
    %253 = vmatprep.subr.mxu0 0.0
    %254 = vmatpush1.msra.mxu0 0.0
    %255 = vmatprep.subr.mxu0 0.0
    %256 = vmatpush1.msra.mxu0 0.0
    %257 = vmatprep.subr.mxu0 0.0
    %258 = vmatpush1.msra.mxu0 0.0
    %259 = vmatprep.subr.mxu0 0.0
    %260 = vmatpush1.msra.mxu0 0.0
    %261 = vmatprep.subr.mxu0 0.0
    %262 = vmatpush1.msra.mxu0 0.0
    %263 = vmatprep.subr.mxu0 0.0
    %264 = vmatpush1.msra.mxu0 0.0
    %265 = vmatprep.subr.mxu0 0.0
    %266 = vmatpush1.msra.mxu0 0.0
    %267 = vmatprep.subr.mxu0 0.0
    %268 = vmatpush1.msra.mxu0 0.0
    %269 = vmatprep.subr.mxu0 0.0
    %270 = vmatpush1.msra.mxu0 0.0
    %271 = vmatprep.subr.mxu0 0.0
    %272 = vmatpush1.msra.mxu0 0.0
    %273 = vmatprep.subr.mxu0 0.0
    %274 = vmatpush1.msra.mxu0 0.0
    %275 = vmatprep.subr.mxu0 0.0
    %276 = vmatpush1.msra.mxu0 0.0
    %277 = vmatprep.subr.mxu0 0.0
    %278 = vmatpush1.msra.mxu0 0.0
    %279 = vmatprep.subr.mxu0 0.0
    %280 = vmatpush1.msra.mxu0 0.0
    %281 = vmatprep.subr.mxu0 0.0
    %282 = vmatpush1.msra.mxu0 0.0
    %283 = vmatprep.subr.mxu0 0.0
    %284 = vmatpush1.msra.mxu0 0.0
    %285 = vmatprep.subr.mxu0 0.0
    %286 = vmatpush1.msra.mxu0 0.0
    %287 = vmatprep.subr.mxu0 0.0
    %288 = vmatpush1.msra.mxu0 0.0
    %289 = vmatprep.subr.mxu0 0.0
    %290 = vmatpush1.msra.mxu0 0.0
    %291 = vmatprep.subr.mxu0 0.0
    %292 = vmatpush1.msra.mxu0 0.0
    %293 = vmatprep.subr.mxu0 0.0
    %294 = vmatpush1.msra.mxu0 0.0
    %295 = vmatprep.subr.mxu0 0.0
    %296 = vmatpush1.msra.mxu0 0.0
    %297 = vmatprep.subr.mxu0 0.0
    %298 = vmatpush1.msra.mxu0 0.0
    %299 = vmatprep.subr.mxu0 0.0
    %300 = vmatpush1.msra.mxu0 0.0
    %301 = vmatprep.subr.mxu0 0.0
    %302 = vmatpush1.msra.mxu0 0.0
    %303 = vmatprep.subr.mxu0 0.0
    %304 = vmatpush1.msra.mxu0 0.0
    %305 = vmatprep.subr.mxu0 0.0
    %306 = vmatpush1.msra.mxu0 0.0
    %307 = vmatprep.subr.mxu0 0.0
    %308 = vmatpush1.msra.mxu0 0.0
    %309 = vmatprep.mubr.f32.mxu0 0.0
    %310 = vmatmul.mubr.f32.gmra.mrb[0].mxu0 %v243
    %v311 = vpop.f32.mrb[0].mxu0
    %v312 = vadd.f32 %v240, %v311
    %v313 = vpop.f32.mrb[0].mxu0
    %314 = vdwg.mxu0
    %v315 = vmax.f32 %v312, 0.0
    %v318 = vunpack.c.l.s4 1983009808
    %v319 = vunpack.c.0.s8 %v318
    %v320 = vlaneseq
    %v321 = vshrl.u32 %v320, 7
    %v322 = vsub.s32 %v319, %v321
    %v323 = vrot.slane %v315, %v322
    %324 = vrot.lane.b32.xlu0 %v323, 64
    %v325 = vpop.permute.xlu0 %324
    %vm327 = vcmask 779776
    %328 = vst.msk [vmem:[#allocation2] sm:$0x3] %vm327, %v325
    %s329 = scalar_lea.vmem %s0, 6
    %v330 = vld [vmem:[%s329] sm:$0x3]
    %v331 = vld [vmem:[%s2] sm:$0xff]
    %v332 = vld [vmem:[%s2 + $0x8] sm:$0xff]
    %v333 = vld [vmem:[%s3] sm:$0x1]
    %v335 = vlaneseq
    %v336 = vshrl.u32 %v335, 7
    %v337 = vsub.s32 0, %v336
    %v338 = vrot.slane %v333, %v337
    %v341 = vsel %vm56, %v330, 0
    %343 = vmatprep.subr.mxu0 0.0
    %344 = vmatpush1.msra.mxu0 %v331
    %345 = vmatprep.subr.mxu0 0.0
    %346 = vmatpush1.msra.mxu0 %v332
    %347 = vmatprep.subr.mxu0 0.0
    %348 = vmatpush1.msra.mxu0 0.0
    %349 = vmatprep.subr.mxu0 0.0
    %350 = vmatpush1.msra.mxu0 0.0
    %351 = vmatprep.subr.mxu0 0.0
    %352 = vmatpush1.msra.mxu0 0.0
    %353 = vmatprep.subr.mxu0 0.0
    %354 = vmatpush1.msra.mxu0 0.0
    %355 = vmatprep.subr.mxu0 0.0
    %356 = vmatpush1.msra.mxu0 0.0
    %357 = vmatprep.subr.mxu0 0.0
    %358 = vmatpush1.msra.mxu0 0.0
    %359 = vmatprep.subr.mxu0 0.0
    %360 = vmatpush1.msra.mxu0 0.0
    %361 = vmatprep.subr.mxu0 0.0
    %362 = vmatpush1.msra.mxu0 0.0
    %363 = vmatprep.subr.mxu0 0.0
    %364 = vmatpush1.msra.mxu0 0.0
    %365 = vmatprep.subr.mxu0 0.0
    %366 = vmatpush1.msra.mxu0 0.0
    %367 = vmatprep.subr.mxu0 0.0
    %368 = vmatpush1.msra.mxu0 0.0
    %369 = vmatprep.subr.mxu0 0.0
    %370 = vmatpush1.msra.mxu0 0.0
    %371 = vmatprep.subr.mxu0 0.0
    %372 = vmatpush1.msra.mxu0 0.0
    %373 = vmatprep.subr.mxu0 0.0
    %374 = vmatpush1.msra.mxu0 0.0
    %375 = vmatprep.subr.mxu0 0.0
    %376 = vmatpush1.msra.mxu0 0.0
    %377 = vmatprep.subr.mxu0 0.0
    %378 = vmatpush1.msra.mxu0 0.0
    %379 = vmatprep.subr.mxu0 0.0
    %380 = vmatpush1.msra.mxu0 0.0
    %381 = vmatprep.subr.mxu0 0.0
    %382 = vmatpush1.msra.mxu0 0.0
    %383 = vmatprep.subr.mxu0 0.0
    %384 = vmatpush1.msra.mxu0 0.0
    %385 = vmatprep.subr.mxu0 0.0
    %386 = vmatpush1.msra.mxu0 0.0
    %387 = vmatprep.subr.mxu0 0.0
    %388 = vmatpush1.msra.mxu0 0.0
    %389 = vmatprep.subr.mxu0 0.0
    %390 = vmatpush1.msra.mxu0 0.0
    %391 = vmatprep.subr.mxu0 0.0
    %392 = vmatpush1.msra.mxu0 0.0
    %393 = vmatprep.subr.mxu0 0.0
    %394 = vmatpush1.msra.mxu0 0.0
    %395 = vmatprep.subr.mxu0 0.0
    %396 = vmatpush1.msra.mxu0 0.0
    %397 = vmatprep.subr.mxu0 0.0
    %398 = vmatpush1.msra.mxu0 0.0
    %399 = vmatprep.subr.mxu0 0.0
    %400 = vmatpush1.msra.mxu0 0.0
    %401 = vmatprep.subr.mxu0 0.0
    %402 = vmatpush1.msra.mxu0 0.0
    %403 = vmatprep.subr.mxu0 0.0
    %404 = vmatpush1.msra.mxu0 0.0
    %405 = vmatprep.subr.mxu0 0.0
    %406 = vmatpush1.msra.mxu0 0.0
    %407 = vmatprep.mubr.f32.mxu0 0.0
    %408 = vmatmul.mubr.f32.gmra.mrb[0].mxu0 %v341
    %v409 = vpop.f32.mrb[0].mxu0
    %v410 = vadd.f32 %v338, %v409
    %v411 = vpop.f32.mrb[0].mxu0
    %412 = vdwg.mxu0
    %v413 = vmax.f32 %v410, 0.0
    %v416 = vunpack.c.l.s4 1983009808
    %v417 = vunpack.c.0.s8 %v416
    %v418 = vlaneseq
    %v419 = vshrl.u32 %v418, 7
    %v420 = vsub.s32 %v417, %v419
    %v421 = vrot.slane %v413, %v420
    %422 = vrot.lane.b32.xlu0 %v421, 96
    %v423 = vpop.permute.xlu0 %422
    %vm425 = vcmask 1042176
    %426 = vst.msk [vmem:[#allocation2] sm:$0x3] %vm425, %v423
    %s427 = scalar_lea.vmem %s0, 8
    %v428 = vld [vmem:[%s427] sm:$0x3]
    %v429 = vld [vmem:[%s2] sm:$0xff]
    %v430 = vld [vmem:[%s2 + $0x8] sm:$0xff]
    %v431 = vld [vmem:[%s3] sm:$0x1]
    %v433 = vlaneseq
    %v434 = vshrl.u32 %v433, 7
    %v435 = vsub.s32 0, %v434
    %v436 = vrot.slane %v431, %v435
    %v439 = vsel %vm56, %v428, 0
    %441 = vmatprep.subr.mxu0 0.0
    %442 = vmatpush1.msra.mxu0 %v429
    %443 = vmatprep.subr.mxu0 0.0
    %444 = vmatpush1.msra.mxu0 %v430
    %445 = vmatprep.subr.mxu0 0.0
    %446 = vmatpush1.msra.mxu0 0.0
    %447 = vmatprep.subr.mxu0 0.0
    %448 = vmatpush1.msra.mxu0 0.0
    %449 = vmatprep.subr.mxu0 0.0
    %450 = vmatpush1.msra.mxu0 0.0
    %451 = vmatprep.subr.mxu0 0.0
    %452 = vmatpush1.msra.mxu0 0.0
    %453 = vmatprep.subr.mxu0 0.0
    %454 = vmatpush1.msra.mxu0 0.0
    %455 = vmatprep.subr.mxu0 0.0
    %456 = vmatpush1.msra.mxu0 0.0
    %457 = vmatprep.subr.mxu0 0.0
    %458 = vmatpush1.msra.mxu0 0.0
    %459 = vmatprep.subr.mxu0 0.0
    %460 = vmatpush1.msra.mxu0 0.0
    %461 = vmatprep.subr.mxu0 0.0
    %462 = vmatpush1.msra.mxu0 0.0
    %463 = vmatprep.subr.mxu0 0.0
    %464 = vmatpush1.msra.mxu0 0.0
    %465 = vmatprep.subr.mxu0 0.0
    %466 = vmatpush1.msra.mxu0 0.0
    %467 = vmatprep.subr.mxu0 0.0
    %468 = vmatpush1.msra.mxu0 0.0
    %469 = vmatprep.subr.mxu0 0.0
    %470 = vmatpush1.msra.mxu0 0.0
    %471 = vmatprep.subr.mxu0 0.0
    %472 = vmatpush1.msra.mxu0 0.0
    %473 = vmatprep.subr.mxu0 0.0
    %474 = vmatpush1.msra.mxu0 0.0
    %475 = vmatprep.subr.mxu0 0.0
    %476 = vmatpush1.msra.mxu0 0.0
    %477 = vmatprep.subr.mxu0 0.0
    %478 = vmatpush1.msra.mxu0 0.0
    %479 = vmatprep.subr.mxu0 0.0
    %480 = vmatpush1.msra.mxu0 0.0
    %481 = vmatprep.subr.mxu0 0.0
    %482 = vmatpush1.msra.mxu0 0.0
    %483 = vmatprep.subr.mxu0 0.0
    %484 = vmatpush1.msra.mxu0 0.0
    %485 = vmatprep.subr.mxu0 0.0
    %486 = vmatpush1.msra.mxu0 0.0
    %487 = vmatprep.subr.mxu0 0.0
    %488 = vmatpush1.msra.mxu0 0.0
    %489 = vmatprep.subr.mxu0 0.0
    %490 = vmatpush1.msra.mxu0 0.0
    %491 = vmatprep.subr.mxu0 0.0
    %492 = vmatpush1.msra.mxu0 0.0
    %493 = vmatprep.subr.mxu0 0.0
    %494 = vmatpush1.msra.mxu0 0.0
    %495 = vmatprep.subr.mxu0 0.0
    %496 = vmatpush1.msra.mxu0 0.0
    %497 = vmatprep.subr.mxu0 0.0
    %498 = vmatpush1.msra.mxu0 0.0
    %499 = vmatprep.subr.mxu0 0.0
    %500 = vmatpush1.msra.mxu0 0.0
    %501 = vmatprep.subr.mxu0 0.0
    %502 = vmatpush1.msra.mxu0 0.0
    %503 = vmatprep.subr.mxu0 0.0
    %504 = vmatpush1.msra.mxu0 0.0
    %505 = vmatprep.mubr.f32.mxu0 0.0
    %506 = vmatmul.mubr.f32.gmra.mrb[0].mxu0 %v439
    %v507 = vpop.f32.mrb[0].mxu0
    %v508 = vadd.f32 %v436, %v507
    %v509 = vpop.f32.mrb[0].mxu0
    %510 = vdwg.mxu0
    %v511 = vmax.f32 %v508, 0.0
    %512 = vst.msk [vmem:[#allocation2 + $0x2] sm:$0x3] %vm131, %v511
    %s513 = scalar_lea.vmem %s0, 10
    %v514 = vld [vmem:[%s513] sm:$0x3]
    %v515 = vld [vmem:[%s2] sm:$0xff]
    %v516 = vld [vmem:[%s2 + $0x8] sm:$0xff]
    %v517 = vld [vmem:[%s3] sm:$0x1]
    %v519 = vlaneseq
    %v520 = vshrl.u32 %v519, 7
    %v521 = vsub.s32 0, %v520
    %v522 = vrot.slane %v517, %v521
    %v525 = vsel %vm56, %v514, 0
    %527 = vmatprep.subr.mxu0 0.0
    %528 = vmatpush1.msra.mxu0 %v515
    %529 = vmatprep.subr.mxu0 0.0
    %530 = vmatpush1.msra.mxu0 %v516
    %531 = vmatprep.subr.mxu0 0.0
    %532 = vmatpush1.msra.mxu0 0.0
    %533 = vmatprep.subr.mxu0 0.0
    %534 = vmatpush1.msra.mxu0 0.0
    %535 = vmatprep.subr.mxu0 0.0
    %536 = vmatpush1.msra.mxu0 0.0
    %537 = vmatprep.subr.mxu0 0.0
    %538 = vmatpush1.msra.mxu0 0.0
    %539 = vmatprep.subr.mxu0 0.0
    %540 = vmatpush1.msra.mxu0 0.0
    %541 = vmatprep.subr.mxu0 0.0
    %542 = vmatpush1.msra.mxu0 0.0
    %543 = vmatprep.subr.mxu0 0.0
    %544 = vmatpush1.msra.mxu0 0.0
    %545 = vmatprep.subr.mxu0 0.0
    %546 = vmatpush1.msra.mxu0 0.0
    %547 = vmatprep.subr.mxu0 0.0
    %548 = vmatpush1.msra.mxu0 0.0
    %549 = vmatprep.subr.mxu0 0.0
    %550 = vmatpush1.msra.mxu0 0.0
    %551 = vmatprep.subr.mxu0 0.0
    %552 = vmatpush1.msra.mxu0 0.0
    %553 = vmatprep.subr.mxu0 0.0
    %554 = vmatpush1.msra.mxu0 0.0
    %555 = vmatprep.subr.mxu0 0.0
    %556 = vmatpush1.msra.mxu0 0.0
    %557 = vmatprep.subr.mxu0 0.0
    %558 = vmatpush1.msra.mxu0 0.0
    %559 = vmatprep.subr.mxu0 0.0
    %560 = vmatpush1.msra.mxu0 0.0
    %561 = vmatprep.subr.mxu0 0.0
    %562 = vmatpush1.msra.mxu0 0.0
    %563 = vmatprep.subr.mxu0 0.0
    %564 = vmatpush1.msra.mxu0 0.0
    %565 = vmatprep.subr.mxu0 0.0
    %566 = vmatpush1.msra.mxu0 0.0
    %567 = vmatprep.subr.mxu0 0.0
    %568 = vmatpush1.msra.mxu0 0.0
    %569 = vmatprep.subr.mxu0 0.0
    %570 = vmatpush1.msra.mxu0 0.0
    %571 = vmatprep.subr.mxu0 0.0
    %572 = vmatpush1.msra.mxu0 0.0
    %573 = vmatprep.subr.mxu0 0.0
    %574 = vmatpush1.msra.mxu0 0.0
    %575 = vmatprep.subr.mxu0 0.0
    %576 = vmatpush1.msra.mxu0 0.0
    %577 = vmatprep.subr.mxu0 0.0
    %578 = vmatpush1.msra.mxu0 0.0
    %579 = vmatprep.subr.mxu0 0.0
    %580 = vmatpush1.msra.mxu0 0.0
    %581 = vmatprep.subr.mxu0 0.0
    %582 = vmatpush1.msra.mxu0 0.0
    %583 = vmatprep.subr.mxu0 0.0
    %584 = vmatpush1.msra.mxu0 0.0
    %585 = vmatprep.subr.mxu0 0.0
    %586 = vmatpush1.msra.mxu0 0.0
    %587 = vmatprep.subr.mxu0 0.0
    %588 = vmatpush1.msra.mxu0 0.0
    %589 = vmatprep.subr.mxu0 0.0
    %590 = vmatpush1.msra.mxu0 0.0
    %591 = vmatprep.mubr.f32.mxu0 0.0
    %592 = vmatmul.mubr.f32.gmra.mrb[0].mxu0 %v525
    %v593 = vpop.f32.mrb[0].mxu0
    %v594 = vadd.f32 %v522, %v593
    %v595 = vpop.f32.mrb[0].mxu0
    %596 = vdwg.mxu0
    %v597 = vmax.f32 %v594, 0.0
    %v600 = vunpack.c.l.s4 1983009808
    %v601 = vunpack.c.0.s8 %v600
    %v602 = vlaneseq
    %v603 = vshrl.u32 %v602, 7
    %v604 = vsub.s32 %v601, %v603
    %v605 = vrot.slane %v597, %v604
    %606 = vrot.lane.b32.xlu0 %v605, 32
    %v607 = vpop.permute.xlu0 %606
    %609 = vst.msk [vmem:[#allocation2 + $0x2] sm:$0x3] %vm229, %v607
    %s610 = scalar_lea.vmem %s0, 12
    %v611 = vld [vmem:[%s610] sm:$0x3]
    %v612 = vld [vmem:[%s2] sm:$0xff]
    %v613 = vld [vmem:[%s2 + $0x8] sm:$0xff]
    %v614 = vld [vmem:[%s3] sm:$0x1]
    %v616 = vlaneseq
    %v617 = vshrl.u32 %v616, 7
    %v618 = vsub.s32 0, %v617
    %v619 = vrot.slane %v614, %v618
    %v622 = vsel %vm56, %v611, 0
    %624 = vmatprep.subr.mxu0 0.0
    %625 = vmatpush1.msra.mxu0 %v612
    %626 = vmatprep.subr.mxu0 0.0
    %627 = vmatpush1.msra.mxu0 %v613
    %628 = vmatprep.subr.mxu0 0.0
    %629 = vmatpush1.msra.mxu0 0.0
    %630 = vmatprep.subr.mxu0 0.0
    %631 = vmatpush1.msra.mxu0 0.0
    %632 = vmatprep.subr.mxu0 0.0
    %633 = vmatpush1.msra.mxu0 0.0
    %634 = vmatprep.subr.mxu0 0.0
    %635 = vmatpush1.msra.mxu0 0.0
    %636 = vmatprep.subr.mxu0 0.0
    %637 = vmatpush1.msra.mxu0 0.0
    %638 = vmatprep.subr.mxu0 0.0
    %639 = vmatpush1.msra.mxu0 0.0
    %640 = vmatprep.subr.mxu0 0.0
    %641 = vmatpush1.msra.mxu0 0.0
    %642 = vmatprep.subr.mxu0 0.0
    %643 = vmatpush1.msra.mxu0 0.0
    %644 = vmatprep.subr.mxu0 0.0
    %645 = vmatpush1.msra.mxu0 0.0
    %646 = vmatprep.subr.mxu0 0.0
    %647 = vmatpush1.msra.mxu0 0.0
    %648 = vmatprep.subr.mxu0 0.0
    %649 = vmatpush1.msra.mxu0 0.0
    %650 = vmatprep.subr.mxu0 0.0
    %651 = vmatpush1.msra.mxu0 0.0
    %652 = vmatprep.subr.mxu0 0.0
    %653 = vmatpush1.msra.mxu0 0.0
    %654 = vmatprep.subr.mxu0 0.0
    %655 = vmatpush1.msra.mxu0 0.0
    %656 = vmatprep.subr.mxu0 0.0
    %657 = vmatpush1.msra.mxu0 0.0
    %658 = vmatprep.subr.mxu0 0.0
    %659 = vmatpush1.msra.mxu0 0.0
    %660 = vmatprep.subr.mxu0 0.0
    %661 = vmatpush1.msra.mxu0 0.0
    %662 = vmatprep.subr.mxu0 0.0
    %663 = vmatpush1.msra.mxu0 0.0
    %664 = vmatprep.subr.mxu0 0.0
    %665 = vmatpush1.msra.mxu0 0.0
    %666 = vmatprep.subr.mxu0 0.0
    %667 = vmatpush1.msra.mxu0 0.0
    %668 = vmatprep.subr.mxu0 0.0
    %669 = vmatpush1.msra.mxu0 0.0
    %670 = vmatprep.subr.mxu0 0.0
    %671 = vmatpush1.msra.mxu0 0.0
    %672 = vmatprep.subr.mxu0 0.0
    %673 = vmatpush1.msra.mxu0 0.0
    %674 = vmatprep.subr.mxu0 0.0
    %675 = vmatpush1.msra.mxu0 0.0
    %676 = vmatprep.subr.mxu0 0.0
    %677 = vmatpush1.msra.mxu0 0.0
    %678 = vmatprep.subr.mxu0 0.0
    %679 = vmatpush1.msra.mxu0 0.0
    %680 = vmatprep.subr.mxu0 0.0
    %681 = vmatpush1.msra.mxu0 0.0
    %682 = vmatprep.subr.mxu0 0.0
    %683 = vmatpush1.msra.mxu0 0.0
    %684 = vmatprep.subr.mxu0 0.0
    %685 = vmatpush1.msra.mxu0 0.0
    %686 = vmatprep.subr.mxu0 0.0
    %687 = vmatpush1.msra.mxu0 0.0
    %688 = vmatprep.mubr.f32.mxu0 0.0
    %689 = vmatmul.mubr.f32.gmra.mrb[0].mxu0 %v622
    %v690 = vpop.f32.mrb[0].mxu0
    %v691 = vadd.f32 %v619, %v690
    %v692 = vpop.f32.mrb[0].mxu0
    %693 = vdwg.mxu0
    %v694 = vmax.f32 %v691, 0.0
    %v697 = vunpack.c.l.s4 1983009808
    %v698 = vunpack.c.0.s8 %v697
    %v699 = vlaneseq
    %v700 = vshrl.u32 %v699, 7
    %v701 = vsub.s32 %v698, %v700
    %v702 = vrot.slane %v694, %v701
    %703 = vrot.lane.b32.xlu0 %v702, 64
    %v704 = vpop.permute.xlu0 %703
    %706 = vst.msk [vmem:[#allocation2 + $0x2] sm:$0x3] %vm327, %v704
    %s707 = scalar_lea.vmem %s0, 14
    %v708 = vld [vmem:[%s707] sm:$0x3]
    %v709 = vld [vmem:[%s2] sm:$0xff]
    %v710 = vld [vmem:[%s2 + $0x8] sm:$0xff]
    %v711 = vld [vmem:[%s3] sm:$0x1]
    %v713 = vlaneseq
    %v714 = vshrl.u32 %v713, 7
    %v715 = vsub.s32 0, %v714
    %v716 = vrot.slane %v711, %v715
    %v719 = vsel %vm56, %v708, 0
    %721 = vmatprep.subr.mxu0 0.0
    %722 = vmatpush1.msra.mxu0 %v709
    %723 = vmatprep.subr.mxu0 0.0
    %724 = vmatpush1.msra.mxu0 %v710
    %725 = vmatprep.subr.mxu0 0.0
    %726 = vmatpush1.msra.mxu0 0.0
    %727 = vmatprep.subr.mxu0 0.0
    %728 = vmatpush1.msra.mxu0 0.0
    %729 = vmatprep.subr.mxu0 0.0
    %730 = vmatpush1.msra.mxu0 0.0
    %731 = vmatprep.subr.mxu0 0.0
    %732 = vmatpush1.msra.mxu0 0.0
    %733 = vmatprep.subr.mxu0 0.0
    %734 = vmatpush1.msra.mxu0 0.0
    %735 = vmatprep.subr.mxu0 0.0
    %736 = vmatpush1.msra.mxu0 0.0
    %737 = vmatprep.subr.mxu0 0.0
    %738 = vmatpush1.msra.mxu0 0.0
    %739 = vmatprep.subr.mxu0 0.0
    %740 = vmatpush1.msra.mxu0 0.0
    %741 = vmatprep.subr.mxu0 0.0
    %742 = vmatpush1.msra.mxu0 0.0
    %743 = vmatprep.subr.mxu0 0.0
    %744 = vmatpush1.msra.mxu0 0.0
    %745 = vmatprep.subr.mxu0 0.0
    %746 = vmatpush1.msra.mxu0 0.0
    %747 = vmatprep.subr.mxu0 0.0
    %748 = vmatpush1.msra.mxu0 0.0
    %749 = vmatprep.subr.mxu0 0.0
    %750 = vmatpush1.msra.mxu0 0.0
    %751 = vmatprep.subr.mxu0 0.0
    %752 = vmatpush1.msra.mxu0 0.0
    %753 = vmatprep.subr.mxu0 0.0
    %754 = vmatpush1.msra.mxu0 0.0
    %755 = vmatprep.subr.mxu0 0.0
    %756 = vmatpush1.msra.mxu0 0.0
    %757 = vmatprep.subr.mxu0 0.0
    %758 = vmatpush1.msra.mxu0 0.0
    %759 = vmatprep.subr.mxu0 0.0
    %760 = vmatpush1.msra.mxu0 0.0
    %761 = vmatprep.subr.mxu0 0.0
    %762 = vmatpush1.msra.mxu0 0.0
    %763 = vmatprep.subr.mxu0 0.0
    %764 = vmatpush1.msra.mxu0 0.0
    %765 = vmatprep.subr.mxu0 0.0
    %766 = vmatpush1.msra.mxu0 0.0
    %767 = vmatprep.subr.mxu0 0.0
    %768 = vmatpush1.msra.mxu0 0.0
    %769 = vmatprep.subr.mxu0 0.0
    %770 = vmatpush1.msra.mxu0 0.0
    %771 = vmatprep.subr.mxu0 0.0
    %772 = vmatpush1.msra.mxu0 0.0
    %773 = vmatprep.subr.mxu0 0.0
    %774 = vmatpush1.msra.mxu0 0.0
    %775 = vmatprep.subr.mxu0 0.0
    %776 = vmatpush1.msra.mxu0 0.0
    %777 = vmatprep.subr.mxu0 0.0
    %778 = vmatpush1.msra.mxu0 0.0
    %779 = vmatprep.subr.mxu0 0.0
    %780 = vmatpush1.msra.mxu0 0.0
    %781 = vmatprep.subr.mxu0 0.0
    %782 = vmatpush1.msra.mxu0 0.0
    %783 = vmatprep.subr.mxu0 0.0
    %784 = vmatpush1.msra.mxu0 0.0
    %785 = vmatprep.mubr.f32.mxu0 0.0
    %786 = vmatmul.mubr.f32.gmra.mrb[0].mxu0 %v719
    %v787 = vpop.f32.mrb[0].mxu0
    %v788 = vadd.f32 %v716, %v787
    %v789 = vpop.f32.mrb[0].mxu0
    %790 = vdwg.mxu0
    %v791 = vmax.f32 %v788, 0.0
    %v794 = vunpack.c.l.s4 1983009808
    %v795 = vunpack.c.0.s8 %v794
    %v796 = vlaneseq
    %v797 = vshrl.u32 %v796, 7
    %v798 = vsub.s32 %v795, %v797
    %v799 = vrot.slane %v791, %v798
    %800 = vrot.lane.b32.xlu0 %v799, 96
    %v801 = vpop.permute.xlu0 %800
    %803 = vst.msk [vmem:[#allocation2 + $0x2] sm:$0x3] %vm425, %v801
    %s804 = scalar_lea.vmem %s0, 16
    %v805 = vld [vmem:[%s804] sm:$0x3]
    %v806 = vld [vmem:[%s2] sm:$0xff]
    %v807 = vld [vmem:[%s2 + $0x8] sm:$0xff]
    %v808 = vld [vmem:[%s3] sm:$0x1]
    %v810 = vlaneseq
    %v811 = vshrl.u32 %v810, 7
    %v812 = vsub.s32 0, %v811
    %v813 = vrot.slane %v808, %v812
    %v816 = vsel %vm56, %v805, 0
    %818 = vmatprep.subr.mxu0 0.0
    %819 = vmatpush1.msra.mxu0 %v806
    %820 = vmatprep.subr.mxu0 0.0
    %821 = vmatpush1.msra.mxu0 %v807
    %822 = vmatprep.subr.mxu0 0.0
    %823 = vmatpush1.msra.mxu0 0.0
    %824 = vmatprep.subr.mxu0 0.0
    %825 = vmatpush1.msra.mxu0 0.0
    %826 = vmatprep.subr.mxu0 0.0
    %827 = vmatpush1.msra.mxu0 0.0
    %828 = vmatprep.subr.mxu0 0.0
    %829 = vmatpush1.msra.mxu0 0.0
    %830 = vmatprep.subr.mxu0 0.0
    %831 = vmatpush1.msra.mxu0 0.0
    %832 = vmatprep.subr.mxu0 0.0
    %833 = vmatpush1.msra.mxu0 0.0
    %834 = vmatprep.subr.mxu0 0.0
    %835 = vmatpush1.msra.mxu0 0.0
    %836 = vmatprep.subr.mxu0 0.0
    %837 = vmatpush1.msra.mxu0 0.0
    %838 = vmatprep.subr.mxu0 0.0
    %839 = vmatpush1.msra.mxu0 0.0
    %840 = vmatprep.subr.mxu0 0.0
    %841 = vmatpush1.msra.mxu0 0.0
    %842 = vmatprep.subr.mxu0 0.0
    %843 = vmatpush1.msra.mxu0 0.0
    %844 = vmatprep.subr.mxu0 0.0
    %845 = vmatpush1.msra.mxu0 0.0
    %846 = vmatprep.subr.mxu0 0.0
    %847 = vmatpush1.msra.mxu0 0.0
    %848 = vmatprep.subr.mxu0 0.0
    %849 = vmatpush1.msra.mxu0 0.0
    %850 = vmatprep.subr.mxu0 0.0
    %851 = vmatpush1.msra.mxu0 0.0
    %852 = vmatprep.subr.mxu0 0.0
    %853 = vmatpush1.msra.mxu0 0.0
    %854 = vmatprep.subr.mxu0 0.0
    %855 = vmatpush1.msra.mxu0 0.0
    %856 = vmatprep.subr.mxu0 0.0
    %857 = vmatpush1.msra.mxu0 0.0
    %858 = vmatprep.subr.mxu0 0.0
    %859 = vmatpush1.msra.mxu0 0.0
    %860 = vmatprep.subr.mxu0 0.0
    %861 = vmatpush1.msra.mxu0 0.0
    %862 = vmatprep.subr.mxu0 0.0
    %863 = vmatpush1.msra.mxu0 0.0
    %864 = vmatprep.subr.mxu0 0.0
    %865 = vmatpush1.msra.mxu0 0.0
    %866 = vmatprep.subr.mxu0 0.0
    %867 = vmatpush1.msra.mxu0 0.0
    %868 = vmatprep.subr.mxu0 0.0
    %869 = vmatpush1.msra.mxu0 0.0
    %870 = vmatprep.subr.mxu0 0.0
    %871 = vmatpush1.msra.mxu0 0.0
    %872 = vmatprep.subr.mxu0 0.0
    %873 = vmatpush1.msra.mxu0 0.0
    %874 = vmatprep.subr.mxu0 0.0
    %875 = vmatpush1.msra.mxu0 0.0
    %876 = vmatprep.subr.mxu0 0.0
    %877 = vmatpush1.msra.mxu0 0.0
    %878 = vmatprep.subr.mxu0 0.0
    %879 = vmatpush1.msra.mxu0 0.0
    %880 = vmatprep.subr.mxu0 0.0
    %881 = vmatpush1.msra.mxu0 0.0
    %882 = vmatprep.mubr.f32.mxu0 0.0
    %883 = vmatmul.mubr.f32.gmra.mrb[0].mxu0 %v816
    %v884 = vpop.f32.mrb[0].mxu0
    %v885 = vadd.f32 %v813, %v884
    %v886 = vpop.f32.mrb[0].mxu0
    %887 = vdwg.mxu0
    %v888 = vmax.f32 %v885, 0.0
    %889 = vst.msk [vmem:[#allocation2 + $0x4] sm:$0x3] %vm131, %v888
    %s890 = scalar_lea.vmem %s0, 18
    %v891 = vld [vmem:[%s890] sm:$0x3]
    %v892 = vld [vmem:[%s2] sm:$0xff]
    %v893 = vld [vmem:[%s2 + $0x8] sm:$0xff]
    %v894 = vld [vmem:[%s3] sm:$0x1]
    %v896 = vlaneseq
    %v897 = vshrl.u32 %v896, 7
    %v898 = vsub.s32 0, %v897
    %v899 = vrot.slane %v894, %v898
    %v902 = vsel %vm56, %v891, 0
    %904 = vmatprep.subr.mxu0 0.0
    %905 = vmatpush1.msra.mxu0 %v892
    %906 = vmatprep.subr.mxu0 0.0
    %907 = vmatpush1.msra.mxu0 %v893
    %908 = vmatprep.subr.mxu0 0.0
    %909 = vmatpush1.msra.mxu0 0.0
    %910 = vmatprep.subr.mxu0 0.0
    %911 = vmatpush1.msra.mxu0 0.0
    %912 = vmatprep.subr.mxu0 0.0
    %913 = vmatpush1.msra.mxu0 0.0
    %914 = vmatprep.subr.mxu0 0.0
    %915 = vmatpush1.msra.mxu0 0.0
    %916 = vmatprep.subr.mxu0 0.0
    %917 = vmatpush1.msra.mxu0 0.0
    %918 = vmatprep.subr.mxu0 0.0
    %919 = vmatpush1.msra.mxu0 0.0
    %920 = vmatprep.subr.mxu0 0.0
    %921 = vmatpush1.msra.mxu0 0.0
    %922 = vmatprep.subr.mxu0 0.0
    %923 = vmatpush1.msra.mxu0 0.0
    %924 = vmatprep.subr.mxu0 0.0
    %925 = vmatpush1.msra.mxu0 0.0
    %926 = vmatprep.subr.mxu0 0.0
    %927 = vmatpush1.msra.mxu0 0.0
    %928 = vmatprep.subr.mxu0 0.0
    %929 = vmatpush1.msra.mxu0 0.0
    %930 = vmatprep.subr.mxu0 0.0
    %931 = vmatpush1.msra.mxu0 0.0
    %932 = vmatprep.subr.mxu0 0.0
    %933 = vmatpush1.msra.mxu0 0.0
    %934 = vmatprep.subr.mxu0 0.0
    %935 = vmatpush1.msra.mxu0 0.0
    %936 = vmatprep.subr.mxu0 0.0
    %937 = vmatpush1.msra.mxu0 0.0
    %938 = vmatprep.subr.mxu0 0.0
    %939 = vmatpush1.msra.mxu0 0.0
    %940 = vmatprep.subr.mxu0 0.0
    %941 = vmatpush1.msra.mxu0 0.0
    %942 = vmatprep.subr.mxu0 0.0
    %943 = vmatpush1.msra.mxu0 0.0
    %944 = vmatprep.subr.mxu0 0.0
    %945 = vmatpush1.msra.mxu0 0.0
    %946 = vmatprep.subr.mxu0 0.0
    %947 = vmatpush1.msra.mxu0 0.0
    %948 = vmatprep.subr.mxu0 0.0
    %949 = vmatpush1.msra.mxu0 0.0
    %950 = vmatprep.subr.mxu0 0.0
    %951 = vmatpush1.msra.mxu0 0.0
    %952 = vmatprep.subr.mxu0 0.0
    %953 = vmatpush1.msra.mxu0 0.0
    %954 = vmatprep.subr.mxu0 0.0
    %955 = vmatpush1.msra.mxu0 0.0
    %956 = vmatprep.subr.mxu0 0.0
    %957 = vmatpush1.msra.mxu0 0.0
    %958 = vmatprep.subr.mxu0 0.0
    %959 = vmatpush1.msra.mxu0 0.0
    %960 = vmatprep.subr.mxu0 0.0
    %961 = vmatpush1.msra.mxu0 0.0
    %962 = vmatprep.subr.mxu0 0.0
    %963 = vmatpush1.msra.mxu0 0.0
    %964 = vmatprep.subr.mxu0 0.0
    %965 = vmatpush1.msra.mxu0 0.0
    %966 = vmatprep.subr.mxu0 0.0
    %967 = vmatpush1.msra.mxu0 0.0
    %968 = vmatprep.mubr.f32.mxu0 0.0
    %969 = vmatmul.mubr.f32.gmra.mrb[0].mxu0 %v902
    %v970 = vpop.f32.mrb[0].mxu0
    %v971 = vadd.f32 %v899, %v970
    %v972 = vpop.f32.mrb[0].mxu0
    %973 = vdwg.mxu0
    %v974 = vmax.f32 %v971, 0.0
    %v977 = vunpack.c.l.s4 1983009808
    %v978 = vunpack.c.0.s8 %v977
    %v979 = vlaneseq
    %v980 = vshrl.u32 %v979, 7
    %v981 = vsub.s32 %v978, %v980
    %v982 = vrot.slane %v974, %v981
    %983 = vrot.lane.b32.xlu0 %v982, 32
    %v984 = vpop.permute.xlu0 %983
    %986 = vst.msk [vmem:[#allocation2 + $0x4] sm:$0x3] %vm229, %v984
    %s987 = scalar_lea.vmem %s0, 20
    %v988 = vld [vmem:[%s987] sm:$0x3]
    %v989 = vld [vmem:[%s2] sm:$0xff]
    %v990 = vld [vmem:[%s2 + $0x8] sm:$0xff]
    %v991 = vld [vmem:[%s3] sm:$0x1]
    %v993 = vlaneseq
    %v994 = vshrl.u32 %v993, 7
    %v995 = vsub.s32 0, %v994
    %v996 = vrot.slane %v991, %v995
    %v999 = vsel %vm56, %v988, 0
    %1001 = vmatprep.subr.mxu0 0.0
    %1002 = vmatpush1.msra.mxu0 %v989
    %1003 = vmatprep.subr.mxu0 0.0
    %1004 = vmatpush1.msra.mxu0 %v990
    %1005 = vmatprep.subr.mxu0 0.0
    %1006 = vmatpush1.msra.mxu0 0.0
    %1007 = vmatprep.subr.mxu0 0.0
    %1008 = vmatpush1.msra.mxu0 0.0
    %1009 = vmatprep.subr.mxu0 0.0
    %1010 = vmatpush1.msra.mxu0 0.0
    %1011 = vmatprep.subr.mxu0 0.0
    %1012 = vmatpush1.msra.mxu0 0.0
    %1013 = vmatprep.subr.mxu0 0.0
    %1014 = vmatpush1.msra.mxu0 0.0
    %1015 = vmatprep.subr.mxu0 0.0
    %1016 = vmatpush1.msra.mxu0 0.0
    %1017 = vmatprep.subr.mxu0 0.0
    %1018 = vmatpush1.msra.mxu0 0.0
    %1019 = vmatprep.subr.mxu0 0.0
    %1020 = vmatpush1.msra.mxu0 0.0
    %1021 = vmatprep.subr.mxu0 0.0
    %1022 = vmatpush1.msra.mxu0 0.0
    %1023 = vmatprep.subr.mxu0 0.0
    %1024 = vmatpush1.msra.mxu0 0.0
    %1025 = vmatprep.subr.mxu0 0.0
    %1026 = vmatpush1.msra.mxu0 0.0
    %1027 = vmatprep.subr.mxu0 0.0
    %1028 = vmatpush1.msra.mxu0 0.0
    %1029 = vmatprep.subr.mxu0 0.0
    %1030 = vmatpush1.msra.mxu0 0.0
    %1031 = vmatprep.subr.mxu0 0.0
    %1032 = vmatpush1.msra.mxu0 0.0
    %1033 = vmatprep.subr.mxu0 0.0
    %1034 = vmatpush1.msra.mxu0 0.0
    %1035 = vmatprep.subr.mxu0 0.0
    %1036 = vmatpush1.msra.mxu0 0.0
    %1037 = vmatprep.subr.mxu0 0.0
    %1038 = vmatpush1.msra.mxu0 0.0
    %1039 = vmatprep.subr.mxu0 0.0
    %1040 = vmatpush1.msra.mxu0 0.0
    %1041 = vmatprep.subr.mxu0 0.0
    %1042 = vmatpush1.msra.mxu0 0.0
    %1043 = vmatprep.subr.mxu0 0.0
    %1044 = vmatpush1.msra.mxu0 0.0
    %1045 = vmatprep.subr.mxu0 0.0
    %1046 = vmatpush1.msra.mxu0 0.0
    %1047 = vmatprep.subr.mxu0 0.0
    %1048 = vmatpush1.msra.mxu0 0.0
    %1049 = vmatprep.subr.mxu0 0.0
    %1050 = vmatpush1.msra.mxu0 0.0
    %1051 = vmatprep.subr.mxu0 0.0
    %1052 = vmatpush1.msra.mxu0 0.0
    %1053 = vmatprep.subr.mxu0 0.0
    %1054 = vmatpush1.msra.mxu0 0.0
    %1055 = vmatprep.subr.mxu0 0.0
    %1056 = vmatpush1.msra.mxu0 0.0
    %1057 = vmatprep.subr.mxu0 0.0
    %1058 = vmatpush1.msra.mxu0 0.0
    %1059 = vmatprep.subr.mxu0 0.0
    %1060 = vmatpush1.msra.mxu0 0.0
    %1061 = vmatprep.subr.mxu0 0.0
    %1062 = vmatpush1.msra.mxu0 0.0
    %1063 = vmatprep.subr.mxu0 0.0
    %1064 = vmatpush1.msra.mxu0 0.0
    %1065 = vmatprep.mubr.f32.mxu0 0.0
    %1066 = vmatmul.mubr.f32.gmra.mrb[0].mxu0 %v999
    %v1067 = vpop.f32.mrb[0].mxu0
    %v1068 = vadd.f32 %v996, %v1067
    %v1069 = vpop.f32.mrb[0].mxu0
    %1070 = vdwg.mxu0
    %v1071 = vmax.f32 %v1068, 0.0
    %v1074 = vunpack.c.l.s4 1983009808
    %v1075 = vunpack.c.0.s8 %v1074
    %v1076 = vlaneseq
    %v1077 = vshrl.u32 %v1076, 7
    %v1078 = vsub.s32 %v1075, %v1077
    %v1079 = vrot.slane %v1071, %v1078
    %1080 = vrot.lane.b32.xlu0 %v1079, 64
    %v1081 = vpop.permute.xlu0 %1080
    %1083 = vst.msk [vmem:[#allocation2 + $0x4] sm:$0x3] %vm327, %v1081
    %s1084 = scalar_lea.vmem %s0, 22
    %v1085 = vld [vmem:[%s1084] sm:$0x3]
    %v1086 = vld [vmem:[%s2] sm:$0xff]
    %v1087 = vld [vmem:[%s2 + $0x8] sm:$0xff]
    %v1088 = vld [vmem:[%s3] sm:$0x1]
    %v1090 = vlaneseq
    %v1091 = vshrl.u32 %v1090, 7
    %v1092 = vsub.s32 0, %v1091
    %v1093 = vrot.slane %v1088, %v1092
    %v1096 = vsel %vm56, %v1085, 0
    %1098 = vmatprep.subr.mxu0 0.0
    %1099 = vmatpush1.msra.mxu0 %v1086
    %1100 = vmatprep.subr.mxu0 0.0
    %1101 = vmatpush1.msra.mxu0 %v1087
    %1102 = vmatprep.subr.mxu0 0.0
    %1103 = vmatpush1.msra.mxu0 0.0
    %1104 = vmatprep.subr.mxu0 0.0
    %1105 = vmatpush1.msra.mxu0 0.0
    %1106 = vmatprep.subr.mxu0 0.0
    %1107 = vmatpush1.msra.mxu0 0.0
    %1108 = vmatprep.subr.mxu0 0.0
    %1109 = vmatpush1.msra.mxu0 0.0
    %1110 = vmatprep.subr.mxu0 0.0
    %1111 = vmatpush1.msra.mxu0 0.0
    %1112 = vmatprep.subr.mxu0 0.0
    %1113 = vmatpush1.msra.mxu0 0.0
    %1114 = vmatprep.subr.mxu0 0.0
    %1115 = vmatpush1.msra.mxu0 0.0
    %1116 = vmatprep.subr.mxu0 0.0
    %1117 = vmatpush1.msra.mxu0 0.0
    %1118 = vmatprep.subr.mxu0 0.0
    %1119 = vmatpush1.msra.mxu0 0.0
    %1120 = vmatprep.subr.mxu0 0.0
    %1121 = vmatpush1.msra.mxu0 0.0
    %1122 = vmatprep.subr.mxu0 0.0
    %1123 = vmatpush1.msra.mxu0 0.0
    %1124 = vmatprep.subr.mxu0 0.0
    %1125 = vmatpush1.msra.mxu0 0.0
    %1126 = vmatprep.subr.mxu0 0.0
    %1127 = vmatpush1.msra.mxu0 0.0
    %1128 = vmatprep.subr.mxu0 0.0
    %1129 = vmatpush1.msra.mxu0 0.0
    %1130 = vmatprep.subr.mxu0 0.0
    %1131 = vmatpush1.msra.mxu0 0.0
    %1132 = vmatprep.subr.mxu0 0.0
    %1133 = vmatpush1.msra.mxu0 0.0
    %1134 = vmatprep.subr.mxu0 0.0
    %1135 = vmatpush1.msra.mxu0 0.0
    %1136 = vmatprep.subr.mxu0 0.0
    %1137 = vmatpush1.msra.mxu0 0.0
    %1138 = vmatprep.subr.mxu0 0.0
    %1139 = vmatpush1.msra.mxu0 0.0
    %1140 = vmatprep.subr.mxu0 0.0
    %1141 = vmatpush1.msra.mxu0 0.0
    %1142 = vmatprep.subr.mxu0 0.0
    %1143 = vmatpush1.msra.mxu0 0.0
    %1144 = vmatprep.subr.mxu0 0.0
    %1145 = vmatpush1.msra.mxu0 0.0
    %1146 = vmatprep.subr.mxu0 0.0
    %1147 = vmatpush1.msra.mxu0 0.0
    %1148 = vmatprep.subr.mxu0 0.0
    %1149 = vmatpush1.msra.mxu0 0.0
    %1150 = vmatprep.subr.mxu0 0.0
    %1151 = vmatpush1.msra.mxu0 0.0
    %1152 = vmatprep.subr.mxu0 0.0
    %1153 = vmatpush1.msra.mxu0 0.0
    %1154 = vmatprep.subr.mxu0 0.0
    %1155 = vmatpush1.msra.mxu0 0.0
    %1156 = vmatprep.subr.mxu0 0.0
    %1157 = vmatpush1.msra.mxu0 0.0
    %1158 = vmatprep.subr.mxu0 0.0
    %1159 = vmatpush1.msra.mxu0 0.0
    %1160 = vmatprep.subr.mxu0 0.0
    %1161 = vmatpush1.msra.mxu0 0.0
    %1162 = vmatprep.mubr.f32.mxu0 0.0
    %1163 = vmatmul.mubr.f32.gmra.mrb[0].mxu0 %v1096
    %v1164 = vpop.f32.mrb[0].mxu0
    %v1165 = vadd.f32 %v1093, %v1164
    %v1166 = vpop.f32.mrb[0].mxu0
    %1167 = vdwg.mxu0
    %v1168 = vmax.f32 %v1165, 0.0
    %v1171 = vunpack.c.l.s4 1983009808
    %v1172 = vunpack.c.0.s8 %v1171
    %v1173 = vlaneseq
    %v1174 = vshrl.u32 %v1173, 7
    %v1175 = vsub.s32 %v1172, %v1174
    %v1176 = vrot.slane %v1168, %v1175
    %1177 = vrot.lane.b32.xlu0 %v1176, 96
    %v1178 = vpop.permute.xlu0 %1177
    %1180 = vst.msk [vmem:[#allocation2 + $0x4] sm:$0x3] %vm425, %v1178
    %s1181 = scalar_lea.vmem %s0, 24
    %v1182 = vld [vmem:[%s1181] sm:$0x3]
    %v1183 = vld [vmem:[%s2] sm:$0xff]
    %v1184 = vld [vmem:[%s2 + $0x8] sm:$0xff]
    %v1185 = vld [vmem:[%s3] sm:$0x1]
    %v1187 = vlaneseq
    %v1188 = vshrl.u32 %v1187, 7
    %v1189 = vsub.s32 0, %v1188
    %v1190 = vrot.slane %v1185, %v1189
    %v1193 = vsel %vm56, %v1182, 0
    %1195 = vmatprep.subr.mxu0 0.0
    %1196 = vmatpush1.msra.mxu0 %v1183
    %1197 = vmatprep.subr.mxu0 0.0
    %1198 = vmatpush1.msra.mxu0 %v1184
    %1199 = vmatprep.subr.mxu0 0.0
    %1200 = vmatpush1.msra.mxu0 0.0
    %1201 = vmatprep.subr.mxu0 0.0
    %1202 = vmatpush1.msra.mxu0 0.0
    %1203 = vmatprep.subr.mxu0 0.0
    %1204 = vmatpush1.msra.mxu0 0.0
    %1205 = vmatprep.subr.mxu0 0.0
    %1206 = vmatpush1.msra.mxu0 0.0
    %1207 = vmatprep.subr.mxu0 0.0
    %1208 = vmatpush1.msra.mxu0 0.0
    %1209 = vmatprep.subr.mxu0 0.0
    %1210 = vmatpush1.msra.mxu0 0.0
    %1211 = vmatprep.subr.mxu0 0.0
    %1212 = vmatpush1.msra.mxu0 0.0
    %1213 = vmatprep.subr.mxu0 0.0
    %1214 = vmatpush1.msra.mxu0 0.0
    %1215 = vmatprep.subr.mxu0 0.0
    %1216 = vmatpush1.msra.mxu0 0.0
    %1217 = vmatprep.subr.mxu0 0.0
    %1218 = vmatpush1.msra.mxu0 0.0
    %1219 = vmatprep.subr.mxu0 0.0
    %1220 = vmatpush1.msra.mxu0 0.0
    %1221 = vmatprep.subr.mxu0 0.0
    %1222 = vmatpush1.msra.mxu0 0.0
    %1223 = vmatprep.subr.mxu0 0.0
    %1224 = vmatpush1.msra.mxu0 0.0
    %1225 = vmatprep.subr.mxu0 0.0
    %1226 = vmatpush1.msra.mxu0 0.0
    %1227 = vmatprep.subr.mxu0 0.0
    %1228 = vmatpush1.msra.mxu0 0.0
    %1229 = vmatprep.subr.mxu0 0.0
    %1230 = vmatpush1.msra.mxu0 0.0
    %1231 = vmatprep.subr.mxu0 0.0
    %1232 = vmatpush1.msra.mxu0 0.0
    %1233 = vmatprep.subr.mxu0 0.0
    %1234 = vmatpush1.msra.mxu0 0.0
    %1235 = vmatprep.subr.mxu0 0.0
    %1236 = vmatpush1.msra.mxu0 0.0
    %1237 = vmatprep.subr.mxu0 0.0
    %1238 = vmatpush1.msra.mxu0 0.0
    %1239 = vmatprep.subr.mxu0 0.0
    %1240 = vmatpush1.msra.mxu0 0.0
    %1241 = vmatprep.subr.mxu0 0.0
    %1242 = vmatpush1.msra.mxu0 0.0
    %1243 = vmatprep.subr.mxu0 0.0
    %1244 = vmatpush1.msra.mxu0 0.0
    %1245 = vmatprep.subr.mxu0 0.0
    %1246 = vmatpush1.msra.mxu0 0.0
    %1247 = vmatprep.subr.mxu0 0.0
    %1248 = vmatpush1.msra.mxu0 0.0
    %1249 = vmatprep.subr.mxu0 0.0
    %1250 = vmatpush1.msra.mxu0 0.0
    %1251 = vmatprep.subr.mxu0 0.0
    %1252 = vmatpush1.msra.mxu0 0.0
    %1253 = vmatprep.subr.mxu0 0.0
    %1254 = vmatpush1.msra.mxu0 0.0
    %1255 = vmatprep.subr.mxu0 0.0
    %1256 = vmatpush1.msra.mxu0 0.0
    %1257 = vmatprep.subr.mxu0 0.0
    %1258 = vmatpush1.msra.mxu0 0.0
    %1259 = vmatprep.mubr.f32.mxu0 0.0
    %1260 = vmatmul.mubr.f32.gmra.mrb[0].mxu0 %v1193
    %v1261 = vpop.f32.mrb[0].mxu0
    %v1262 = vadd.f32 %v1190, %v1261
    %v1263 = vpop.f32.mrb[0].mxu0
    %1264 = vdwg.mxu0
    %v1265 = vmax.f32 %v1262, 0.0
    %1266 = vst.msk [vmem:[#allocation2 + $0x6] sm:$0x3] %vm131, %v1265
    %s1267 = scalar_lea.vmem %s0, 26
    %v1268 = vld [vmem:[%s1267] sm:$0x3]
    %v1269 = vld [vmem:[%s2] sm:$0xff]
    %v1270 = vld [vmem:[%s2 + $0x8] sm:$0xff]
    %v1271 = vld [vmem:[%s3] sm:$0x1]
    %v1273 = vlaneseq
    %v1274 = vshrl.u32 %v1273, 7
    %v1275 = vsub.s32 0, %v1274
    %v1276 = vrot.slane %v1271, %v1275
    %v1279 = vsel %vm56, %v1268, 0
    %1281 = vmatprep.subr.mxu0 0.0
    %1282 = vmatpush1.msra.mxu0 %v1269
    %1283 = vmatprep.subr.mxu0 0.0
    %1284 = vmatpush1.msra.mxu0 %v1270
    %1285 = vmatprep.subr.mxu0 0.0
    %1286 = vmatpush1.msra.mxu0 0.0
    %1287 = vmatprep.subr.mxu0 0.0
    %1288 = vmatpush1.msra.mxu0 0.0
    %1289 = vmatprep.subr.mxu0 0.0
    %1290 = vmatpush1.msra.mxu0 0.0
    %1291 = vmatprep.subr.mxu0 0.0
    %1292 = vmatpush1.msra.mxu0 0.0
    %1293 = vmatprep.subr.mxu0 0.0
    %1294 = vmatpush1.msra.mxu0 0.0
    %1295 = vmatprep.subr.mxu0 0.0
    %1296 = vmatpush1.msra.mxu0 0.0
    %1297 = vmatprep.subr.mxu0 0.0
    %1298 = vmatpush1.msra.mxu0 0.0
    %1299 = vmatprep.subr.mxu0 0.0
    %1300 = vmatpush1.msra.mxu0 0.0
    %1301 = vmatprep.subr.mxu0 0.0
    %1302 = vmatpush1.msra.mxu0 0.0
    %1303 = vmatprep.subr.mxu0 0.0
    %1304 = vmatpush1.msra.mxu0 0.0
    %1305 = vmatprep.subr.mxu0 0.0
    %1306 = vmatpush1.msra.mxu0 0.0
    %1307 = vmatprep.subr.mxu0 0.0
    %1308 = vmatpush1.msra.mxu0 0.0
    %1309 = vmatprep.subr.mxu0 0.0
    %1310 = vmatpush1.msra.mxu0 0.0
    %1311 = vmatprep.subr.mxu0 0.0
    %1312 = vmatpush1.msra.mxu0 0.0
    %1313 = vmatprep.subr.mxu0 0.0
    %1314 = vmatpush1.msra.mxu0 0.0
    %1315 = vmatprep.subr.mxu0 0.0
    %1316 = vmatpush1.msra.mxu0 0.0
    %1317 = vmatprep.subr.mxu0 0.0
    %1318 = vmatpush1.msra.mxu0 0.0
    %1319 = vmatprep.subr.mxu0 0.0
    %1320 = vmatpush1.msra.mxu0 0.0
    %1321 = vmatprep.subr.mxu0 0.0
    %1322 = vmatpush1.msra.mxu0 0.0
    %1323 = vmatprep.subr.mxu0 0.0
    %1324 = vmatpush1.msra.mxu0 0.0
    %1325 = vmatprep.subr.mxu0 0.0
    %1326 = vmatpush1.msra.mxu0 0.0
    %1327 = vmatprep.subr.mxu0 0.0
    %1328 = vmatpush1.msra.mxu0 0.0
    %1329 = vmatprep.subr.mxu0 0.0
    %1330 = vmatpush1.msra.mxu0 0.0
    %1331 = vmatprep.subr.mxu0 0.0
    %1332 = vmatpush1.msra.mxu0 0.0
    %1333 = vmatprep.subr.mxu0 0.0
    %1334 = vmatpush1.msra.mxu0 0.0
    %1335 = vmatprep.subr.mxu0 0.0
    %1336 = vmatpush1.msra.mxu0 0.0
    %1337 = vmatprep.subr.mxu0 0.0
    %1338 = vmatpush1.msra.mxu0 0.0
    %1339 = vmatprep.subr.mxu0 0.0
    %1340 = vmatpush1.msra.mxu0 0.0
    %1341 = vmatprep.subr.mxu0 0.0
    %1342 = vmatpush1.msra.mxu0 0.0
    %1343 = vmatprep.subr.mxu0 0.0
    %1344 = vmatpush1.msra.mxu0 0.0
    %1345 = vmatprep.mubr.f32.mxu0 0.0
    %1346 = vmatmul.mubr.f32.gmra.mrb[0].mxu0 %v1279
    %v1347 = vpop.f32.mrb[0].mxu0
    %v1348 = vadd.f32 %v1276, %v1347
    %v1349 = vpop.f32.mrb[0].mxu0
    %1350 = vdwg.mxu0
    %v1351 = vmax.f32 %v1348, 0.0
    %v1354 = vunpack.c.l.s4 1983009808
    %v1355 = vunpack.c.0.s8 %v1354
    %v1356 = vlaneseq
    %v1357 = vshrl.u32 %v1356, 7
    %v1358 = vsub.s32 %v1355, %v1357
    %v1359 = vrot.slane %v1351, %v1358
    %1360 = vrot.lane.b32.xlu0 %v1359, 32
    %v1361 = vpop.permute.xlu0 %1360
    %1363 = vst.msk [vmem:[#allocation2 + $0x6] sm:$0x3] %vm229, %v1361
    %s1364 = scalar_lea.vmem %s0, 28
    %v1365 = vld [vmem:[%s1364] sm:$0x3]
    %v1366 = vld [vmem:[%s2] sm:$0xff]
    %v1367 = vld [vmem:[%s2 + $0x8] sm:$0xff]
    %v1368 = vld [vmem:[%s3] sm:$0x1]
    %v1370 = vlaneseq
    %v1371 = vshrl.u32 %v1370, 7
    %v1372 = vsub.s32 0, %v1371
    %v1373 = vrot.slane %v1368, %v1372
    %v1376 = vsel %vm56, %v1365, 0
    %1378 = vmatprep.subr.mxu0 0.0
    %1379 = vmatpush1.msra.mxu0 %v1366
    %1380 = vmatprep.subr.mxu0 0.0
    %1381 = vmatpush1.msra.mxu0 %v1367
    %1382 = vmatprep.subr.mxu0 0.0
    %1383 = vmatpush1.msra.mxu0 0.0
    %1384 = vmatprep.subr.mxu0 0.0
    %1385 = vmatpush1.msra.mxu0 0.0
    %1386 = vmatprep.subr.mxu0 0.0
    %1387 = vmatpush1.msra.mxu0 0.0
    %1388 = vmatprep.subr.mxu0 0.0
    %1389 = vmatpush1.msra.mxu0 0.0
    %1390 = vmatprep.subr.mxu0 0.0
    %1391 = vmatpush1.msra.mxu0 0.0
    %1392 = vmatprep.subr.mxu0 0.0
    %1393 = vmatpush1.msra.mxu0 0.0
    %1394 = vmatprep.subr.mxu0 0.0
    %1395 = vmatpush1.msra.mxu0 0.0
    %1396 = vmatprep.subr.mxu0 0.0
    %1397 = vmatpush1.msra.mxu0 0.0
    %1398 = vmatprep.subr.mxu0 0.0
    %1399 = vmatpush1.msra.mxu0 0.0
    %1400 = vmatprep.subr.mxu0 0.0
    %1401 = vmatpush1.msra.mxu0 0.0
    %1402 = vmatprep.subr.mxu0 0.0
    %1403 = vmatpush1.msra.mxu0 0.0
    %1404 = vmatprep.subr.mxu0 0.0
    %1405 = vmatpush1.msra.mxu0 0.0
    %1406 = vmatprep.subr.mxu0 0.0
    %1407 = vmatpush1.msra.mxu0 0.0
    %1408 = vmatprep.subr.mxu0 0.0
    %1409 = vmatpush1.msra.mxu0 0.0
    %1410 = vmatprep.subr.mxu0 0.0
    %1411 = vmatpush1.msra.mxu0 0.0
    %1412 = vmatprep.subr.mxu0 0.0
    %1413 = vmatpush1.msra.mxu0 0.0
    %1414 = vmatprep.subr.mxu0 0.0
    %1415 = vmatpush1.msra.mxu0 0.0
    %1416 = vmatprep.subr.mxu0 0.0
    %1417 = vmatpush1.msra.mxu0 0.0
    %1418 = vmatprep.subr.mxu0 0.0
    %1419 = vmatpush1.msra.mxu0 0.0
    %1420 = vmatprep.subr.mxu0 0.0
    %1421 = vmatpush1.msra.mxu0 0.0
    %1422 = vmatprep.subr.mxu0 0.0
    %1423 = vmatpush1.msra.mxu0 0.0
    %1424 = vmatprep.subr.mxu0 0.0
    %1425 = vmatpush1.msra.mxu0 0.0
    %1426 = vmatprep.subr.mxu0 0.0
    %1427 = vmatpush1.msra.mxu0 0.0
    %1428 = vmatprep.subr.mxu0 0.0
    %1429 = vmatpush1.msra.mxu0 0.0
    %1430 = vmatprep.subr.mxu0 0.0
    %1431 = vmatpush1.msra.mxu0 0.0
    %1432 = vmatprep.subr.mxu0 0.0
    %1433 = vmatpush1.msra.mxu0 0.0
    %1434 = vmatprep.subr.mxu0 0.0
    %1435 = vmatpush1.msra.mxu0 0.0
    %1436 = vmatprep.subr.mxu0 0.0
    %1437 = vmatpush1.msra.mxu0 0.0
    %1438 = vmatprep.subr.mxu0 0.0
    %1439 = vmatpush1.msra.mxu0 0.0
    %1440 = vmatprep.subr.mxu0 0.0
    %1441 = vmatpush1.msra.mxu0 0.0
    %1442 = vmatprep.mubr.f32.mxu0 0.0
    %1443 = vmatmul.mubr.f32.gmra.mrb[0].mxu0 %v1376
    %v1444 = vpop.f32.mrb[0].mxu0
    %v1445 = vadd.f32 %v1373, %v1444
    %v1446 = vpop.f32.mrb[0].mxu0
    %1447 = vdwg.mxu0
    %v1448 = vmax.f32 %v1445, 0.0
    %v1451 = vunpack.c.l.s4 1983009808
    %v1452 = vunpack.c.0.s8 %v1451
    %v1453 = vlaneseq
    %v1454 = vshrl.u32 %v1453, 7
    %v1455 = vsub.s32 %v1452, %v1454
    %v1456 = vrot.slane %v1448, %v1455
    %1457 = vrot.lane.b32.xlu0 %v1456, 64
    %v1458 = vpop.permute.xlu0 %1457
    %1460 = vst.msk [vmem:[#allocation2 + $0x6] sm:$0x3] %vm327, %v1458
    %s1461 = scalar_lea.vmem %s0, 30
    %v1462 = vld [vmem:[%s1461] sm:$0x3]
    %v1463 = vld [vmem:[%s2] sm:$0xff]
    %v1464 = vld [vmem:[%s2 + $0x8] sm:$0xff]
    %v1465 = vld [vmem:[%s3] sm:$0x1]
    %v1467 = vlaneseq
    %v1468 = vshrl.u32 %v1467, 7
    %v1469 = vsub.s32 0, %v1468
    %v1470 = vrot.slane %v1465, %v1469
    %v1473 = vsel %vm56, %v1462, 0
    %1475 = vmatprep.subr.mxu0 0.0
    %1476 = vmatpush1.msra.mxu0 %v1463
    %1477 = vmatprep.subr.mxu0 0.0
    %1478 = vmatpush1.msra.mxu0 %v1464
    %1479 = vmatprep.subr.mxu0 0.0
    %1480 = vmatpush1.msra.mxu0 0.0
    %1481 = vmatprep.subr.mxu0 0.0
    %1482 = vmatpush1.msra.mxu0 0.0
    %1483 = vmatprep.subr.mxu0 0.0
    %1484 = vmatpush1.msra.mxu0 0.0
    %1485 = vmatprep.subr.mxu0 0.0
    %1486 = vmatpush1.msra.mxu0 0.0
    %1487 = vmatprep.subr.mxu0 0.0
    %1488 = vmatpush1.msra.mxu0 0.0
    %1489 = vmatprep.subr.mxu0 0.0
    %1490 = vmatpush1.msra.mxu0 0.0
    %1491 = vmatprep.subr.mxu0 0.0
    %1492 = vmatpush1.msra.mxu0 0.0
    %1493 = vmatprep.subr.mxu0 0.0
    %1494 = vmatpush1.msra.mxu0 0.0
    %1495 = vmatprep.subr.mxu0 0.0
    %1496 = vmatpush1.msra.mxu0 0.0
    %1497 = vmatprep.subr.mxu0 0.0
    %1498 = vmatpush1.msra.mxu0 0.0
    %1499 = vmatprep.subr.mxu0 0.0
    %1500 = vmatpush1.msra.mxu0 0.0
    %1501 = vmatprep.subr.mxu0 0.0
    %1502 = vmatpush1.msra.mxu0 0.0
    %1503 = vmatprep.subr.mxu0 0.0
    %1504 = vmatpush1.msra.mxu0 0.0
    %1505 = vmatprep.subr.mxu0 0.0
    %1506 = vmatpush1.msra.mxu0 0.0
    %1507 = vmatprep.subr.mxu0 0.0
    %1508 = vmatpush1.msra.mxu0 0.0
    %1509 = vmatprep.subr.mxu0 0.0
    %1510 = vmatpush1.msra.mxu0 0.0
    %1511 = vmatprep.subr.mxu0 0.0
    %1512 = vmatpush1.msra.mxu0 0.0
    %1513 = vmatprep.subr.mxu0 0.0
    %1514 = vmatpush1.msra.mxu0 0.0
    %1515 = vmatprep.subr.mxu0 0.0
    %1516 = vmatpush1.msra.mxu0 0.0
    %1517 = vmatprep.subr.mxu0 0.0
    %1518 = vmatpush1.msra.mxu0 0.0
    %1519 = vmatprep.subr.mxu0 0.0
    %1520 = vmatpush1.msra.mxu0 0.0
    %1521 = vmatprep.subr.mxu0 0.0
    %1522 = vmatpush1.msra.mxu0 0.0
    %1523 = vmatprep.subr.mxu0 0.0
    %1524 = vmatpush1.msra.mxu0 0.0
    %1525 = vmatprep.subr.mxu0 0.0
    %1526 = vmatpush1.msra.mxu0 0.0
    %1527 = vmatprep.subr.mxu0 0.0
    %1528 = vmatpush1.msra.mxu0 0.0
    %1529 = vmatprep.subr.mxu0 0.0
    %1530 = vmatpush1.msra.mxu0 0.0
    %1531 = vmatprep.subr.mxu0 0.0
    %1532 = vmatpush1.msra.mxu0 0.0
    %1533 = vmatprep.subr.mxu0 0.0
    %1534 = vmatpush1.msra.mxu0 0.0
    %1535 = vmatprep.subr.mxu0 0.0
    %1536 = vmatpush1.msra.mxu0 0.0
    %1537 = vmatprep.subr.mxu0 0.0
    %1538 = vmatpush1.msra.mxu0 0.0
    %1539 = vmatprep.mubr.f32.mxu0 0.0
    %1540 = vmatmul.mubr.f32.gmra.mrb[0].mxu0 %v1473
    %v1541 = vpop.f32.mrb[0].mxu0
    %v1542 = vadd.f32 %v1470, %v1541
    %v1543 = vpop.f32.mrb[0].mxu0
    %1544 = vdwg.mxu0
    %v1545 = vmax.f32 %v1542, 0.0
    %v1548 = vunpack.c.l.s4 1983009808
    %v1549 = vunpack.c.0.s8 %v1548
    %v1550 = vlaneseq
    %v1551 = vshrl.u32 %v1550, 7
    %v1552 = vsub.s32 %v1549, %v1551
    %v1553 = vrot.slane %v1545, %v1552
    %1554 = vrot.lane.b32.xlu0 %v1553, 96
    %v1555 = vpop.permute.xlu0 %1554
    %1557 = vst.msk [vmem:[#allocation2 + $0x6] sm:$0x3] %vm425, %v1555
    %s1558 = scalar_lea.vmem %s0, 32
    %v1559 = vld [vmem:[%s1558] sm:$0x3]
    %v1560 = vld [vmem:[%s2] sm:$0xff]
    %v1561 = vld [vmem:[%s2 + $0x8] sm:$0xff]
    %v1562 = vld [vmem:[%s3] sm:$0x1]
    %v1564 = vlaneseq
    %v1565 = vshrl.u32 %v1564, 7
    %v1566 = vsub.s32 0, %v1565
    %v1567 = vrot.slane %v1562, %v1566
    %v1570 = vsel %vm56, %v1559, 0
    %1572 = vmatprep.subr.mxu0 0.0
    %1573 = vmatpush1.msra.mxu0 %v1560
    %1574 = vmatprep.subr.mxu0 0.0
    %1575 = vmatpush1.msra.mxu0 %v1561
    %1576 = vmatprep.subr.mxu0 0.0
    %1577 = vmatpush1.msra.mxu0 0.0
    %1578 = vmatprep.subr.mxu0 0.0
    %1579 = vmatpush1.msra.mxu0 0.0
    %1580 = vmatprep.subr.mxu0 0.0
    %1581 = vmatpush1.msra.mxu0 0.0
    %1582 = vmatprep.subr.mxu0 0.0
    %1583 = vmatpush1.msra.mxu0 0.0
    %1584 = vmatprep.subr.mxu0 0.0
    %1585 = vmatpush1.msra.mxu0 0.0
    %1586 = vmatprep.subr.mxu0 0.0
    %1587 = vmatpush1.msra.mxu0 0.0
    %1588 = vmatprep.subr.mxu0 0.0
    %1589 = vmatpush1.msra.mxu0 0.0
    %1590 = vmatprep.subr.mxu0 0.0
    %1591 = vmatpush1.msra.mxu0 0.0
    %1592 = vmatprep.subr.mxu0 0.0
    %1593 = vmatpush1.msra.mxu0 0.0
    %1594 = vmatprep.subr.mxu0 0.0
    %1595 = vmatpush1.msra.mxu0 0.0
    %1596 = vmatprep.subr.mxu0 0.0
    %1597 = vmatpush1.msra.mxu0 0.0
    %1598 = vmatprep.subr.mxu0 0.0
    %1599 = vmatpush1.msra.mxu0 0.0
    %1600 = vmatprep.subr.mxu0 0.0
    %1601 = vmatpush1.msra.mxu0 0.0
    %1602 = vmatprep.subr.mxu0 0.0
    %1603 = vmatpush1.msra.mxu0 0.0
    %1604 = vmatprep.subr.mxu0 0.0
    %1605 = vmatpush1.msra.mxu0 0.0
    %1606 = vmatprep.subr.mxu0 0.0
    %1607 = vmatpush1.msra.mxu0 0.0
    %1608 = vmatprep.subr.mxu0 0.0
    %1609 = vmatpush1.msra.mxu0 0.0
    %1610 = vmatprep.subr.mxu0 0.0
    %1611 = vmatpush1.msra.mxu0 0.0
    %1612 = vmatprep.subr.mxu0 0.0
    %1613 = vmatpush1.msra.mxu0 0.0
    %1614 = vmatprep.subr.mxu0 0.0
    %1615 = vmatpush1.msra.mxu0 0.0
    %1616 = vmatprep.subr.mxu0 0.0
    %1617 = vmatpush1.msra.mxu0 0.0
    %1618 = vmatprep.subr.mxu0 0.0
    %1619 = vmatpush1.msra.mxu0 0.0
    %1620 = vmatprep.subr.mxu0 0.0
    %1621 = vmatpush1.msra.mxu0 0.0
    %1622 = vmatprep.subr.mxu0 0.0
    %1623 = vmatpush1.msra.mxu0 0.0
    %1624 = vmatprep.subr.mxu0 0.0
    %1625 = vmatpush1.msra.mxu0 0.0
    %1626 = vmatprep.subr.mxu0 0.0
    %1627 = vmatpush1.msra.mxu0 0.0
    %1628 = vmatprep.subr.mxu0 0.0
    %1629 = vmatpush1.msra.mxu0 0.0
    %1630 = vmatprep.subr.mxu0 0.0
    %1631 = vmatpush1.msra.mxu0 0.0
    %1632 = vmatprep.subr.mxu0 0.0
    %1633 = vmatpush1.msra.mxu0 0.0
    %1634 = vmatprep.subr.mxu0 0.0
    %1635 = vmatpush1.msra.mxu0 0.0
    %1636 = vmatprep.mubr.f32.mxu0 0.0
    %1637 = vmatmul.mubr.f32.gmra.mrb[0].mxu0 %v1570
    %v1638 = vpop.f32.mrb[0].mxu0
    %v1639 = vadd.f32 %v1567, %v1638
    %v1640 = vpop.f32.mrb[0].mxu0
    %1641 = vdwg.mxu0
    %v1642 = vmax.f32 %v1639, 0.0
    %1643 = vst.msk [vmem:[#allocation2 + $0x8] sm:$0x3] %vm131, %v1642
    %s1644 = scalar_lea.vmem %s0, 34
    %v1645 = vld [vmem:[%s1644] sm:$0x3]
    %v1646 = vld [vmem:[%s2] sm:$0xff]
    %v1647 = vld [vmem:[%s2 + $0x8] sm:$0xff]
    %v1648 = vld [vmem:[%s3] sm:$0x1]
    %v1650 = vlaneseq
    %v1651 = vshrl.u32 %v1650, 7
    %v1652 = vsub.s32 0, %v1651
    %v1653 = vrot.slane %v1648, %v1652
    %v1656 = vsel %vm56, %v1645, 0
    %1658 = vmatprep.subr.mxu0 0.0
    %1659 = vmatpush1.msra.mxu0 %v1646
    %1660 = vmatprep.subr.mxu0 0.0
    %1661 = vmatpush1.msra.mxu0 %v1647
    %1662 = vmatprep.subr.mxu0 0.0
    %1663 = vmatpush1.msra.mxu0 0.0
    %1664 = vmatprep.subr.mxu0 0.0
    %1665 = vmatpush1.msra.mxu0 0.0
    %1666 = vmatprep.subr.mxu0 0.0
    %1667 = vmatpush1.msra.mxu0 0.0
    %1668 = vmatprep.subr.mxu0 0.0
    %1669 = vmatpush1.msra.mxu0 0.0
    %1670 = vmatprep.subr.mxu0 0.0
    %1671 = vmatpush1.msra.mxu0 0.0
    %1672 = vmatprep.subr.mxu0 0.0
    %1673 = vmatpush1.msra.mxu0 0.0
    %1674 = vmatprep.subr.mxu0 0.0
    %1675 = vmatpush1.msra.mxu0 0.0
    %1676 = vmatprep.subr.mxu0 0.0
    %1677 = vmatpush1.msra.mxu0 0.0
    %1678 = vmatprep.subr.mxu0 0.0
    %1679 = vmatpush1.msra.mxu0 0.0
    %1680 = vmatprep.subr.mxu0 0.0
    %1681 = vmatpush1.msra.mxu0 0.0
    %1682 = vmatprep.subr.mxu0 0.0
    %1683 = vmatpush1.msra.mxu0 0.0
    %1684 = vmatprep.subr.mxu0 0.0
    %1685 = vmatpush1.msra.mxu0 0.0
    %1686 = vmatprep.subr.mxu0 0.0
    %1687 = vmatpush1.msra.mxu0 0.0
    %1688 = vmatprep.subr.mxu0 0.0
    %1689 = vmatpush1.msra.mxu0 0.0
    %1690 = vmatprep.subr.mxu0 0.0
    %1691 = vmatpush1.msra.mxu0 0.0
    %1692 = vmatprep.subr.mxu0 0.0
    %1693 = vmatpush1.msra.mxu0 0.0
    %1694 = vmatprep.subr.mxu0 0.0
    %1695 = vmatpush1.msra.mxu0 0.0
    %1696 = vmatprep.subr.mxu0 0.0
    %1697 = vmatpush1.msra.mxu0 0.0
    %1698 = vmatprep.subr.mxu0 0.0
    %1699 = vmatpush1.msra.mxu0 0.0
    %1700 = vmatprep.subr.mxu0 0.0
    %1701 = vmatpush1.msra.mxu0 0.0
    %1702 = vmatprep.subr.mxu0 0.0
    %1703 = vmatpush1.msra.mxu0 0.0
    %1704 = vmatprep.subr.mxu0 0.0
    %1705 = vmatpush1.msra.mxu0 0.0
    %1706 = vmatprep.subr.mxu0 0.0
    %1707 = vmatpush1.msra.mxu0 0.0
    %1708 = vmatprep.subr.mxu0 0.0
    %1709 = vmatpush1.msra.mxu0 0.0
    %1710 = vmatprep.subr.mxu0 0.0
    %1711 = vmatpush1.msra.mxu0 0.0
    %1712 = vmatprep.subr.mxu0 0.0
    %1713 = vmatpush1.msra.mxu0 0.0
    %1714 = vmatprep.subr.mxu0 0.0
    %1715 = vmatpush1.msra.mxu0 0.0
    %1716 = vmatprep.subr.mxu0 0.0
    %1717 = vmatpush1.msra.mxu0 0.0
    %1718 = vmatprep.subr.mxu0 0.0
    %1719 = vmatpush1.msra.mxu0 0.0
    %1720 = vmatprep.subr.mxu0 0.0
    %1721 = vmatpush1.msra.mxu0 0.0
    %1722 = vmatprep.mubr.f32.mxu0 0.0
    %1723 = vmatmul.mubr.f32.gmra.mrb[0].mxu0 %v1656
    %v1724 = vpop.f32.mrb[0].mxu0
    %v1725 = vadd.f32 %v1653, %v1724
    %v1726 = vpop.f32.mrb[0].mxu0
    %1727 = vdwg.mxu0
    %v1728 = vmax.f32 %v1725, 0.0
    %v1731 = vunpack.c.l.s4 1983009808
    %v1732 = vunpack.c.0.s8 %v1731
    %v1733 = vlaneseq
    %v1734 = vshrl.u32 %v1733, 7
    %v1735 = vsub.s32 %v1732, %v1734
    %v1736 = vrot.slane %v1728, %v1735
    %1737 = vrot.lane.b32.xlu0 %v1736, 32
    %v1738 = vpop.permute.xlu0 %1737
    %1740 = vst.msk [vmem:[#allocation2 + $0x8] sm:$0x3] %vm229, %v1738
    %s1741 = scalar_lea.vmem %s0, 36
    %v1742 = vld [vmem:[%s1741] sm:$0x3]
    %v1743 = vld [vmem:[%s2] sm:$0xff]
    %v1744 = vld [vmem:[%s2 + $0x8] sm:$0xff]
    %v1745 = vld [vmem:[%s3] sm:$0x1]
    %v1747 = vlaneseq
    %v1748 = vshrl.u32 %v1747, 7
    %v1749 = vsub.s32 0, %v1748
    %v1750 = vrot.slane %v1745, %v1749
    %v1753 = vsel %vm56, %v1742, 0
    %1755 = vmatprep.subr.mxu0 0.0
    %1756 = vmatpush1.msra.mxu0 %v1743
    %1757 = vmatprep.subr.mxu0 0.0
    %1758 = vmatpush1.msra.mxu0 %v1744
    %1759 = vmatprep.subr.mxu0 0.0
    %1760 = vmatpush1.msra.mxu0 0.0
    %1761 = vmatprep.subr.mxu0 0.0
    %1762 = vmatpush1.msra.mxu0 0.0
    %1763 = vmatprep.subr.mxu0 0.0
    %1764 = vmatpush1.msra.mxu0 0.0
    %1765 = vmatprep.subr.mxu0 0.0
    %1766 = vmatpush1.msra.mxu0 0.0
    %1767 = vmatprep.subr.mxu0 0.0
    %1768 = vmatpush1.msra.mxu0 0.0
    %1769 = vmatprep.subr.mxu0 0.0
    %1770 = vmatpush1.msra.mxu0 0.0
    %1771 = vmatprep.subr.mxu0 0.0
    %1772 = vmatpush1.msra.mxu0 0.0
    %1773 = vmatprep.subr.mxu0 0.0
    %1774 = vmatpush1.msra.mxu0 0.0
    %1775 = vmatprep.subr.mxu0 0.0
    %1776 = vmatpush1.msra.mxu0 0.0
    %1777 = vmatprep.subr.mxu0 0.0
    %1778 = vmatpush1.msra.mxu0 0.0
    %1779 = vmatprep.subr.mxu0 0.0
    %1780 = vmatpush1.msra.mxu0 0.0
    %1781 = vmatprep.subr.mxu0 0.0
    %1782 = vmatpush1.msra.mxu0 0.0
    %1783 = vmatprep.subr.mxu0 0.0
    %1784 = vmatpush1.msra.mxu0 0.0
    %1785 = vmatprep.subr.mxu0 0.0
    %1786 = vmatpush1.msra.mxu0 0.0
    %1787 = vmatprep.subr.mxu0 0.0
    %1788 = vmatpush1.msra.mxu0 0.0
    %1789 = vmatprep.subr.mxu0 0.0
    %1790 = vmatpush1.msra.mxu0 0.0
    %1791 = vmatprep.subr.mxu0 0.0
    %1792 = vmatpush1.msra.mxu0 0.0
    %1793 = vmatprep.subr.mxu0 0.0
    %1794 = vmatpush1.msra.mxu0 0.0
    %1795 = vmatprep.subr.mxu0 0.0
    %1796 = vmatpush1.msra.mxu0 0.0
    %1797 = vmatprep.subr.mxu0 0.0
    %1798 = vmatpush1.msra.mxu0 0.0
    %1799 = vmatprep.subr.mxu0 0.0
    %1800 = vmatpush1.msra.mxu0 0.0
    %1801 = vmatprep.subr.mxu0 0.0
    %1802 = vmatpush1.msra.mxu0 0.0
    %1803 = vmatprep.subr.mxu0 0.0
    %1804 = vmatpush1.msra.mxu0 0.0
    %1805 = vmatprep.subr.mxu0 0.0
    %1806 = vmatpush1.msra.mxu0 0.0
    %1807 = vmatprep.subr.mxu0 0.0
    %1808 = vmatpush1.msra.mxu0 0.0
    %1809 = vmatprep.subr.mxu0 0.0
    %1810 = vmatpush1.msra.mxu0 0.0
    %1811 = vmatprep.subr.mxu0 0.0
    %1812 = vmatpush1.msra.mxu0 0.0
    %1813 = vmatprep.subr.mxu0 0.0
    %1814 = vmatpush1.msra.mxu0 0.0
    %1815 = vmatprep.subr.mxu0 0.0
    %1816 = vmatpush1.msra.mxu0 0.0
    %1817 = vmatprep.subr.mxu0 0.0
    %1818 = vmatpush1.msra.mxu0 0.0
    %1819 = vmatprep.mubr.f32.mxu0 0.0
    %1820 = vmatmul.mubr.f32.gmra.mrb[0].mxu0 %v1753
    %v1821 = vpop.f32.mrb[0].mxu0
    %v1822 = vadd.f32 %v1750, %v1821
    %v1823 = vpop.f32.mrb[0].mxu0
    %1824 = vdwg.mxu0
    %v1825 = vmax.f32 %v1822, 0.0
    %v1828 = vunpack.c.l.s4 1983009808
    %v1829 = vunpack.c.0.s8 %v1828
    %v1830 = vlaneseq
    %v1831 = vshrl.u32 %v1830, 7
    %v1832 = vsub.s32 %v1829, %v1831
    %v1833 = vrot.slane %v1825, %v1832
    %1834 = vrot.lane.b32.xlu0 %v1833, 64
    %v1835 = vpop.permute.xlu0 %1834
    %1837 = vst.msk [vmem:[#allocation2 + $0x8] sm:$0x3] %vm327, %v1835
    %s1838 = scalar_lea.vmem %s0, 38
    %v1839 = vld [vmem:[%s1838] sm:$0x3]
    %v1840 = vld [vmem:[%s2] sm:$0xff]
    %v1841 = vld [vmem:[%s2 + $0x8] sm:$0xff]
    %v1842 = vld [vmem:[%s3] sm:$0x1]
    %v1844 = vlaneseq
    %v1845 = vshrl.u32 %v1844, 7
    %v1846 = vsub.s32 0, %v1845
    %v1847 = vrot.slane %v1842, %v1846
    %v1850 = vsel %vm56, %v1839, 0
    %1852 = vmatprep.subr.mxu0 0.0
    %1853 = vmatpush1.msra.mxu0 %v1840
    %1854 = vmatprep.subr.mxu0 0.0
    %1855 = vmatpush1.msra.mxu0 %v1841
    %1856 = vmatprep.subr.mxu0 0.0
    %1857 = vmatpush1.msra.mxu0 0.0
    %1858 = vmatprep.subr.mxu0 0.0
    %1859 = vmatpush1.msra.mxu0 0.0
    %1860 = vmatprep.subr.mxu0 0.0
    %1861 = vmatpush1.msra.mxu0 0.0
    %1862 = vmatprep.subr.mxu0 0.0
    %1863 = vmatpush1.msra.mxu0 0.0
    %1864 = vmatprep.subr.mxu0 0.0
    %1865 = vmatpush1.msra.mxu0 0.0
    %1866 = vmatprep.subr.mxu0 0.0
    %1867 = vmatpush1.msra.mxu0 0.0
    %1868 = vmatprep.subr.mxu0 0.0
    %1869 = vmatpush1.msra.mxu0 0.0
    %1870 = vmatprep.subr.mxu0 0.0
    %1871 = vmatpush1.msra.mxu0 0.0
    %1872 = vmatprep.subr.mxu0 0.0
    %1873 = vmatpush1.msra.mxu0 0.0
    %1874 = vmatprep.subr.mxu0 0.0
    %1875 = vmatpush1.msra.mxu0 0.0
    %1876 = vmatprep.subr.mxu0 0.0
    %1877 = vmatpush1.msra.mxu0 0.0
    %1878 = vmatprep.subr.mxu0 0.0
    %1879 = vmatpush1.msra.mxu0 0.0
    %1880 = vmatprep.subr.mxu0 0.0
    %1881 = vmatpush1.msra.mxu0 0.0
    %1882 = vmatprep.subr.mxu0 0.0
    %1883 = vmatpush1.msra.mxu0 0.0
    %1884 = vmatprep.subr.mxu0 0.0
    %1885 = vmatpush1.msra.mxu0 0.0
    %1886 = vmatprep.subr.mxu0 0.0
    %1887 = vmatpush1.msra.mxu0 0.0
    %1888 = vmatprep.subr.mxu0 0.0
    %1889 = vmatpush1.msra.mxu0 0.0
    %1890 = vmatprep.subr.mxu0 0.0
    %1891 = vmatpush1.msra.mxu0 0.0
    %1892 = vmatprep.subr.mxu0 0.0
    %1893 = vmatpush1.msra.mxu0 0.0
    %1894 = vmatprep.subr.mxu0 0.0
    %1895 = vmatpush1.msra.mxu0 0.0
    %1896 = vmatprep.subr.mxu0 0.0
    %1897 = vmatpush1.msra.mxu0 0.0
    %1898 = vmatprep.subr.mxu0 0.0
    %1899 = vmatpush1.msra.mxu0 0.0
    %1900 = vmatprep.subr.mxu0 0.0
    %1901 = vmatpush1.msra.mxu0 0.0
    %1902 = vmatprep.subr.mxu0 0.0
    %1903 = vmatpush1.msra.mxu0 0.0
    %1904 = vmatprep.subr.mxu0 0.0
    %1905 = vmatpush1.msra.mxu0 0.0
    %1906 = vmatprep.subr.mxu0 0.0
    %1907 = vmatpush1.msra.mxu0 0.0
    %1908 = vmatprep.subr.mxu0 0.0
    %1909 = vmatpush1.msra.mxu0 0.0
    %1910 = vmatprep.subr.mxu0 0.0
    %1911 = vmatpush1.msra.mxu0 0.0
    %1912 = vmatprep.subr.mxu0 0.0
    %1913 = vmatpush1.msra.mxu0 0.0
    %1914 = vmatprep.subr.mxu0 0.0
    %1915 = vmatpush1.msra.mxu0 0.0
    %1916 = vmatprep.mubr.f32.mxu0 0.0
    %1917 = vmatmul.mubr.f32.gmra.mrb[0].mxu0 %v1850
    %v1918 = vpop.f32.mrb[0].mxu0
    %v1919 = vadd.f32 %v1847, %v1918
    %v1920 = vpop.f32.mrb[0].mxu0
    %1921 = vdwg.mxu0
    %v1922 = vmax.f32 %v1919, 0.0
    %v1925 = vunpack.c.l.s4 1983009808
    %v1926 = vunpack.c.0.s8 %v1925
    %v1927 = vlaneseq
    %v1928 = vshrl.u32 %v1927, 7
    %v1929 = vsub.s32 %v1926, %v1928
    %v1930 = vrot.slane %v1922, %v1929
    %1931 = vrot.lane.b32.xlu0 %v1930, 96
    %v1932 = vpop.permute.xlu0 %1931
    %1934 = vst.msk [vmem:[#allocation2 + $0x8] sm:$0x3] %vm425, %v1932
    %s1935 = scalar_lea.vmem %s0, 40
    %v1936 = vld [vmem:[%s1935] sm:$0x3]
    %v1937 = vld [vmem:[%s2] sm:$0xff]
    %v1938 = vld [vmem:[%s2 + $0x8] sm:$0xff]
    %v1939 = vld [vmem:[%s3] sm:$0x1]
    %v1941 = vlaneseq
    %v1942 = vshrl.u32 %v1941, 7
    %v1943 = vsub.s32 0, %v1942
    %v1944 = vrot.slane %v1939, %v1943
    %v1947 = vsel %vm56, %v1936, 0
    %1949 = vmatprep.subr.mxu0 0.0
    %1950 = vmatpush1.msra.mxu0 %v1937
    %1951 = vmatprep.subr.mxu0 0.0
    %1952 = vmatpush1.msra.mxu0 %v1938
    %1953 = vmatprep.subr.mxu0 0.0
    %1954 = vmatpush1.msra.mxu0 0.0
    %1955 = vmatprep.subr.mxu0 0.0
    %1956 = vmatpush1.msra.mxu0 0.0
    %1957 = vmatprep.subr.mxu0 0.0
    %1958 = vmatpush1.msra.mxu0 0.0
    %1959 = vmatprep.subr.mxu0 0.0
    %1960 = vmatpush1.msra.mxu0 0.0
    %1961 = vmatprep.subr.mxu0 0.0
    %1962 = vmatpush1.msra.mxu0 0.0
    %1963 = vmatprep.subr.mxu0 0.0
    %1964 = vmatpush1.msra.mxu0 0.0
    %1965 = vmatprep.subr.mxu0 0.0
    %1966 = vmatpush1.msra.mxu0 0.0
    %1967 = vmatprep.subr.mxu0 0.0
    %1968 = vmatpush1.msra.mxu0 0.0
    %1969 = vmatprep.subr.mxu0 0.0
    %1970 = vmatpush1.msra.mxu0 0.0
    %1971 = vmatprep.subr.mxu0 0.0
    %1972 = vmatpush1.msra.mxu0 0.0
    %1973 = vmatprep.subr.mxu0 0.0
    %1974 = vmatpush1.msra.mxu0 0.0
    %1975 = vmatprep.subr.mxu0 0.0
    %1976 = vmatpush1.msra.mxu0 0.0
    %1977 = vmatprep.subr.mxu0 0.0
    %1978 = vmatpush1.msra.mxu0 0.0
    %1979 = vmatprep.subr.mxu0 0.0
    %1980 = vmatpush1.msra.mxu0 0.0
    %1981 = vmatprep.subr.mxu0 0.0
    %1982 = vmatpush1.msra.mxu0 0.0
    %1983 = vmatprep.subr.mxu0 0.0
    %1984 = vmatpush1.msra.mxu0 0.0
    %1985 = vmatprep.subr.mxu0 0.0
    %1986 = vmatpush1.msra.mxu0 0.0
    %1987 = vmatprep.subr.mxu0 0.0
    %1988 = vmatpush1.msra.mxu0 0.0
    %1989 = vmatprep.subr.mxu0 0.0
    %1990 = vmatpush1.msra.mxu0 0.0
    %1991 = vmatprep.subr.mxu0 0.0
    %1992 = vmatpush1.msra.mxu0 0.0
    %1993 = vmatprep.subr.mxu0 0.0
    %1994 = vmatpush1.msra.mxu0 0.0
    %1995 = vmatprep.subr.mxu0 0.0
    %1996 = vmatpush1.msra.mxu0 0.0
    %1997 = vmatprep.subr.mxu0 0.0
    %1998 = vmatpush1.msra.mxu0 0.0
    %1999 = vmatprep.subr.mxu0 0.0
    %2000 = vmatpush1.msra.mxu0 0.0
    %2001 = vmatprep.subr.mxu0 0.0
    %2002 = vmatpush1.msra.mxu0 0.0
    %2003 = vmatprep.subr.mxu0 0.0
    %2004 = vmatpush1.msra.mxu0 0.0
    %2005 = vmatprep.subr.mxu0 0.0
    %2006 = vmatpush1.msra.mxu0 0.0
    %2007 = vmatprep.subr.mxu0 0.0
    %2008 = vmatpush1.msra.mxu0 0.0
    %2009 = vmatprep.subr.mxu0 0.0
    %2010 = vmatpush1.msra.mxu0 0.0
    %2011 = vmatprep.subr.mxu0 0.0
    %2012 = vmatpush1.msra.mxu0 0.0
    %2013 = vmatprep.mubr.f32.mxu0 0.0
    %2014 = vmatmul.mubr.f32.gmra.mrb[0].mxu0 %v1947
    %v2015 = vpop.f32.mrb[0].mxu0
    %v2016 = vadd.f32 %v1944, %v2015
    %v2017 = vpop.f32.mrb[0].mxu0
    %2018 = vdwg.mxu0
    %v2019 = vmax.f32 %v2016, 0.0
    %2020 = vst.msk [vmem:[#allocation2 + $0xa] sm:$0x3] %vm131, %v2019
    %s2021 = scalar_lea.vmem %s0, 42
    %v2022 = vld [vmem:[%s2021] sm:$0x3]
    %v2023 = vld [vmem:[%s2] sm:$0xff]
    %v2024 = vld [vmem:[%s2 + $0x8] sm:$0xff]
    %v2025 = vld [vmem:[%s3] sm:$0x1]
    %v2027 = vlaneseq
    %v2028 = vshrl.u32 %v2027, 7
    %v2029 = vsub.s32 0, %v2028
    %v2030 = vrot.slane %v2025, %v2029
    %v2033 = vsel %vm56, %v2022, 0
    %2035 = vmatprep.subr.mxu0 0.0
    %2036 = vmatpush1.msra.mxu0 %v2023
    %2037 = vmatprep.subr.mxu0 0.0
    %2038 = vmatpush1.msra.mxu0 %v2024
    %2039 = vmatprep.subr.mxu0 0.0
    %2040 = vmatpush1.msra.mxu0 0.0
    %2041 = vmatprep.subr.mxu0 0.0
    %2042 = vmatpush1.msra.mxu0 0.0
    %2043 = vmatprep.subr.mxu0 0.0
    %2044 = vmatpush1.msra.mxu0 0.0
    %2045 = vmatprep.subr.mxu0 0.0
    %2046 = vmatpush1.msra.mxu0 0.0
    %2047 = vmatprep.subr.mxu0 0.0
    %2048 = vmatpush1.msra.mxu0 0.0
    %2049 = vmatprep.subr.mxu0 0.0
    %2050 = vmatpush1.msra.mxu0 0.0
    %2051 = vmatprep.subr.mxu0 0.0
    %2052 = vmatpush1.msra.mxu0 0.0
    %2053 = vmatprep.subr.mxu0 0.0
    %2054 = vmatpush1.msra.mxu0 0.0
    %2055 = vmatprep.subr.mxu0 0.0
    %2056 = vmatpush1.msra.mxu0 0.0
    %2057 = vmatprep.subr.mxu0 0.0
    %2058 = vmatpush1.msra.mxu0 0.0
    %2059 = vmatprep.subr.mxu0 0.0
    %2060 = vmatpush1.msra.mxu0 0.0
    %2061 = vmatprep.subr.mxu0 0.0
    %2062 = vmatpush1.msra.mxu0 0.0
    %2063 = vmatprep.subr.mxu0 0.0
    %2064 = vmatpush1.msra.mxu0 0.0
    %2065 = vmatprep.subr.mxu0 0.0
    %2066 = vmatpush1.msra.mxu0 0.0
    %2067 = vmatprep.subr.mxu0 0.0
    %2068 = vmatpush1.msra.mxu0 0.0
    %2069 = vmatprep.subr.mxu0 0.0
    %2070 = vmatpush1.msra.mxu0 0.0
    %2071 = vmatprep.subr.mxu0 0.0
    %2072 = vmatpush1.msra.mxu0 0.0
    %2073 = vmatprep.subr.mxu0 0.0
    %2074 = vmatpush1.msra.mxu0 0.0
    %2075 = vmatprep.subr.mxu0 0.0
    %2076 = vmatpush1.msra.mxu0 0.0
    %2077 = vmatprep.subr.mxu0 0.0
    %2078 = vmatpush1.msra.mxu0 0.0
    %2079 = vmatprep.subr.mxu0 0.0
    %2080 = vmatpush1.msra.mxu0 0.0
    %2081 = vmatprep.subr.mxu0 0.0
    %2082 = vmatpush1.msra.mxu0 0.0
    %2083 = vmatprep.subr.mxu0 0.0
    %2084 = vmatpush1.msra.mxu0 0.0
    %2085 = vmatprep.subr.mxu0 0.0
    %2086 = vmatpush1.msra.mxu0 0.0
    %2087 = vmatprep.subr.mxu0 0.0
    %2088 = vmatpush1.msra.mxu0 0.0
    %2089 = vmatprep.subr.mxu0 0.0
    %2090 = vmatpush1.msra.mxu0 0.0
    %2091 = vmatprep.subr.mxu0 0.0
    %2092 = vmatpush1.msra.mxu0 0.0
    %2093 = vmatprep.subr.mxu0 0.0
    %2094 = vmatpush1.msra.mxu0 0.0
    %2095 = vmatprep.subr.mxu0 0.0
    %2096 = vmatpush1.msra.mxu0 0.0
    %2097 = vmatprep.subr.mxu0 0.0
    %2098 = vmatpush1.msra.mxu0 0.0
    %2099 = vmatprep.mubr.f32.mxu0 0.0
    %2100 = vmatmul.mubr.f32.gmra.mrb[0].mxu0 %v2033
    %v2101 = vpop.f32.mrb[0].mxu0
    %v2102 = vadd.f32 %v2030, %v2101
    %v2103 = vpop.f32.mrb[0].mxu0
    %2104 = vdwg.mxu0
    %v2105 = vmax.f32 %v2102, 0.0
    %v2108 = vunpack.c.l.s4 1983009808
    %v2109 = vunpack.c.0.s8 %v2108
    %v2110 = vlaneseq
    %v2111 = vshrl.u32 %v2110, 7
    %v2112 = vsub.s32 %v2109, %v2111
    %v2113 = vrot.slane %v2105, %v2112
    %2114 = vrot.lane.b32.xlu0 %v2113, 32
    %v2115 = vpop.permute.xlu0 %2114
    %2117 = vst.msk [vmem:[#allocation2 + $0xa] sm:$0x3] %vm229, %v2115
    %s2118 = scalar_lea.vmem %s0, 44
    %v2119 = vld [vmem:[%s2118] sm:$0x3]
    %v2120 = vld [vmem:[%s2] sm:$0xff]
    %v2121 = vld [vmem:[%s2 + $0x8] sm:$0xff]
    %v2122 = vld [vmem:[%s3] sm:$0x1]
    %v2124 = vlaneseq
    %v2125 = vshrl.u32 %v2124, 7
    %v2126 = vsub.s32 0, %v2125
    %v2127 = vrot.slane %v2122, %v2126
    %v2130 = vsel %vm56, %v2119, 0
    %2132 = vmatprep.subr.mxu0 0.0
    %2133 = vmatpush1.msra.mxu0 %v2120
    %2134 = vmatprep.subr.mxu0 0.0
    %2135 = vmatpush1.msra.mxu0 %v2121
    %2136 = vmatprep.subr.mxu0 0.0
    %2137 = vmatpush1.msra.mxu0 0.0
    %2138 = vmatprep.subr.mxu0 0.0
    %2139 = vmatpush1.msra.mxu0 0.0
    %2140 = vmatprep.subr.mxu0 0.0
    %2141 = vmatpush1.msra.mxu0 0.0
    %2142 = vmatprep.subr.mxu0 0.0
    %2143 = vmatpush1.msra.mxu0 0.0
    %2144 = vmatprep.subr.mxu0 0.0
    %2145 = vmatpush1.msra.mxu0 0.0
    %2146 = vmatprep.subr.mxu0 0.0
    %2147 = vmatpush1.msra.mxu0 0.0
    %2148 = vmatprep.subr.mxu0 0.0
    %2149 = vmatpush1.msra.mxu0 0.0
    %2150 = vmatprep.subr.mxu0 0.0
    %2151 = vmatpush1.msra.mxu0 0.0
    %2152 = vmatprep.subr.mxu0 0.0
    %2153 = vmatpush1.msra.mxu0 0.0
    %2154 = vmatprep.subr.mxu0 0.0
    %2155 = vmatpush1.msra.mxu0 0.0
    %2156 = vmatprep.subr.mxu0 0.0
    %2157 = vmatpush1.msra.mxu0 0.0
    %2158 = vmatprep.subr.mxu0 0.0
    %2159 = vmatpush1.msra.mxu0 0.0
    %2160 = vmatprep.subr.mxu0 0.0
    %2161 = vmatpush1.msra.mxu0 0.0
    %2162 = vmatprep.subr.mxu0 0.0
    %2163 = vmatpush1.msra.mxu0 0.0
    %2164 = vmatprep.subr.mxu0 0.0
    %2165 = vmatpush1.msra.mxu0 0.0
    %2166 = vmatprep.subr.mxu0 0.0
    %2167 = vmatpush1.msra.mxu0 0.0
    %2168 = vmatprep.subr.mxu0 0.0
    %2169 = vmatpush1.msra.mxu0 0.0
    %2170 = vmatprep.subr.mxu0 0.0
    %2171 = vmatpush1.msra.mxu0 0.0
    %2172 = vmatprep.subr.mxu0 0.0
    %2173 = vmatpush1.msra.mxu0 0.0
    %2174 = vmatprep.subr.mxu0 0.0
    %2175 = vmatpush1.msra.mxu0 0.0
    %2176 = vmatprep.subr.mxu0 0.0
    %2177 = vmatpush1.msra.mxu0 0.0
    %2178 = vmatprep.subr.mxu0 0.0
    %2179 = vmatpush1.msra.mxu0 0.0
    %2180 = vmatprep.subr.mxu0 0.0
    %2181 = vmatpush1.msra.mxu0 0.0
    %2182 = vmatprep.subr.mxu0 0.0
    %2183 = vmatpush1.msra.mxu0 0.0
    %2184 = vmatprep.subr.mxu0 0.0
    %2185 = vmatpush1.msra.mxu0 0.0
    %2186 = vmatprep.subr.mxu0 0.0
    %2187 = vmatpush1.msra.mxu0 0.0
    %2188 = vmatprep.subr.mxu0 0.0
    %2189 = vmatpush1.msra.mxu0 0.0
    %2190 = vmatprep.subr.mxu0 0.0
    %2191 = vmatpush1.msra.mxu0 0.0
    %2192 = vmatprep.subr.mxu0 0.0
    %2193 = vmatpush1.msra.mxu0 0.0
    %2194 = vmatprep.subr.mxu0 0.0
    %2195 = vmatpush1.msra.mxu0 0.0
    %2196 = vmatprep.mubr.f32.mxu0 0.0
    %2197 = vmatmul.mubr.f32.gmra.mrb[0].mxu0 %v2130
    %v2198 = vpop.f32.mrb[0].mxu0
    %v2199 = vadd.f32 %v2127, %v2198
    %v2200 = vpop.f32.mrb[0].mxu0
    %2201 = vdwg.mxu0
    %v2202 = vmax.f32 %v2199, 0.0
    %v2205 = vunpack.c.l.s4 1983009808
    %v2206 = vunpack.c.0.s8 %v2205
    %v2207 = vlaneseq
    %v2208 = vshrl.u32 %v2207, 7
    %v2209 = vsub.s32 %v2206, %v2208
    %v2210 = vrot.slane %v2202, %v2209
    %2211 = vrot.lane.b32.xlu0 %v2210, 64
    %v2212 = vpop.permute.xlu0 %2211
    %2214 = vst.msk [vmem:[#allocation2 + $0xa] sm:$0x3] %vm327, %v2212
    %s2215 = scalar_lea.vmem %s0, 46
    %v2216 = vld [vmem:[%s2215] sm:$0x3]
    %v2217 = vld [vmem:[%s2] sm:$0xff]
    %v2218 = vld [vmem:[%s2 + $0x8] sm:$0xff]
    %v2219 = vld [vmem:[%s3] sm:$0x1]
    %v2221 = vlaneseq
    %v2222 = vshrl.u32 %v2221, 7
    %v2223 = vsub.s32 0, %v2222
    %v2224 = vrot.slane %v2219, %v2223
    %v2227 = vsel %vm56, %v2216, 0
    %2229 = vmatprep.subr.mxu0 0.0
    %2230 = vmatpush1.msra.mxu0 %v2217
    %2231 = vmatprep.subr.mxu0 0.0
    %2232 = vmatpush1.msra.mxu0 %v2218
    %2233 = vmatprep.subr.mxu0 0.0
    %2234 = vmatpush1.msra.mxu0 0.0
    %2235 = vmatprep.subr.mxu0 0.0
    %2236 = vmatpush1.msra.mxu0 0.0
    %2237 = vmatprep.subr.mxu0 0.0
    %2238 = vmatpush1.msra.mxu0 0.0
    %2239 = vmatprep.subr.mxu0 0.0
    %2240 = vmatpush1.msra.mxu0 0.0
    %2241 = vmatprep.subr.mxu0 0.0
    %2242 = vmatpush1.msra.mxu0 0.0
    %2243 = vmatprep.subr.mxu0 0.0
    %2244 = vmatpush1.msra.mxu0 0.0
    %2245 = vmatprep.subr.mxu0 0.0
    %2246 = vmatpush1.msra.mxu0 0.0
    %2247 = vmatprep.subr.mxu0 0.0
    %2248 = vmatpush1.msra.mxu0 0.0
    %2249 = vmatprep.subr.mxu0 0.0
    %2250 = vmatpush1.msra.mxu0 0.0
    %2251 = vmatprep.subr.mxu0 0.0
    %2252 = vmatpush1.msra.mxu0 0.0
    %2253 = vmatprep.subr.mxu0 0.0
    %2254 = vmatpush1.msra.mxu0 0.0
    %2255 = vmatprep.subr.mxu0 0.0
    %2256 = vmatpush1.msra.mxu0 0.0
    %2257 = vmatprep.subr.mxu0 0.0
    %2258 = vmatpush1.msra.mxu0 0.0
    %2259 = vmatprep.subr.mxu0 0.0
    %2260 = vmatpush1.msra.mxu0 0.0
    %2261 = vmatprep.subr.mxu0 0.0
    %2262 = vmatpush1.msra.mxu0 0.0
    %2263 = vmatprep.subr.mxu0 0.0
    %2264 = vmatpush1.msra.mxu0 0.0
    %2265 = vmatprep.subr.mxu0 0.0
    %2266 = vmatpush1.msra.mxu0 0.0
    %2267 = vmatprep.subr.mxu0 0.0
    %2268 = vmatpush1.msra.mxu0 0.0
    %2269 = vmatprep.subr.mxu0 0.0
    %2270 = vmatpush1.msra.mxu0 0.0
    %2271 = vmatprep.subr.mxu0 0.0
    %2272 = vmatpush1.msra.mxu0 0.0
    %2273 = vmatprep.subr.mxu0 0.0
    %2274 = vmatpush1.msra.mxu0 0.0
    %2275 = vmatprep.subr.mxu0 0.0
    %2276 = vmatpush1.msra.mxu0 0.0
    %2277 = vmatprep.subr.mxu0 0.0
    %2278 = vmatpush1.msra.mxu0 0.0
    %2279 = vmatprep.subr.mxu0 0.0
    %2280 = vmatpush1.msra.mxu0 0.0
    %2281 = vmatprep.subr.mxu0 0.0
    %2282 = vmatpush1.msra.mxu0 0.0
    %2283 = vmatprep.subr.mxu0 0.0
    %2284 = vmatpush1.msra.mxu0 0.0
    %2285 = vmatprep.subr.mxu0 0.0
    %2286 = vmatpush1.msra.mxu0 0.0
    %2287 = vmatprep.subr.mxu0 0.0
    %2288 = vmatpush1.msra.mxu0 0.0
    %2289 = vmatprep.subr.mxu0 0.0
    %2290 = vmatpush1.msra.mxu0 0.0
    %2291 = vmatprep.subr.mxu0 0.0
    %2292 = vmatpush1.msra.mxu0 0.0
    %2293 = vmatprep.mubr.f32.mxu0 0.0
    %2294 = vmatmul.mubr.f32.gmra.mrb[0].mxu0 %v2227
    %v2295 = vpop.f32.mrb[0].mxu0
    %v2296 = vadd.f32 %v2224, %v2295
    %v2297 = vpop.f32.mrb[0].mxu0
    %2298 = vdwg.mxu0
    %v2299 = vmax.f32 %v2296, 0.0
    %v2302 = vunpack.c.l.s4 1983009808
    %v2303 = vunpack.c.0.s8 %v2302
    %v2304 = vlaneseq
    %v2305 = vshrl.u32 %v2304, 7
    %v2306 = vsub.s32 %v2303, %v2305
    %v2307 = vrot.slane %v2299, %v2306
    %2308 = vrot.lane.b32.xlu0 %v2307, 96
    %v2309 = vpop.permute.xlu0 %2308
    %2311 = vst.msk [vmem:[#allocation2 + $0xa] sm:$0x3] %vm425, %v2309
    %s2312 = scalar_lea.vmem %s0, 48
    %v2313 = vld [vmem:[%s2312] sm:$0x3]
    %v2314 = vld [vmem:[%s2] sm:$0xff]
    %v2315 = vld [vmem:[%s2 + $0x8] sm:$0xff]
    %v2316 = vld [vmem:[%s3] sm:$0x1]
    %v2318 = vlaneseq
    %v2319 = vshrl.u32 %v2318, 7
    %v2320 = vsub.s32 0, %v2319
    %v2321 = vrot.slane %v2316, %v2320
    %v2324 = vsel %vm56, %v2313, 0
    %2326 = vmatprep.subr.mxu0 0.0
    %2327 = vmatpush1.msra.mxu0 %v2314
    %2328 = vmatprep.subr.mxu0 0.0
    %2329 = vmatpush1.msra.mxu0 %v2315
    %2330 = vmatprep.subr.mxu0 0.0
    %2331 = vmatpush1.msra.mxu0 0.0
    %2332 = vmatprep.subr.mxu0 0.0
    %2333 = vmatpush1.msra.mxu0 0.0
    %2334 = vmatprep.subr.mxu0 0.0
    %2335 = vmatpush1.msra.mxu0 0.0
    %2336 = vmatprep.subr.mxu0 0.0
    %2337 = vmatpush1.msra.mxu0 0.0
    %2338 = vmatprep.subr.mxu0 0.0
    %2339 = vmatpush1.msra.mxu0 0.0
    %2340 = vmatprep.subr.mxu0 0.0
    %2341 = vmatpush1.msra.mxu0 0.0
    %2342 = vmatprep.subr.mxu0 0.0
    %2343 = vmatpush1.msra.mxu0 0.0
    %2344 = vmatprep.subr.mxu0 0.0
    %2345 = vmatpush1.msra.mxu0 0.0
    %2346 = vmatprep.subr.mxu0 0.0
    %2347 = vmatpush1.msra.mxu0 0.0
    %2348 = vmatprep.subr.mxu0 0.0
    %2349 = vmatpush1.msra.mxu0 0.0
    %2350 = vmatprep.subr.mxu0 0.0
    %2351 = vmatpush1.msra.mxu0 0.0
    %2352 = vmatprep.subr.mxu0 0.0
    %2353 = vmatpush1.msra.mxu0 0.0
    %2354 = vmatprep.subr.mxu0 0.0
    %2355 = vmatpush1.msra.mxu0 0.0
    %2356 = vmatprep.subr.mxu0 0.0
    %2357 = vmatpush1.msra.mxu0 0.0
    %2358 = vmatprep.subr.mxu0 0.0
    %2359 = vmatpush1.msra.mxu0 0.0
    %2360 = vmatprep.subr.mxu0 0.0
    %2361 = vmatpush1.msra.mxu0 0.0
    %2362 = vmatprep.subr.mxu0 0.0
    %2363 = vmatpush1.msra.mxu0 0.0
    %2364 = vmatprep.subr.mxu0 0.0
    %2365 = vmatpush1.msra.mxu0 0.0
    %2366 = vmatprep.subr.mxu0 0.0
    %2367 = vmatpush1.msra.mxu0 0.0
    %2368 = vmatprep.subr.mxu0 0.0
    %2369 = vmatpush1.msra.mxu0 0.0
    %2370 = vmatprep.subr.mxu0 0.0
    %2371 = vmatpush1.msra.mxu0 0.0
    %2372 = vmatprep.subr.mxu0 0.0
    %2373 = vmatpush1.msra.mxu0 0.0
    %2374 = vmatprep.subr.mxu0 0.0
    %2375 = vmatpush1.msra.mxu0 0.0
    %2376 = vmatprep.subr.mxu0 0.0
    %2377 = vmatpush1.msra.mxu0 0.0
    %2378 = vmatprep.subr.mxu0 0.0
    %2379 = vmatpush1.msra.mxu0 0.0
    %2380 = vmatprep.subr.mxu0 0.0
    %2381 = vmatpush1.msra.mxu0 0.0
    %2382 = vmatprep.subr.mxu0 0.0
    %2383 = vmatpush1.msra.mxu0 0.0
    %2384 = vmatprep.subr.mxu0 0.0
    %2385 = vmatpush1.msra.mxu0 0.0
    %2386 = vmatprep.subr.mxu0 0.0
    %2387 = vmatpush1.msra.mxu0 0.0
    %2388 = vmatprep.subr.mxu0 0.0
    %2389 = vmatpush1.msra.mxu0 0.0
    %2390 = vmatprep.mubr.f32.mxu0 0.0
    %2391 = vmatmul.mubr.f32.gmra.mrb[0].mxu0 %v2324
    %v2392 = vpop.f32.mrb[0].mxu0
    %v2393 = vadd.f32 %v2321, %v2392
    %v2394 = vpop.f32.mrb[0].mxu0
    %2395 = vdwg.mxu0
    %v2396 = vmax.f32 %v2393, 0.0
    %2397 = vst.msk [vmem:[#allocation2 + $0xc] sm:$0x3] %vm131, %v2396
    %v2398 = vld [vmem:[#allocation2] sm:$0xff]
    %v2399 = vld [vmem:[#allocation2 + $0x8] sm:$0x3f]
    %v2402 = vcombine.high %v2398, %v2398
    %v2404 = vunpack.c.l.s4 1983009808
    %v2405 = vunpack.c.0.s8 %v2404
    %v2406 = vlaneseq
    %v2407 = vshrl.u32 %v2406, 7
    %v2408 = vsub.s32 %v2405, %v2407
    %v2409 = vrot.slane %v2398, %v2408
    %v2411 = vunpack.c.l.s4 1983009808
    %v2412 = vunpack.c.0.s8 %v2411
    %v2413 = vlaneseq
    %v2414 = vshrl.u32 %v2413, 7
    %v2415 = vsub.s32 %v2412, %v2414
    %v2416 = vrot.slane %v2402, %v2415
    %v2417 = vcombine.high %v2409, %v2409
    %v2418 = vcombine.high %v2416, %v2416
    %v2419 = vcombine.high %v2399, %v2399
    %v2421 = vunpack.c.l.s4 1983009808
    %v2422 = vunpack.c.0.s8 %v2421
    %v2423 = vlaneseq
    %v2424 = vshrl.u32 %v2423, 7
    %v2425 = vsub.s32 %v2422, %v2424
    %v2426 = vrot.slane %v2399, %v2425
    %v2428 = vunpack.c.l.s4 1983009808
    %v2429 = vunpack.c.0.s8 %v2428
    %v2430 = vlaneseq
    %v2431 = vshrl.u32 %v2430, 7
    %v2432 = vsub.s32 %v2429, %v2431
    %v2433 = vrot.slane %v2419, %v2432
    %v2434 = vcombine.high %v2426, %v2426
    %v2442 = vpack.c.bf16 %v2409, %v2409
    %v2443 = vpack.c.bf16 %v2417, %v2417
    %v2444 = vpack.c.bf16 %v2416, %v2416
    %v2445 = vpack.c.bf16 %v2418, %v2418
    %v2446 = vpack.c.bf16 %v2426, %v2426
    %v2447 = vpack.c.bf16 %v2434, %v2434
    %v2448 = vpack.c.bf16 %v2433, %v2433
    %v2449 = vld [vmem:[%s4] sm:$0xff]
    %v2450 = vld [vmem:[%s4 + $0x8] sm:$0xff]
    %v2451 = vld [vmem:[%s4 + $0x10] sm:$0xff]
    %v2452 = vld [vmem:[%s4 + $0x18] sm:$0xff]
    %v2453 = vld [vmem:[%s4 + $0x20] sm:$0xff]
    %v2454 = vld [vmem:[%s4 + $0x28] sm:$0xff]
    %v2455 = vld [vmem:[%s4 + $0x30] sm:$0xff]
    %v2456 = vld [vmem:[%s4 + $0x38] sm:$0xff]
    %v2457 = vld [vmem:[%s4 + $0x40] sm:$0xff]
    %v2458 = vld [vmem:[%s4 + $0x48] sm:$0xff]
    %v2459 = vld [vmem:[%s4 + $0x50] sm:$0xff]
    %v2460 = vld [vmem:[%s4 + $0x58] sm:$0xff]
    %v2461 = vld [vmem:[%s4 + $0x60] sm:$0xff]
    %v2462 = vld [vmem:[%s4 + $0x68] sm:$0xff]
    %v2463 = vld [vmem:[%s4 + $0x70] sm:$0xff]
    %v2464 = vld [vmem:[%s4 + $0x78] sm:$0xff]
    %v2465 = vld [vmem:[%s4 + $0x80] sm:$0xff]
    %v2466 = vld [vmem:[%s4 + $0x88] sm:$0xff]
    %v2467 = vld [vmem:[%s4 + $0x90] sm:$0xff]
    %v2468 = vld [vmem:[%s4 + $0x98] sm:$0xff]
    %v2469 = vld [vmem:[%s4 + $0xa0] sm:$0xff]
    %v2470 = vld [vmem:[%s4 + $0xa8] sm:$0xff]
    %v2471 = vld [vmem:[%s4 + $0xb0] sm:$0xff]
    %v2472 = vld [vmem:[%s4 + $0xb8] sm:$0xff]
    %v2473 = vld [vmem:[%s4 + $0xc0] sm:$0xff]
    %v2474 = vld [vmem:[%s4 + $0xc8] sm:$0xff]
    %v2475 = vld [vmem:[%s4 + $0xd0] sm:$0xff]
    %v2476 = vld [vmem:[%s4 + $0xd8] sm:$0xff]
    %v2477 = vld [vmem:[%s4 + $0xe0] sm:$0xff]
    %v2478 = vld [vmem:[%s4 + $0xe8] sm:$0xff]
    %v2479 = vld [vmem:[%s4 + $0xf0] sm:$0xff]
    %v2480 = vld [vmem:[%s4 + $0xf8] sm:$0xff]
    %v2481 = vld [vmem:[%s4 + $0x100] sm:$0xff]
    %v2482 = vld [vmem:[%s4 + $0x108] sm:$0xff]
    %v2483 = vld [vmem:[%s4 + $0x110] sm:$0xff]
    %v2484 = vld [vmem:[%s4 + $0x118] sm:$0xff]
    %v2485 = vld [vmem:[%s4 + $0x120] sm:$0xff]
    %v2486 = vld [vmem:[%s4 + $0x128] sm:$0xff]
    %v2487 = vld [vmem:[%s4 + $0x130] sm:$0xff]
    %v2488 = vld [vmem:[%s4 + $0x138] sm:$0xff]
    %v2489 = vld [vmem:[%s4 + $0x140] sm:$0xff]
    %v2490 = vld [vmem:[%s4 + $0x148] sm:$0xff]
    %v2491 = vld [vmem:[%s4 + $0x150] sm:$0xff]
    %v2492 = vld [vmem:[%s4 + $0x158] sm:$0xff]
    %v2493 = vld [vmem:[%s4 + $0x160] sm:$0xff]
    %v2494 = vld [vmem:[%s4 + $0x168] sm:$0xff]
    %v2495 = vld [vmem:[%s4 + $0x170] sm:$0xff]
    %v2496 = vld [vmem:[%s4 + $0x178] sm:$0xff]
    %v2497 = vld [vmem:[%s4 + $0x180] sm:$0xff]
    %v2498 = vld [vmem:[%s4 + $0x188] sm:$0xff]
    %v2499 = vld [vmem:[%s4 + $0x190] sm:$0xff]
    %v2500 = vld [vmem:[%s4 + $0x198] sm:$0xff]
    %v2501 = vld [vmem:[%s4 + $0x1a0] sm:$0xff]
    %v2502 = vld [vmem:[%s4 + $0x1a8] sm:$0xff]
    %v2503 = vld [vmem:[%s4 + $0x1b0] sm:$0xff]
    %v2504 = vld [vmem:[%s4 + $0x1b8] sm:$0xff]
    %v2505 = vld [vmem:[%s4 + $0x1c0] sm:$0xff]
    %v2506 = vld [vmem:[%s4 + $0x1c8] sm:$0xff]
    %v2507 = vld [vmem:[%s4 + $0x1d0] sm:$0xff]
    %v2508 = vld [vmem:[%s4 + $0x1d8] sm:$0xff]
    %v2509 = vld [vmem:[%s4 + $0x1e0] sm:$0xff]
    %v2510 = vld [vmem:[%s4 + $0x1e8] sm:$0xff]
    %v2511 = vld [vmem:[%s4 + $0x1f0] sm:$0xff]
    %v2512 = vld [vmem:[%s4 + $0x1f8] sm:$0xff]
    %v2513 = vld [vmem:[%s4 + $0x200] sm:$0xff]
    %v2514 = vld [vmem:[%s4 + $0x208] sm:$0xff]
    %v2515 = vld [vmem:[%s4 + $0x210] sm:$0xff]
    %v2516 = vld [vmem:[%s4 + $0x218] sm:$0xff]
    %v2517 = vld [vmem:[%s4 + $0x220] sm:$0xff]
    %v2518 = vld [vmem:[%s4 + $0x228] sm:$0xff]
    %v2519 = vld [vmem:[%s4 + $0x230] sm:$0xff]
    %v2520 = vld [vmem:[%s4 + $0x238] sm:$0xff]
    %v2521 = vld [vmem:[%s4 + $0x240] sm:$0xff]
    %v2522 = vld [vmem:[%s4 + $0x248] sm:$0xff]
    %v2523 = vld [vmem:[%s4 + $0x250] sm:$0xff]
    %v2524 = vld [vmem:[%s4 + $0x258] sm:$0xff]
    %v2525 = vld [vmem:[%s4 + $0x260] sm:$0xff]
    %v2526 = vld [vmem:[%s4 + $0x268] sm:$0xff]
    %v2527 = vld [vmem:[%s4 + $0x270] sm:$0xff]
    %v2528 = vld [vmem:[%s4 + $0x278] sm:$0xff]
    %v2529 = vld [vmem:[%s4 + $0x280] sm:$0xff]
    %v2530 = vld [vmem:[%s4 + $0x288] sm:$0xff]
    %v2531 = vld [vmem:[%s4 + $0x290] sm:$0xff]
    %v2532 = vld [vmem:[%s4 + $0x298] sm:$0xff]
    %v2533 = vld [vmem:[%s4 + $0x2a0] sm:$0xff]
    %v2534 = vld [vmem:[%s4 + $0x2a8] sm:$0xff]
    %v2535 = vld [vmem:[%s4 + $0x2b0] sm:$0xff]
    %v2536 = vld [vmem:[%s4 + $0x2b8] sm:$0xff]
    %v2537 = vld [vmem:[%s4 + $0x2c0] sm:$0xff]
    %v2538 = vld [vmem:[%s4 + $0x2c8] sm:$0xff]
    %v2539 = vld [vmem:[%s4 + $0x2d0] sm:$0xff]
    %v2540 = vld [vmem:[%s4 + $0x2d8] sm:$0xff]
    %v2541 = vld [vmem:[%s4 + $0x2e0] sm:$0xff]
    %v2542 = vld [vmem:[%s4 + $0x2e8] sm:$0xff]
    %v2543 = vld [vmem:[%s4 + $0x2f0] sm:$0xff]
    %v2544 = vld [vmem:[%s4 + $0x2f8] sm:$0xff]
    %v2545 = vld [vmem:[%s4 + $0x300] sm:$0xff]
    %v2546 = vld [vmem:[%s4 + $0x308] sm:$0xff]
    %v2547 = vld [vmem:[%s4 + $0x310] sm:$0xff]
    %v2548 = vld [vmem:[%s4 + $0x318] sm:$0xff]
    %v2549 = vld [vmem:[%s5] sm:$0x3]
    %v2551 = vlaneseq
    %v2552 = vshrl.u32 %v2551, 7
    %v2553 = vsub.s32 0, %v2552
    %v2554 = vrot.slane %v2549, %v2553
    %v2555 = vlaneseq
    %v2556 = vshrl.u32 %v2555, 7
    %v2557 = vsub.s32 1, %v2556
    %v2558 = vrot.slane %v2549, %v2557
    %v2661 = vunpack.c.l.b16 %v2449
    %v2662 = vunpack.c.h.b16 %v2449
    %v2663 = vunpack.c.l.b16 %v2450
    %v2664 = vunpack.c.h.b16 %v2450
    %v2665 = vunpack.c.l.b16 %v2451
    %v2666 = vunpack.c.h.b16 %v2451
    %v2667 = vunpack.c.l.b16 %v2452
    %v2668 = vunpack.c.h.b16 %v2452
    %v2669 = vunpack.c.l.b16 %v2453
    %v2670 = vunpack.c.h.b16 %v2453
    %v2671 = vunpack.c.l.b16 %v2454
    %v2672 = vunpack.c.h.b16 %v2454
    %v2673 = vunpack.c.l.b16 %v2455
    %v2674 = vunpack.c.h.b16 %v2455
    %v2675 = vunpack.c.l.b16 %v2456
    %v2676 = vunpack.c.h.b16 %v2456
    %v2677 = vunpack.c.l.b16 %v2457
    %v2678 = vunpack.c.h.b16 %v2457
    %v2679 = vunpack.c.l.b16 %v2458
    %v2680 = vunpack.c.h.b16 %v2458
    %v2681 = vunpack.c.l.b16 %v2459
    %v2682 = vunpack.c.h.b16 %v2459
    %v2683 = vunpack.c.l.b16 %v2460
    %v2684 = vunpack.c.h.b16 %v2460
    %v2685 = vunpack.c.l.b16 %v2461
    %v2686 = vunpack.c.h.b16 %v2461
    %v2687 = vunpack.c.l.b16 %v2462
    %v2688 = vunpack.c.h.b16 %v2462
    %v2689 = vunpack.c.l.b16 %v2463
    %v2690 = vunpack.c.h.b16 %v2463
    %v2691 = vunpack.c.l.b16 %v2464
    %v2692 = vunpack.c.h.b16 %v2464
    %v2693 = vunpack.c.l.b16 %v2465
    %v2694 = vunpack.c.h.b16 %v2465
    %v2695 = vunpack.c.l.b16 %v2466
    %v2696 = vunpack.c.h.b16 %v2466
    %v2697 = vunpack.c.l.b16 %v2467
    %v2698 = vunpack.c.h.b16 %v2467
    %v2699 = vunpack.c.l.b16 %v2468
    %v2700 = vunpack.c.h.b16 %v2468
    %v2701 = vunpack.c.l.b16 %v2469
    %v2702 = vunpack.c.h.b16 %v2469
    %v2703 = vunpack.c.l.b16 %v2470
    %v2704 = vunpack.c.h.b16 %v2470
    %v2705 = vunpack.c.l.b16 %v2471
    %v2706 = vunpack.c.h.b16 %v2471
    %v2707 = vunpack.c.l.b16 %v2472
    %v2708 = vunpack.c.h.b16 %v2472
    %v2709 = vunpack.c.l.b16 %v2473
    %v2710 = vunpack.c.h.b16 %v2473
    %v2711 = vunpack.c.l.b16 %v2474
    %v2712 = vunpack.c.h.b16 %v2474
    %v2713 = vunpack.c.l.b16 %v2475
    %v2714 = vunpack.c.h.b16 %v2475
    %v2715 = vunpack.c.l.b16 %v2476
    %v2716 = vunpack.c.h.b16 %v2476
    %v2717 = vunpack.c.l.b16 %v2477
    %v2718 = vunpack.c.h.b16 %v2477
    %v2719 = vunpack.c.l.b16 %v2478
    %v2720 = vunpack.c.h.b16 %v2478
    %v2721 = vunpack.c.l.b16 %v2479
    %v2722 = vunpack.c.h.b16 %v2479
    %v2723 = vunpack.c.l.b16 %v2480
    %v2724 = vunpack.c.h.b16 %v2480
    %v2725 = vunpack.c.l.b16 %v2481
    %v2726 = vunpack.c.h.b16 %v2481
    %v2727 = vunpack.c.l.b16 %v2482
    %v2728 = vunpack.c.h.b16 %v2482
    %v2729 = vunpack.c.l.b16 %v2483
    %v2730 = vunpack.c.h.b16 %v2483
    %v2731 = vunpack.c.l.b16 %v2484
    %v2732 = vunpack.c.h.b16 %v2484
    %v2733 = vunpack.c.l.b16 %v2485
    %v2734 = vunpack.c.h.b16 %v2485
    %v2735 = vunpack.c.l.b16 %v2486
    %v2736 = vunpack.c.h.b16 %v2486
    %v2737 = vunpack.c.l.b16 %v2487
    %v2738 = vunpack.c.h.b16 %v2487
    %v2739 = vunpack.c.l.b16 %v2488
    %v2740 = vunpack.c.h.b16 %v2488
    %v2741 = vunpack.c.l.b16 %v2489
    %v2742 = vunpack.c.h.b16 %v2489
    %v2743 = vunpack.c.l.b16 %v2490
    %v2744 = vunpack.c.h.b16 %v2490
    %v2745 = vunpack.c.l.b16 %v2491
    %v2746 = vunpack.c.h.b16 %v2491
    %v2747 = vunpack.c.l.b16 %v2492
    %v2748 = vunpack.c.h.b16 %v2492
    %v2749 = vunpack.c.l.b16 %v2493
    %v2750 = vunpack.c.h.b16 %v2493
    %v2751 = vunpack.c.l.b16 %v2494
    %v2752 = vunpack.c.h.b16 %v2494
    %v2753 = vunpack.c.l.b16 %v2495
    %v2754 = vunpack.c.h.b16 %v2495
    %v2755 = vunpack.c.l.b16 %v2496
    %v2756 = vunpack.c.h.b16 %v2496
    %v2757 = vunpack.c.l.b16 %v2497
    %v2758 = vunpack.c.h.b16 %v2497
    %v2759 = vunpack.c.l.b16 %v2498
    %v2760 = vunpack.c.h.b16 %v2498
    %v2761 = vunpack.c.l.b16 %v2499
    %v2762 = vunpack.c.h.b16 %v2499
    %v2763 = vunpack.c.l.b16 %v2500
    %v2764 = vunpack.c.h.b16 %v2500
    %v2765 = vunpack.c.l.b16 %v2501
    %v2766 = vunpack.c.h.b16 %v2501
    %v2767 = vunpack.c.l.b16 %v2502
    %v2768 = vunpack.c.h.b16 %v2502
    %v2769 = vunpack.c.l.b16 %v2503
    %v2770 = vunpack.c.h.b16 %v2503
    %v2771 = vunpack.c.l.b16 %v2504
    %v2772 = vunpack.c.h.b16 %v2504
    %v2773 = vunpack.c.l.b16 %v2505
    %v2774 = vunpack.c.h.b16 %v2505
    %v2775 = vunpack.c.l.b16 %v2506
    %v2776 = vunpack.c.h.b16 %v2506
    %v2777 = vunpack.c.l.b16 %v2507
    %v2778 = vunpack.c.h.b16 %v2507
    %v2779 = vunpack.c.l.b16 %v2508
    %v2780 = vunpack.c.h.b16 %v2508
    %v2781 = vunpack.c.l.b16 %v2509
    %v2782 = vunpack.c.h.b16 %v2509
    %v2783 = vunpack.c.l.b16 %v2510
    %v2784 = vunpack.c.h.b16 %v2510
    %v2785 = vunpack.c.l.b16 %v2511
    %v2786 = vunpack.c.h.b16 %v2511
    %v2787 = vunpack.c.l.b16 %v2512
    %v2788 = vunpack.c.h.b16 %v2512
    %v2789 = vunpack.c.l.b16 %v2513
    %v2790 = vunpack.c.h.b16 %v2513
    %v2791 = vunpack.c.l.b16 %v2514
    %v2792 = vunpack.c.h.b16 %v2514
    %v2793 = vunpack.c.l.b16 %v2515
    %v2794 = vunpack.c.h.b16 %v2515
    %v2795 = vunpack.c.l.b16 %v2516
    %v2796 = vunpack.c.h.b16 %v2516
    %v2797 = vunpack.c.l.b16 %v2517
    %v2798 = vunpack.c.h.b16 %v2517
    %v2799 = vunpack.c.l.b16 %v2518
    %v2800 = vunpack.c.h.b16 %v2518
    %v2801 = vunpack.c.l.b16 %v2519
    %v2802 = vunpack.c.h.b16 %v2519
    %v2803 = vunpack.c.l.b16 %v2520
    %v2804 = vunpack.c.h.b16 %v2520
    %v2805 = vunpack.c.l.b16 %v2521
    %v2806 = vunpack.c.h.b16 %v2521
    %v2807 = vunpack.c.l.b16 %v2522
    %v2808 = vunpack.c.h.b16 %v2522
    %v2809 = vunpack.c.l.b16 %v2523
    %v2810 = vunpack.c.h.b16 %v2523
    %v2811 = vunpack.c.l.b16 %v2524
    %v2812 = vunpack.c.h.b16 %v2524
    %v2813 = vunpack.c.l.b16 %v2525
    %v2814 = vunpack.c.h.b16 %v2525
    %v2815 = vunpack.c.l.b16 %v2526
    %v2816 = vunpack.c.h.b16 %v2526
    %v2817 = vunpack.c.l.b16 %v2527
    %v2818 = vunpack.c.h.b16 %v2527
    %v2819 = vunpack.c.l.b16 %v2528
    %v2820 = vunpack.c.h.b16 %v2528
    %v2821 = vunpack.c.l.b16 %v2529
    %v2822 = vunpack.c.h.b16 %v2529
    %v2823 = vunpack.c.l.b16 %v2530
    %v2824 = vunpack.c.h.b16 %v2530
    %v2825 = vunpack.c.l.b16 %v2531
    %v2826 = vunpack.c.h.b16 %v2531
    %v2827 = vunpack.c.l.b16 %v2532
    %v2828 = vunpack.c.h.b16 %v2532
    %v2829 = vunpack.c.l.b16 %v2533
    %v2830 = vunpack.c.h.b16 %v2533
    %v2831 = vunpack.c.l.b16 %v2534
    %v2832 = vunpack.c.h.b16 %v2534
    %v2833 = vunpack.c.l.b16 %v2535
    %v2834 = vunpack.c.h.b16 %v2535
    %v2835 = vunpack.c.l.b16 %v2536
    %v2836 = vunpack.c.h.b16 %v2536
    %v2837 = vunpack.c.l.b16 %v2537
    %v2838 = vunpack.c.h.b16 %v2537
    %v2839 = vunpack.c.l.b16 %v2538
    %v2840 = vunpack.c.h.b16 %v2538
    %v2841 = vunpack.c.l.b16 %v2539
    %v2842 = vunpack.c.h.b16 %v2539
    %v2843 = vunpack.c.l.b16 %v2540
    %v2844 = vunpack.c.h.b16 %v2540
    %v2845 = vunpack.c.l.b16 %v2541
    %v2846 = vunpack.c.h.b16 %v2541
    %v2847 = vunpack.c.l.b16 %v2542
    %v2848 = vunpack.c.h.b16 %v2542
    %v2849 = vunpack.c.l.b16 %v2543
    %v2850 = vunpack.c.h.b16 %v2543
    %v2851 = vunpack.c.l.b16 %v2544
    %v2852 = vunpack.c.h.b16 %v2544
    %v2853 = vunpack.c.l.b16 %v2545
    %v2854 = vunpack.c.h.b16 %v2545
    %v2855 = vunpack.c.l.b16 %v2546
    %v2856 = vunpack.c.h.b16 %v2546
    %v2857 = vunpack.c.l.b16 %v2547
    %v2858 = vunpack.c.h.b16 %v2547
    %v2859 = vunpack.c.l.b16 %v2548
    %v2860 = vunpack.c.h.b16 %v2548
    %v2861 = vpack.c.b16 %v2663, %v2661
    %v2862 = vpack.c.b16 %v2664, %v2662
    %v2863 = vpack.c.b16 %v2667, %v2665
    %v2864 = vpack.c.b16 %v2668, %v2666
    %v2865 = vpack.c.b16 %v2671, %v2669
    %v2866 = vpack.c.b16 %v2672, %v2670
    %v2867 = vpack.c.b16 %v2675, %v2673
    %v2868 = vpack.c.b16 %v2676, %v2674
    %v2869 = vpack.c.b16 %v2679, %v2677
    %v2870 = vpack.c.b16 %v2680, %v2678
    %v2871 = vpack.c.b16 %v2683, %v2681
    %v2872 = vpack.c.b16 %v2684, %v2682
    %v2873 = vpack.c.b16 %v2687, %v2685
    %v2874 = vpack.c.b16 %v2688, %v2686
    %v2875 = vpack.c.b16 %v2691, %v2689
    %v2876 = vpack.c.b16 %v2692, %v2690
    %v2877 = vpack.c.b16 %v2695, %v2693
    %v2878 = vpack.c.b16 %v2696, %v2694
    %v2879 = vpack.c.b16 %v2699, %v2697
    %v2880 = vpack.c.b16 %v2700, %v2698
    %v2881 = vpack.c.b16 %v2703, %v2701
    %v2882 = vpack.c.b16 %v2704, %v2702
    %v2883 = vpack.c.b16 %v2707, %v2705
    %v2884 = vpack.c.b16 %v2708, %v2706
    %v2885 = vpack.c.b16 %v2711, %v2709
    %v2886 = vpack.c.b16 %v2712, %v2710
    %v2887 = vpack.c.b16 %v2715, %v2713
    %v2888 = vpack.c.b16 %v2716, %v2714
    %v2889 = vpack.c.b16 %v2719, %v2717
    %v2890 = vpack.c.b16 %v2720, %v2718
    %v2891 = vpack.c.b16 %v2723, %v2721
    %v2892 = vpack.c.b16 %v2724, %v2722
    %v2893 = vpack.c.b16 %v2727, %v2725
    %v2894 = vpack.c.b16 %v2728, %v2726
    %v2895 = vpack.c.b16 %v2731, %v2729
    %v2896 = vpack.c.b16 %v2732, %v2730
    %v2897 = vpack.c.b16 %v2735, %v2733
    %v2898 = vpack.c.b16 %v2736, %v2734
    %v2899 = vpack.c.b16 %v2739, %v2737
    %v2900 = vpack.c.b16 %v2740, %v2738
    %v2901 = vpack.c.b16 %v2743, %v2741
    %v2902 = vpack.c.b16 %v2744, %v2742
    %v2903 = vpack.c.b16 %v2747, %v2745
    %v2904 = vpack.c.b16 %v2748, %v2746
    %v2905 = vpack.c.b16 %v2751, %v2749
    %v2906 = vpack.c.b16 %v2752, %v2750
    %v2907 = vpack.c.b16 %v2755, %v2753
    %v2908 = vpack.c.b16 %v2756, %v2754
    %v2909 = vpack.c.b16 %v2759, %v2757
    %v2910 = vpack.c.b16 %v2760, %v2758
    %v2911 = vpack.c.b16 %v2763, %v2761
    %v2912 = vpack.c.b16 %v2764, %v2762
    %v2913 = vpack.c.b16 %v2767, %v2765
    %v2914 = vpack.c.b16 %v2768, %v2766
    %v2915 = vpack.c.b16 %v2771, %v2769
    %v2916 = vpack.c.b16 %v2772, %v2770
    %v2917 = vpack.c.b16 %v2775, %v2773
    %v2918 = vpack.c.b16 %v2776, %v2774
    %v2919 = vpack.c.b16 %v2779, %v2777
    %v2920 = vpack.c.b16 %v2780, %v2778
    %v2921 = vpack.c.b16 %v2783, %v2781
    %v2922 = vpack.c.b16 %v2784, %v2782
    %v2923 = vpack.c.b16 %v2787, %v2785
    %v2924 = vpack.c.b16 %v2788, %v2786
    %v2925 = vpack.c.b16 %v2791, %v2789
    %v2926 = vpack.c.b16 %v2792, %v2790
    %v2927 = vpack.c.b16 %v2795, %v2793
    %v2928 = vpack.c.b16 %v2796, %v2794
    %v2929 = vpack.c.b16 %v2799, %v2797
    %v2930 = vpack.c.b16 %v2800, %v2798
    %v2931 = vpack.c.b16 %v2803, %v2801
    %v2932 = vpack.c.b16 %v2804, %v2802
    %v2933 = vpack.c.b16 %v2807, %v2805
    %v2934 = vpack.c.b16 %v2808, %v2806
    %v2935 = vpack.c.b16 %v2811, %v2809
    %v2936 = vpack.c.b16 %v2812, %v2810
    %v2937 = vpack.c.b16 %v2815, %v2813
    %v2938 = vpack.c.b16 %v2816, %v2814
    %v2939 = vpack.c.b16 %v2819, %v2817
    %v2940 = vpack.c.b16 %v2820, %v2818
    %v2941 = vpack.c.b16 %v2823, %v2821
    %v2942 = vpack.c.b16 %v2824, %v2822
    %v2943 = vpack.c.b16 %v2827, %v2825
    %v2944 = vpack.c.b16 %v2828, %v2826
    %v2945 = vpack.c.b16 %v2831, %v2829
    %v2946 = vpack.c.b16 %v2832, %v2830
    %v2947 = vpack.c.b16 %v2835, %v2833
    %v2948 = vpack.c.b16 %v2836, %v2834
    %v2949 = vpack.c.b16 %v2839, %v2837
    %v2950 = vpack.c.b16 %v2840, %v2838
    %v2951 = vpack.c.b16 %v2843, %v2841
    %v2952 = vpack.c.b16 %v2844, %v2842
    %v2953 = vpack.c.b16 %v2847, %v2845
    %v2954 = vpack.c.b16 %v2848, %v2846
    %v2955 = vpack.c.b16 %v2851, %v2849
    %v2956 = vpack.c.b16 %v2852, %v2850
    %v2957 = vpack.c.b16 %v2855, %v2853
    %v2958 = vpack.c.b16 %v2856, %v2854
    %v2959 = vpack.c.b16 %v2859, %v2857
    %v2960 = vpack.c.b16 %v2860, %v2858
    %vm3061 = vcmask 261120
    %v3063 = vsel %vm3061, %v2448, 0
    %3065 = vmatprep.subr.bf16.mxu0 %v2862
    %3066 = vmatpush1.bf16.msra.mxu0 %v2861
    %3067 = vmatprep.subr.bf16.mxu0 %v2864
    %3068 = vmatpush1.bf16.msra.mxu0 %v2863
    %3069 = vmatprep.subr.bf16.mxu0 %v2866
    %3070 = vmatpush1.bf16.msra.mxu0 %v2865
    %3071 = vmatprep.subr.bf16.mxu0 %v2868
    %3072 = vmatpush1.bf16.msra.mxu0 %v2867
    %3073 = vmatprep.subr.bf16.mxu0 %v2870
    %3074 = vmatpush1.bf16.msra.mxu0 %v2869
    %3075 = vmatprep.subr.bf16.mxu0 %v2872
    %3076 = vmatpush1.bf16.msra.mxu0 %v2871
    %3077 = vmatprep.subr.bf16.mxu0 %v2874
    %3078 = vmatpush1.bf16.msra.mxu0 %v2873
    %3079 = vmatprep.subr.bf16.mxu0 %v2876
    %3080 = vmatpush1.bf16.msra.mxu0 %v2875
    %3081 = vmatprep.subr.bf16.mxu0 %v2878
    %3082 = vmatpush1.bf16.msra.mxu0 %v2877
    %3083 = vmatprep.subr.bf16.mxu0 %v2880
    %3084 = vmatpush1.bf16.msra.mxu0 %v2879
    %3085 = vmatprep.subr.bf16.mxu0 %v2882
    %3086 = vmatpush1.bf16.msra.mxu0 %v2881
    %3087 = vmatprep.subr.bf16.mxu0 %v2884
    %3088 = vmatpush1.bf16.msra.mxu0 %v2883
    %3089 = vmatprep.subr.bf16.mxu0 %v2886
    %3090 = vmatpush1.bf16.msra.mxu0 %v2885
    %3091 = vmatprep.subr.bf16.mxu0 %v2888
    %3092 = vmatpush1.bf16.msra.mxu0 %v2887
    %3093 = vmatprep.subr.bf16.mxu0 %v2890
    %3094 = vmatpush1.bf16.msra.mxu0 %v2889
    %3095 = vmatprep.subr.bf16.mxu0 %v2892
    %3096 = vmatpush1.bf16.msra.mxu0 %v2891
    %3097 = vmatprep.mubr.bf16.mxu0 %v2443
    %3098 = vmatmul.mubr.bf16.gmra.mrb[0].mxu0 %v2442
    %v3099 = vpop.f32.mrb[0].mxu0
    %v3100 = vadd.f32 %v2554, %v3099
    %v3101 = vpop.f32.mrb[0].mxu0
    %v3102 = vadd.f32 %v2558, %v3101
    %v3103 = vpop.f32.mrb[0].mxu0
    %v3104 = vpop.f32.mrb[0].mxu0
    %3105 = vdwg.mxu0
    %3106 = vmatprep.subr.bf16.mxu0 %v2894
    %3107 = vmatpush1.bf16.msra.mxu0 %v2893
    %3108 = vmatprep.subr.bf16.mxu0 %v2896
    %3109 = vmatpush1.bf16.msra.mxu0 %v2895
    %3110 = vmatprep.subr.bf16.mxu0 %v2898
    %3111 = vmatpush1.bf16.msra.mxu0 %v2897
    %3112 = vmatprep.subr.bf16.mxu0 %v2900
    %3113 = vmatpush1.bf16.msra.mxu0 %v2899
    %3114 = vmatprep.subr.bf16.mxu0 %v2902
    %3115 = vmatpush1.bf16.msra.mxu0 %v2901
    %3116 = vmatprep.subr.bf16.mxu0 %v2904
    %3117 = vmatpush1.bf16.msra.mxu0 %v2903
    %3118 = vmatprep.subr.bf16.mxu0 %v2906
    %3119 = vmatpush1.bf16.msra.mxu0 %v2905
    %3120 = vmatprep.subr.bf16.mxu0 %v2908
    %3121 = vmatpush1.bf16.msra.mxu0 %v2907
    %3122 = vmatprep.subr.bf16.mxu0 %v2910
    %3123 = vmatpush1.bf16.msra.mxu0 %v2909
    %3124 = vmatprep.subr.bf16.mxu0 %v2912
    %3125 = vmatpush1.bf16.msra.mxu0 %v2911
    %3126 = vmatprep.subr.bf16.mxu0 %v2914
    %3127 = vmatpush1.bf16.msra.mxu0 %v2913
    %3128 = vmatprep.subr.bf16.mxu0 %v2916
    %3129 = vmatpush1.bf16.msra.mxu0 %v2915
    %3130 = vmatprep.subr.bf16.mxu0 %v2918
    %3131 = vmatpush1.bf16.msra.mxu0 %v2917
    %3132 = vmatprep.subr.bf16.mxu0 %v2920
    %3133 = vmatpush1.bf16.msra.mxu0 %v2919
    %3134 = vmatprep.subr.bf16.mxu0 %v2922
    %3135 = vmatpush1.bf16.msra.mxu0 %v2921
    %3136 = vmatprep.subr.bf16.mxu0 %v2924
    %3137 = vmatpush1.bf16.msra.mxu0 %v2923
    %3138 = vmatprep.mubr.bf16.mxu0 %v2445
    %3139 = vmatmul.mubr.bf16.gmra.mrb[0].mxu0 %v2444
    %v3140 = vpop.f32.mrb[0].mxu0
    %v3141 = vadd.f32 %v3100, %v3140
    %v3142 = vpop.f32.mrb[0].mxu0
    %v3143 = vadd.f32 %v3102, %v3142
    %v3144 = vpop.f32.mrb[0].mxu0
    %v3145 = vpop.f32.mrb[0].mxu0
    %3146 = vdwg.mxu0
    %3147 = vmatprep.subr.bf16.mxu0 %v2926
    %3148 = vmatpush1.bf16.msra.mxu0 %v2925
    %3149 = vmatprep.subr.bf16.mxu0 %v2928
    %3150 = vmatpush1.bf16.msra.mxu0 %v2927
    %3151 = vmatprep.subr.bf16.mxu0 %v2930
    %3152 = vmatpush1.bf16.msra.mxu0 %v2929
    %3153 = vmatprep.subr.bf16.mxu0 %v2932
    %3154 = vmatpush1.bf16.msra.mxu0 %v2931
    %3155 = vmatprep.subr.bf16.mxu0 %v2934
    %3156 = vmatpush1.bf16.msra.mxu0 %v2933
    %3157 = vmatprep.subr.bf16.mxu0 %v2936
    %3158 = vmatpush1.bf16.msra.mxu0 %v2935
    %3159 = vmatprep.subr.bf16.mxu0 %v2938
    %3160 = vmatpush1.bf16.msra.mxu0 %v2937
    %3161 = vmatprep.subr.bf16.mxu0 %v2940
    %3162 = vmatpush1.bf16.msra.mxu0 %v2939
    %3163 = vmatprep.subr.bf16.mxu0 %v2942
    %3164 = vmatpush1.bf16.msra.mxu0 %v2941
    %3165 = vmatprep.subr.bf16.mxu0 %v2944
    %3166 = vmatpush1.bf16.msra.mxu0 %v2943
    %3167 = vmatprep.subr.bf16.mxu0 %v2946
    %3168 = vmatpush1.bf16.msra.mxu0 %v2945
    %3169 = vmatprep.subr.bf16.mxu0 %v2948
    %3170 = vmatpush1.bf16.msra.mxu0 %v2947
    %3171 = vmatprep.subr.bf16.mxu0 %v2950
    %3172 = vmatpush1.bf16.msra.mxu0 %v2949
    %3173 = vmatprep.subr.bf16.mxu0 %v2952
    %3174 = vmatpush1.bf16.msra.mxu0 %v2951
    %3175 = vmatprep.subr.bf16.mxu0 %v2954
    %3176 = vmatpush1.bf16.msra.mxu0 %v2953
    %3177 = vmatprep.subr.bf16.mxu0 %v2956
    %3178 = vmatpush1.bf16.msra.mxu0 %v2955
    %3179 = vmatprep.mubr.bf16.mxu0 %v2447
    %3180 = vmatmul.mubr.bf16.gmra.mrb[0].mxu0 %v2446
    %v3181 = vpop.f32.mrb[0].mxu0
    %v3182 = vadd.f32 %v3141, %v3181
    %v3183 = vpop.f32.mrb[0].mxu0
    %v3184 = vadd.f32 %v3143, %v3183
    %v3185 = vpop.f32.mrb[0].mxu0
    %v3186 = vpop.f32.mrb[0].mxu0
    %3187 = vdwg.mxu0
    %3188 = vmatprep.subr.bf16.mxu0 %v2958
    %3189 = vmatpush1.bf16.msra.mxu0 %v2957
    %3190 = vmatprep.subr.bf16.mxu0 %v2960
    %3191 = vmatpush1.bf16.msra.mxu0 %v2959
    %3192 = vmatprep.subr.bf16.mxu0 0
    %3193 = vmatpush1.bf16.msra.mxu0 0
    %3194 = vmatprep.subr.bf16.mxu0 0
    %3195 = vmatpush1.bf16.msra.mxu0 0
    %3196 = vmatprep.subr.bf16.mxu0 0
    %3197 = vmatpush1.bf16.msra.mxu0 0
    %3198 = vmatprep.subr.bf16.mxu0 0
    %3199 = vmatpush1.bf16.msra.mxu0 0
    %3200 = vmatprep.subr.bf16.mxu0 0
    %3201 = vmatpush1.bf16.msra.mxu0 0
    %3202 = vmatprep.subr.bf16.mxu0 0
    %3203 = vmatpush1.bf16.msra.mxu0 0
    %3204 = vmatprep.subr.bf16.mxu0 0
    %3205 = vmatpush1.bf16.msra.mxu0 0
    %3206 = vmatprep.subr.bf16.mxu0 0
    %3207 = vmatpush1.bf16.msra.mxu0 0
    %3208 = vmatprep.subr.bf16.mxu0 0
    %3209 = vmatpush1.bf16.msra.mxu0 0
    %3210 = vmatprep.subr.bf16.mxu0 0
    %3211 = vmatpush1.bf16.msra.mxu0 0
    %3212 = vmatprep.subr.bf16.mxu0 0
    %3213 = vmatpush1.bf16.msra.mxu0 0
    %3214 = vmatprep.subr.bf16.mxu0 0
    %3215 = vmatpush1.bf16.msra.mxu0 0
    %3216 = vmatprep.subr.bf16.mxu0 0
    %3217 = vmatpush1.bf16.msra.mxu0 0
    %3218 = vmatprep.subr.bf16.mxu0 0
    %3219 = vmatpush1.bf16.msra.mxu0 0
    %3220 = vmatprep.mubr.bf16.mxu0 0
    %3221 = vmatmul.mubr.bf16.gmra.mrb[0].mxu0 %v3063
    %v3222 = vpop.f32.mrb[0].mxu0
    %v3223 = vadd.f32 %v3182, %v3222
    %v3224 = vpop.f32.mrb[0].mxu0
    %v3225 = vadd.f32 %v3184, %v3224
    %v3226 = vpop.f32.mrb[0].mxu0
    %v3227 = vpop.f32.mrb[0].mxu0
    %3228 = vdwg.mxu0
    %v3229 = vmax.f32 %v3223, 0.0
    %v3230 = vmax.f32 %v3225, 0.0
    %v3231 = vpack.c.bf16 %v3229, %v3229
    %v3232 = vpack.c.bf16 %v3230, %v3230
    %v3233 = vld [vmem:[%s6] sm:$0xf]
    %v3234 = vld [vmem:[%s6 + $0x4] sm:$0xf]
    %v3235 = vld [vmem:[%s6 + $0x8] sm:$0xf]
    %v3236 = vld [vmem:[%s6 + $0xc] sm:$0xf]
    %v3237 = vld [vmem:[%s6 + $0x10] sm:$0xf]
    %v3238 = vld [vmem:[%s6 + $0x14] sm:$0xf]
    %v3239 = vld [vmem:[%s6 + $0x18] sm:$0xf]
    %v3240 = vld [vmem:[%s6 + $0x1c] sm:$0xf]
    %v3241 = vld [vmem:[%s6 + $0x20] sm:$0xf]
    %v3242 = vld [vmem:[%s6 + $0x24] sm:$0xf]
    %v3243 = vld [vmem:[%s6 + $0x28] sm:$0xf]
    %v3244 = vld [vmem:[%s6 + $0x2c] sm:$0xf]
    %v3245 = vld [vmem:[%s6 + $0x30] sm:$0xf]
    %v3246 = vld [vmem:[%s6 + $0x34] sm:$0xf]
    %v3247 = vld [vmem:[%s6 + $0x38] sm:$0xf]
    %v3248 = vld [vmem:[%s6 + $0x3c] sm:$0xf]
    %v3249 = vld [vmem:[%s6 + $0x40] sm:$0xf]
    %v3250 = vld [vmem:[%s6 + $0x44] sm:$0xf]
    %v3251 = vld [vmem:[%s6 + $0x48] sm:$0xf]
    %v3252 = vld [vmem:[%s6 + $0x4c] sm:$0xf]
    %v3253 = vld [vmem:[%s6 + $0x50] sm:$0xf]
    %v3254 = vld [vmem:[%s6 + $0x54] sm:$0xf]
    %v3255 = vld [vmem:[%s6 + $0x58] sm:$0xf]
    %v3256 = vld [vmem:[%s6 + $0x5c] sm:$0xf]
    %v3257 = vld [vmem:[%s6 + $0x60] sm:$0xf]
    %v3258 = vld [vmem:[%s6 + $0x64] sm:$0xf]
    %v3259 = vld [vmem:[%s6 + $0x68] sm:$0xf]
    %v3260 = vld [vmem:[%s6 + $0x6c] sm:$0xf]
    %v3261 = vld [vmem:[%s6 + $0x70] sm:$0xf]
    %v3262 = vld [vmem:[%s6 + $0x74] sm:$0xf]
    %v3263 = vld [vmem:[%s6 + $0x78] sm:$0xf]
    %v3264 = vld [vmem:[%s6 + $0x7c] sm:$0xf]
    %v3265 = vld [vmem:[%s7] sm:$0x1]
    %v3267 = vlaneseq
    %v3268 = vshrl.u32 %v3267, 7
    %v3269 = vsub.s32 0, %v3268
    %v3270 = vrot.slane %v3265, %v3269
    %v3304 = vunpack.c.l.b16 %v3233
    %v3305 = vunpack.c.l.b16 %v3234
    %v3306 = vunpack.c.l.b16 %v3235
    %v3307 = vunpack.c.l.b16 %v3236
    %v3308 = vunpack.c.l.b16 %v3237
    %v3309 = vunpack.c.l.b16 %v3238
    %v3310 = vunpack.c.l.b16 %v3239
    %v3311 = vunpack.c.l.b16 %v3240
    %v3312 = vunpack.c.l.b16 %v3241
    %v3313 = vunpack.c.l.b16 %v3242
    %v3314 = vunpack.c.l.b16 %v3243
    %v3315 = vunpack.c.l.b16 %v3244
    %v3316 = vunpack.c.l.b16 %v3245
    %v3317 = vunpack.c.l.b16 %v3246
    %v3318 = vunpack.c.l.b16 %v3247
    %v3319 = vunpack.c.l.b16 %v3248
    %v3320 = vunpack.c.l.b16 %v3249
    %v3321 = vunpack.c.l.b16 %v3250
    %v3322 = vunpack.c.l.b16 %v3251
    %v3323 = vunpack.c.l.b16 %v3252
    %v3324 = vunpack.c.l.b16 %v3253
    %v3325 = vunpack.c.l.b16 %v3254
    %v3326 = vunpack.c.l.b16 %v3255
    %v3327 = vunpack.c.l.b16 %v3256
    %v3328 = vunpack.c.l.b16 %v3257
    %v3329 = vunpack.c.l.b16 %v3258
    %v3330 = vunpack.c.l.b16 %v3259
    %v3331 = vunpack.c.l.b16 %v3260
    %v3332 = vunpack.c.l.b16 %v3261
    %v3333 = vunpack.c.l.b16 %v3262
    %v3334 = vunpack.c.l.b16 %v3263
    %v3335 = vunpack.c.l.b16 %v3264
    %v3336 = vpack.c.b16 %v3305, %v3304
    %v3337 = vpack.c.b16 %v3307, %v3306
    %v3338 = vpack.c.b16 %v3309, %v3308
    %v3339 = vpack.c.b16 %v3311, %v3310
    %v3340 = vpack.c.b16 %v3313, %v3312
    %v3341 = vpack.c.b16 %v3315, %v3314
    %v3342 = vpack.c.b16 %v3317, %v3316
    %v3343 = vpack.c.b16 %v3319, %v3318
    %v3344 = vpack.c.b16 %v3321, %v3320
    %v3345 = vpack.c.b16 %v3323, %v3322
    %v3346 = vpack.c.b16 %v3325, %v3324
    %v3347 = vpack.c.b16 %v3327, %v3326
    %v3348 = vpack.c.b16 %v3329, %v3328
    %v3349 = vpack.c.b16 %v3331, %v3330
    %v3350 = vpack.c.b16 %v3333, %v3332
    %v3351 = vpack.c.b16 %v3335, %v3334
    %3368 = vmatprep.subr.bf16.mxu0 0
    %3369 = vmatpush1.bf16.msra.mxu0 %v3336
    %3370 = vmatprep.subr.bf16.mxu0 0
    %3371 = vmatpush1.bf16.msra.mxu0 %v3337
    %3372 = vmatprep.subr.bf16.mxu0 0
    %3373 = vmatpush1.bf16.msra.mxu0 %v3338
    %3374 = vmatprep.subr.bf16.mxu0 0
    %3375 = vmatpush1.bf16.msra.mxu0 %v3339
    %3376 = vmatprep.subr.bf16.mxu0 0
    %3377 = vmatpush1.bf16.msra.mxu0 %v3340
    %3378 = vmatprep.subr.bf16.mxu0 0
    %3379 = vmatpush1.bf16.msra.mxu0 %v3341
    %3380 = vmatprep.subr.bf16.mxu0 0
    %3381 = vmatpush1.bf16.msra.mxu0 %v3342
    %3382 = vmatprep.subr.bf16.mxu0 0
    %3383 = vmatpush1.bf16.msra.mxu0 %v3343
    %3384 = vmatprep.subr.bf16.mxu0 0
    %3385 = vmatpush1.bf16.msra.mxu0 %v3344
    %3386 = vmatprep.subr.bf16.mxu0 0
    %3387 = vmatpush1.bf16.msra.mxu0 %v3345
    %3388 = vmatprep.subr.bf16.mxu0 0
    %3389 = vmatpush1.bf16.msra.mxu0 %v3346
    %3390 = vmatprep.subr.bf16.mxu0 0
    %3391 = vmatpush1.bf16.msra.mxu0 %v3347
    %3392 = vmatprep.subr.bf16.mxu0 0
    %3393 = vmatpush1.bf16.msra.mxu0 %v3348
    %3394 = vmatprep.subr.bf16.mxu0 0
    %3395 = vmatpush1.bf16.msra.mxu0 %v3349
    %3396 = vmatprep.subr.bf16.mxu0 0
    %3397 = vmatpush1.bf16.msra.mxu0 %v3350
    %3398 = vmatprep.subr.bf16.mxu0 0
    %3399 = vmatpush1.bf16.msra.mxu0 %v3351
    %3400 = vmatprep.mubr.bf16.mxu0 %v3232
    %3401 = vmatmul.mubr.bf16.gmra.mrb[0].mxu0 %v3231
    %v3402 = vpop.f32.mrb[0].mxu0
    %v3403 = vadd.f32 %v3270, %v3402
    %v3404 = vpop.f32.mrb[0].mxu0
    %v3405 = vpop.f32.mrb[0].mxu0
    %v3406 = vpop.f32.mrb[0].mxu0
    %3407 = vdwg.mxu0
    %v3408 = vmax.f32 %v3403, 0.0
    %v3409 = vpack.c.bf16 %v3408, %v3408
    %v3410 = vld [vmem:[%s8] sm:$0xff]
    %v3411 = vld [vmem:[%s8 + $0x8] sm:$0xff]
    %v3412 = vld [vmem:[%s8 + $0x10] sm:$0xff]
    %v3413 = vld [vmem:[%s8 + $0x18] sm:$0xff]
    %v3414 = vld [vmem:[%s8 + $0x20] sm:$0xff]
    %v3415 = vld [vmem:[%s8 + $0x28] sm:$0xff]
    %v3416 = vld [vmem:[%s8 + $0x30] sm:$0xff]
    %v3417 = vld [vmem:[%s8 + $0x38] sm:$0xff]
    %v3418 = vld [vmem:[%s8 + $0x40] sm:$0xff]
    %v3419 = vld [vmem:[%s8 + $0x48] sm:$0xff]
    %v3420 = vld [vmem:[%s8 + $0x50] sm:$0xff]
    %v3421 = vld [vmem:[%s8 + $0x58] sm:$0xff]
    %v3422 = vld [vmem:[%s8 + $0x60] sm:$0xff]
    %v3423 = vld [vmem:[%s8 + $0x68] sm:$0xff]
    %v3424 = vld [vmem:[%s8 + $0x70] sm:$0xff]
    %v3425 = vld [vmem:[%s8 + $0x78] sm:$0xff]
    %v3426 = vld [vmem:[%s1] sm:$0x3]
    %v3427 = vld [vmem:[%s9] sm:$0xff]
    %v3428 = vld [vmem:[%s9 + $0x8] sm:$0xff]
    %v3429 = vld [vmem:[%s9 + $0x10] sm:$0xff]
    %v3430 = vld [vmem:[%s9 + $0x18] sm:$0xff]
    %vm3431 = vcmask 64512
    %v3433 = vsel %vm3431, %v3426, 0
    %3435 = vmatprep.subr.mxu0 %v3428
    %3436 = vmatpush1.msra.mxu0 %v3427
    %3437 = vmatprep.subr.mxu0 0.0
    %3438 = vmatpush1.msra.mxu0 0.0
    %3439 = vmatprep.subr.mxu0 0.0
    %3440 = vmatpush1.msra.mxu0 0.0
    %3441 = vmatprep.subr.mxu0 0.0
    %3442 = vmatpush1.msra.mxu0 0.0
    %3443 = vmatprep.subr.mxu0 0.0
    %3444 = vmatpush1.msra.mxu0 0.0
    %3445 = vmatprep.subr.mxu0 0.0
    %3446 = vmatpush1.msra.mxu0 0.0
    %3447 = vmatprep.subr.mxu0 0.0
    %3448 = vmatpush1.msra.mxu0 0.0
    %3449 = vmatprep.subr.mxu0 0.0
    %3450 = vmatpush1.msra.mxu0 0.0
    %3451 = vmatprep.subr.mxu0 0.0
    %3452 = vmatpush1.msra.mxu0 0.0
    %3453 = vmatprep.subr.mxu0 0.0
    %3454 = vmatpush1.msra.mxu0 0.0
    %3455 = vmatprep.subr.mxu0 0.0
    %3456 = vmatpush1.msra.mxu0 0.0
    %3457 = vmatprep.subr.mxu0 0.0
    %3458 = vmatpush1.msra.mxu0 0.0
    %3459 = vmatprep.subr.mxu0 0.0
    %3460 = vmatpush1.msra.mxu0 0.0
    %3461 = vmatprep.subr.mxu0 0.0
    %3462 = vmatpush1.msra.mxu0 0.0
    %3463 = vmatprep.subr.mxu0 0.0
    %3464 = vmatpush1.msra.mxu0 0.0
    %3465 = vmatprep.subr.mxu0 0.0
    %3466 = vmatpush1.msra.mxu0 0.0
    %3467 = vmatprep.subr.mxu0 0.0
    %3468 = vmatpush1.msra.mxu0 0.0
    %3469 = vmatprep.subr.mxu0 0.0
    %3470 = vmatpush1.msra.mxu0 0.0
    %3471 = vmatprep.subr.mxu0 0.0
    %3472 = vmatpush1.msra.mxu0 0.0
    %3473 = vmatprep.subr.mxu0 0.0
    %3474 = vmatpush1.msra.mxu0 0.0
    %3475 = vmatprep.subr.mxu0 0.0
    %3476 = vmatpush1.msra.mxu0 0.0
    %3477 = vmatprep.subr.mxu0 0.0
    %3478 = vmatpush1.msra.mxu0 0.0
    %3479 = vmatprep.subr.mxu0 0.0
    %3480 = vmatpush1.msra.mxu0 0.0
    %3481 = vmatprep.subr.mxu0 0.0
    %3482 = vmatpush1.msra.mxu0 0.0
    %3483 = vmatprep.subr.mxu0 0.0
    %3484 = vmatpush1.msra.mxu0 0.0
    %3485 = vmatprep.subr.mxu0 0.0
    %3486 = vmatpush1.msra.mxu0 0.0
    %3487 = vmatprep.subr.mxu0 0.0
    %3488 = vmatpush1.msra.mxu0 0.0
    %3489 = vmatprep.subr.mxu0 0.0
    %3490 = vmatpush1.msra.mxu0 0.0
    %3491 = vmatprep.subr.mxu0 0.0
    %3492 = vmatpush1.msra.mxu0 0.0
    %3493 = vmatprep.subr.mxu0 0.0
    %3494 = vmatpush1.msra.mxu0 0.0
    %3495 = vmatprep.subr.mxu0 0.0
    %3496 = vmatpush1.msra.mxu0 0.0
    %3497 = vmatprep.subr.mxu0 0.0
    %3498 = vmatpush1.msra.mxu0 0.0
    %3499 = vmatprep.mubr.f32.mxu0 0.0
    %3500 = vmatmul.mubr.f32.gmra.mrb[0].mxu0 %v3433
    %v3501 = vpop.f32.mrb[0].mxu0
    %v3502 = vadd.f32 0.0, %v3501
    %v3503 = vpop.f32.mrb[0].mxu0
    %v3504 = vadd.f32 0.0, %v3503
    %3505 = vdwg.mxu0
    %3506 = vmatprep.subr.mxu0 %v3430
    %3507 = vmatpush1.msra.mxu0 %v3429
    %3508 = vmatprep.subr.mxu0 0.0
    %3509 = vmatpush1.msra.mxu0 0.0
    %3510 = vmatprep.subr.mxu0 0.0
    %3511 = vmatpush1.msra.mxu0 0.0
    %3512 = vmatprep.subr.mxu0 0.0
    %3513 = vmatpush1.msra.mxu0 0.0
    %3514 = vmatprep.subr.mxu0 0.0
    %3515 = vmatpush1.msra.mxu0 0.0
    %3516 = vmatprep.subr.mxu0 0.0
    %3517 = vmatpush1.msra.mxu0 0.0
    %3518 = vmatprep.subr.mxu0 0.0
    %3519 = vmatpush1.msra.mxu0 0.0
    %3520 = vmatprep.subr.mxu0 0.0
    %3521 = vmatpush1.msra.mxu0 0.0
    %3522 = vmatprep.subr.mxu0 0.0
    %3523 = vmatpush1.msra.mxu0 0.0
    %3524 = vmatprep.subr.mxu0 0.0
    %3525 = vmatpush1.msra.mxu0 0.0
    %3526 = vmatprep.subr.mxu0 0.0
    %3527 = vmatpush1.msra.mxu0 0.0
    %3528 = vmatprep.subr.mxu0 0.0
    %3529 = vmatpush1.msra.mxu0 0.0
    %3530 = vmatprep.subr.mxu0 0.0
    %3531 = vmatpush1.msra.mxu0 0.0
    %3532 = vmatprep.subr.mxu0 0.0
    %3533 = vmatpush1.msra.mxu0 0.0
    %3534 = vmatprep.subr.mxu0 0.0
    %3535 = vmatpush1.msra.mxu0 0.0
    %3536 = vmatprep.subr.mxu0 0.0
    %3537 = vmatpush1.msra.mxu0 0.0
    %3538 = vmatprep.subr.mxu0 0.0
    %3539 = vmatpush1.msra.mxu0 0.0
    %3540 = vmatprep.subr.mxu0 0.0
    %3541 = vmatpush1.msra.mxu0 0.0
    %3542 = vmatprep.subr.mxu0 0.0
    %3543 = vmatpush1.msra.mxu0 0.0
    %3544 = vmatprep.subr.mxu0 0.0
    %3545 = vmatpush1.msra.mxu0 0.0
    %3546 = vmatprep.subr.mxu0 0.0
    %3547 = vmatpush1.msra.mxu0 0.0
    %3548 = vmatprep.subr.mxu0 0.0
    %3549 = vmatpush1.msra.mxu0 0.0
    %3550 = vmatprep.subr.mxu0 0.0
    %3551 = vmatpush1.msra.mxu0 0.0
    %3552 = vmatprep.subr.mxu0 0.0
    %3553 = vmatpush1.msra.mxu0 0.0
    %3554 = vmatprep.subr.mxu0 0.0
    %3555 = vmatpush1.msra.mxu0 0.0
    %3556 = vmatprep.subr.mxu0 0.0
    %3557 = vmatpush1.msra.mxu0 0.0
    %3558 = vmatprep.subr.mxu0 0.0
    %3559 = vmatpush1.msra.mxu0 0.0
    %3560 = vmatprep.subr.mxu0 0.0
    %3561 = vmatpush1.msra.mxu0 0.0
    %3562 = vmatprep.subr.mxu0 0.0
    %3563 = vmatpush1.msra.mxu0 0.0
    %3564 = vmatprep.subr.mxu0 0.0
    %3565 = vmatpush1.msra.mxu0 0.0
    %3566 = vmatprep.subr.mxu0 0.0
    %3567 = vmatpush1.msra.mxu0 0.0
    %3568 = vmatprep.subr.mxu0 0.0
    %3569 = vmatpush1.msra.mxu0 0.0
    %3570 = vmatprep.mubr.f32.mxu0 0.0
    %3571 = vmatmul.mubr.f32.gmra.mrb[0].mxu0 %v3433
    %v3572 = vpop.f32.mrb[0].mxu0
    %v3573 = vadd.f32 0.0, %v3572
    %v3574 = vpop.f32.mrb[0].mxu0
    %v3575 = vadd.f32 0.0, %v3574
    %3576 = vdwg.mxu0
    %v3593 = vunpack.c.l.b16 %v3410
    %v3594 = vunpack.c.h.b16 %v3410
    %v3595 = vunpack.c.l.b16 %v3411
    %v3596 = vunpack.c.h.b16 %v3411
    %v3597 = vunpack.c.l.b16 %v3412
    %v3598 = vunpack.c.h.b16 %v3412
    %v3599 = vunpack.c.l.b16 %v3413
    %v3600 = vunpack.c.h.b16 %v3413
    %v3601 = vunpack.c.l.b16 %v3414
    %v3602 = vunpack.c.h.b16 %v3414
    %v3603 = vunpack.c.l.b16 %v3415
    %v3604 = vunpack.c.h.b16 %v3415
    %v3605 = vunpack.c.l.b16 %v3416
    %v3606 = vunpack.c.h.b16 %v3416
    %v3607 = vunpack.c.l.b16 %v3417
    %v3608 = vunpack.c.h.b16 %v3417
    %v3609 = vunpack.c.l.b16 %v3418
    %v3610 = vunpack.c.h.b16 %v3418
    %v3611 = vunpack.c.l.b16 %v3419
    %v3612 = vunpack.c.h.b16 %v3419
    %v3613 = vunpack.c.l.b16 %v3420
    %v3614 = vunpack.c.h.b16 %v3420
    %v3615 = vunpack.c.l.b16 %v3421
    %v3616 = vunpack.c.h.b16 %v3421
    %v3617 = vunpack.c.l.b16 %v3422
    %v3618 = vunpack.c.h.b16 %v3422
    %v3619 = vunpack.c.l.b16 %v3423
    %v3620 = vunpack.c.h.b16 %v3423
    %v3621 = vunpack.c.l.b16 %v3424
    %v3622 = vunpack.c.h.b16 %v3424
    %v3623 = vunpack.c.l.b16 %v3425
    %v3624 = vunpack.c.h.b16 %v3425
    %v3625 = vpack.c.b16 %v3597, %v3593
    %v3626 = vpack.c.b16 %v3598, %v3594
    %v3627 = vpack.c.b16 %v3599, %v3595
    %v3628 = vpack.c.b16 %v3600, %v3596
    %v3629 = vpack.c.b16 %v3605, %v3601
    %v3630 = vpack.c.b16 %v3606, %v3602
    %v3631 = vpack.c.b16 %v3607, %v3603
    %v3632 = vpack.c.b16 %v3608, %v3604
    %v3633 = vpack.c.b16 %v3613, %v3609
    %v3634 = vpack.c.b16 %v3614, %v3610
    %v3635 = vpack.c.b16 %v3615, %v3611
    %v3636 = vpack.c.b16 %v3616, %v3612
    %v3637 = vpack.c.b16 %v3621, %v3617
    %v3638 = vpack.c.b16 %v3622, %v3618
    %v3639 = vpack.c.b16 %v3623, %v3619
    %v3640 = vpack.c.b16 %v3624, %v3620
    %vm3657 = vcmask 523264
    %v3659 = vsel %vm3657, %v3409, 0
    %3661 = vmatprep.subr.bf16.mxu0 %v3626
    %3662 = vmatpush1.bf16.msra.mxu0 %v3625
    %3663 = vmatprep.subr.bf16.mxu0 %v3630
    %3664 = vmatpush1.bf16.msra.mxu0 %v3629
    %3665 = vmatprep.subr.bf16.mxu0 %v3634
    %3666 = vmatpush1.bf16.msra.mxu0 %v3633
    %3667 = vmatprep.subr.bf16.mxu0 %v3638
    %3668 = vmatpush1.bf16.msra.mxu0 %v3637
    %3669 = vmatprep.subr.bf16.mxu0 0
    %3670 = vmatpush1.bf16.msra.mxu0 0
    %3671 = vmatprep.subr.bf16.mxu0 0
    %3672 = vmatpush1.bf16.msra.mxu0 0
    %3673 = vmatprep.subr.bf16.mxu0 0
    %3674 = vmatpush1.bf16.msra.mxu0 0
    %3675 = vmatprep.subr.bf16.mxu0 0
    %3676 = vmatpush1.bf16.msra.mxu0 0
    %3677 = vmatprep.subr.bf16.mxu0 0
    %3678 = vmatpush1.bf16.msra.mxu0 0
    %3679 = vmatprep.subr.bf16.mxu0 0
    %3680 = vmatpush1.bf16.msra.mxu0 0
    %3681 = vmatprep.subr.bf16.mxu0 0
    %3682 = vmatpush1.bf16.msra.mxu0 0
    %3683 = vmatprep.subr.bf16.mxu0 0
    %3684 = vmatpush1.bf16.msra.mxu0 0
    %3685 = vmatprep.subr.bf16.mxu0 0
    %3686 = vmatpush1.bf16.msra.mxu0 0
    %3687 = vmatprep.subr.bf16.mxu0 0
    %3688 = vmatpush1.bf16.msra.mxu0 0
    %3689 = vmatprep.subr.bf16.mxu0 0
    %3690 = vmatpush1.bf16.msra.mxu0 0
    %3691 = vmatprep.subr.bf16.mxu0 0
    %3692 = vmatpush1.bf16.msra.mxu0 0
    %3693 = vmatprep.mubr.bf16.mxu0 0
    %3694 = vmatmul.mubr.bf16.gmra.mrb[0].mxu0 %v3659
    %v3695 = vpop.f32.mrb[0].mxu0
    %v3696 = vadd.f32 %v3502, %v3695
    %v3697 = vpop.f32.mrb[0].mxu0
    %v3698 = vadd.f32 %v3504, %v3697
    %v3699 = vpop.f32.mrb[0].mxu0
    %v3700 = vpop.f32.mrb[0].mxu0
    %3701 = vdwg.mxu0
    %3702 = vmatprep.subr.bf16.mxu0 %v3628
    %3703 = vmatpush1.bf16.msra.mxu0 %v3627
    %3704 = vmatprep.subr.bf16.mxu0 %v3632
    %3705 = vmatpush1.bf16.msra.mxu0 %v3631
    %3706 = vmatprep.subr.bf16.mxu0 %v3636
    %3707 = vmatpush1.bf16.msra.mxu0 %v3635
    %3708 = vmatprep.subr.bf16.mxu0 %v3640
    %3709 = vmatpush1.bf16.msra.mxu0 %v3639
    %3710 = vmatprep.subr.bf16.mxu0 0
    %3711 = vmatpush1.bf16.msra.mxu0 0
    %3712 = vmatprep.subr.bf16.mxu0 0
    %3713 = vmatpush1.bf16.msra.mxu0 0
    %3714 = vmatprep.subr.bf16.mxu0 0
    %3715 = vmatpush1.bf16.msra.mxu0 0
    %3716 = vmatprep.subr.bf16.mxu0 0
    %3717 = vmatpush1.bf16.msra.mxu0 0
    %3718 = vmatprep.subr.bf16.mxu0 0
    %3719 = vmatpush1.bf16.msra.mxu0 0
    %3720 = vmatprep.subr.bf16.mxu0 0
    %3721 = vmatpush1.bf16.msra.mxu0 0
    %3722 = vmatprep.subr.bf16.mxu0 0
    %3723 = vmatpush1.bf16.msra.mxu0 0
    %3724 = vmatprep.subr.bf16.mxu0 0
    %3725 = vmatpush1.bf16.msra.mxu0 0
    %3726 = vmatprep.subr.bf16.mxu0 0
    %3727 = vmatpush1.bf16.msra.mxu0 0
    %3728 = vmatprep.subr.bf16.mxu0 0
    %3729 = vmatpush1.bf16.msra.mxu0 0
    %3730 = vmatprep.subr.bf16.mxu0 0
    %3731 = vmatpush1.bf16.msra.mxu0 0
    %3732 = vmatprep.subr.bf16.mxu0 0
    %3733 = vmatpush1.bf16.msra.mxu0 0
    %3734 = vmatprep.mubr.bf16.mxu0 0
    %3735 = vmatmul.mubr.bf16.gmra.mrb[0].mxu0 %v3659
    %v3736 = vpop.f32.mrb[0].mxu0
    %v3737 = vadd.f32 %v3573, %v3736
    %v3738 = vpop.f32.mrb[0].mxu0
    %v3739 = vadd.f32 %v3575, %v3738
    %v3740 = vpop.f32.mrb[0].mxu0
    %v3741 = vpop.f32.mrb[0].mxu0
    %3742 = vdwg.mxu0
    %v3743 = vld [vmem:[%s10] sm:$0xf]
    %v3745 = vlaneseq
    %v3746 = vshrl.u32 %v3745, 7
    %v3747 = vsub.s32 0, %v3746
    %v3748 = vrot.slane %v3743, %v3747
    %v3749 = vlaneseq
    %v3750 = vshrl.u32 %v3749, 7
    %v3751 = vsub.s32 1, %v3750
    %v3752 = vrot.slane %v3743, %v3751
    %v3753 = vlaneseq
    %v3754 = vshrl.u32 %v3753, 7
    %v3755 = vsub.s32 2, %v3754
    %v3756 = vrot.slane %v3743, %v3755
    %v3757 = vlaneseq
    %v3758 = vshrl.u32 %v3757, 7
    %v3759 = vsub.s32 3, %v3758
    %v3760 = vrot.slane %v3743, %v3759
    %v3765 = vadd.f32 %v3696, %v3748
    %v3766 = vadd.f32 %v3698, %v3752
    %v3767 = vadd.f32 %v3737, %v3756
    %v3768 = vadd.f32 %v3739, %v3760
    %v3769 = vmax.f32 %v3765, 0.0
    %v3770 = vmax.f32 %v3766, 0.0
    %v3771 = vmax.f32 %v3767, 0.0
    %v3772 = vmax.f32 %v3768, 0.0
    %v3773 = vld [vmem:[%s11] sm:$0xff]
    %v3774 = vld [vmem:[%s11 + $0x8] sm:$0xff]
    %v3775 = vld [vmem:[%s11 + $0x10] sm:$0xff]
    %v3776 = vld [vmem:[%s11 + $0x18] sm:$0xff]
    %v3777 = vld [vmem:[%s11 + $0x20] sm:$0xff]
    %v3778 = vld [vmem:[%s11 + $0x28] sm:$0xff]
    %v3779 = vld [vmem:[%s11 + $0x30] sm:$0xff]
    %v3780 = vld [vmem:[%s11 + $0x38] sm:$0xff]
    %v3781 = vld [vmem:[%s11 + $0x40] sm:$0xff]
    %v3782 = vld [vmem:[%s11 + $0x48] sm:$0xff]
    %v3783 = vld [vmem:[%s11 + $0x50] sm:$0xff]
    %v3784 = vld [vmem:[%s11 + $0x58] sm:$0xff]
    %v3785 = vld [vmem:[%s11 + $0x60] sm:$0xff]
    %v3786 = vld [vmem:[%s11 + $0x68] sm:$0xff]
    %v3787 = vld [vmem:[%s11 + $0x70] sm:$0xff]
    %v3788 = vld [vmem:[%s11 + $0x78] sm:$0xff]
    %v3789 = vld [vmem:[%s11 + $0x80] sm:$0xff]
    %v3790 = vld [vmem:[%s11 + $0x88] sm:$0xff]
    %v3791 = vld [vmem:[%s11 + $0x90] sm:$0xff]
    %v3792 = vld [vmem:[%s11 + $0x98] sm:$0xff]
    %v3793 = vld [vmem:[%s11 + $0xa0] sm:$0xff]
    %v3794 = vld [vmem:[%s11 + $0xa8] sm:$0xff]
    %v3795 = vld [vmem:[%s11 + $0xb0] sm:$0xff]
    %v3796 = vld [vmem:[%s11 + $0xb8] sm:$0xff]
    %v3797 = vld [vmem:[%s11 + $0xc0] sm:$0xff]
    %v3798 = vld [vmem:[%s11 + $0xc8] sm:$0xff]
    %v3799 = vld [vmem:[%s11 + $0xd0] sm:$0xff]
    %v3800 = vld [vmem:[%s11 + $0xd8] sm:$0xff]
    %v3801 = vld [vmem:[%s11 + $0xe0] sm:$0xff]
    %v3802 = vld [vmem:[%s11 + $0xe8] sm:$0xff]
    %v3803 = vld [vmem:[%s11 + $0xf0] sm:$0xff]
    %v3804 = vld [vmem:[%s11 + $0xf8] sm:$0xff]
    %v3805 = vld [vmem:[%s11 + $0x100] sm:$0xff]
    %v3806 = vld [vmem:[%s11 + $0x108] sm:$0xff]
    %v3807 = vld [vmem:[%s11 + $0x110] sm:$0xff]
    %v3808 = vld [vmem:[%s11 + $0x118] sm:$0xff]
    %v3809 = vld [vmem:[%s11 + $0x120] sm:$0xff]
    %v3810 = vld [vmem:[%s11 + $0x128] sm:$0xff]
    %v3811 = vld [vmem:[%s11 + $0x130] sm:$0xff]
    %v3812 = vld [vmem:[%s11 + $0x138] sm:$0xff]
    %v3813 = vld [vmem:[%s11 + $0x140] sm:$0xff]
    %v3814 = vld [vmem:[%s11 + $0x148] sm:$0xff]
    %v3815 = vld [vmem:[%s11 + $0x150] sm:$0xff]
    %v3816 = vld [vmem:[%s11 + $0x158] sm:$0xff]
    %v3817 = vld [vmem:[%s11 + $0x160] sm:$0xff]
    %v3818 = vld [vmem:[%s11 + $0x168] sm:$0xff]
    %v3819 = vld [vmem:[%s11 + $0x170] sm:$0xff]
    %v3820 = vld [vmem:[%s11 + $0x178] sm:$0xff]
    %v3821 = vld [vmem:[%s11 + $0x180] sm:$0xff]
    %v3822 = vld [vmem:[%s11 + $0x188] sm:$0xff]
    %v3823 = vld [vmem:[%s11 + $0x190] sm:$0xff]
    %v3824 = vld [vmem:[%s11 + $0x198] sm:$0xff]
    %v3825 = vld [vmem:[%s11 + $0x1a0] sm:$0xff]
    %v3826 = vld [vmem:[%s11 + $0x1a8] sm:$0xff]
    %v3827 = vld [vmem:[%s11 + $0x1b0] sm:$0xff]
    %v3828 = vld [vmem:[%s11 + $0x1b8] sm:$0xff]
    %v3829 = vld [vmem:[%s11 + $0x1c0] sm:$0xff]
    %v3830 = vld [vmem:[%s11 + $0x1c8] sm:$0xff]
    %v3831 = vld [vmem:[%s11 + $0x1d0] sm:$0xff]
    %v3832 = vld [vmem:[%s11 + $0x1d8] sm:$0xff]
    %v3833 = vld [vmem:[%s11 + $0x1e0] sm:$0xff]
    %v3834 = vld [vmem:[%s11 + $0x1e8] sm:$0xff]
    %v3835 = vld [vmem:[%s11 + $0x1f0] sm:$0xff]
    %v3836 = vld [vmem:[%s11 + $0x1f8] sm:$0xff]
    %v3837 = vld [vmem:[%s12] sm:$0x1]
    %v3839 = vlaneseq
    %v3840 = vshrl.u32 %v3839, 7
    %v3841 = vsub.s32 0, %v3840
    %v3842 = vrot.slane %v3837, %v3841
    %3844 = vmatprep.subr.mxu0 0.0
    %3845 = vmatpush1.msra.mxu0 %v3773
    %3846 = vmatprep.subr.mxu0 0.0
    %3847 = vmatpush1.msra.mxu0 %v3774
    %3848 = vmatprep.subr.mxu0 0.0
    %3849 = vmatpush1.msra.mxu0 %v3775
    %3850 = vmatprep.subr.mxu0 0.0
    %3851 = vmatpush1.msra.mxu0 %v3776
    %3852 = vmatprep.subr.mxu0 0.0
    %3853 = vmatpush1.msra.mxu0 %v3777
    %3854 = vmatprep.subr.mxu0 0.0
    %3855 = vmatpush1.msra.mxu0 %v3778
    %3856 = vmatprep.subr.mxu0 0.0
    %3857 = vmatpush1.msra.mxu0 %v3779
    %3858 = vmatprep.subr.mxu0 0.0
    %3859 = vmatpush1.msra.mxu0 %v3780
    %3860 = vmatprep.subr.mxu0 0.0
    %3861 = vmatpush1.msra.mxu0 %v3781
    %3862 = vmatprep.subr.mxu0 0.0
    %3863 = vmatpush1.msra.mxu0 %v3782
    %3864 = vmatprep.subr.mxu0 0.0
    %3865 = vmatpush1.msra.mxu0 %v3783
    %3866 = vmatprep.subr.mxu0 0.0
    %3867 = vmatpush1.msra.mxu0 %v3784
    %3868 = vmatprep.subr.mxu0 0.0
    %3869 = vmatpush1.msra.mxu0 %v3785
    %3870 = vmatprep.subr.mxu0 0.0
    %3871 = vmatpush1.msra.mxu0 %v3786
    %3872 = vmatprep.subr.mxu0 0.0
    %3873 = vmatpush1.msra.mxu0 %v3787
    %3874 = vmatprep.subr.mxu0 0.0
    %3875 = vmatpush1.msra.mxu0 %v3788
    %3876 = vmatprep.subr.mxu0 0.0
    %3877 = vmatpush1.msra.mxu0 %v3789
    %3878 = vmatprep.subr.mxu0 0.0
    %3879 = vmatpush1.msra.mxu0 %v3790
    %3880 = vmatprep.subr.mxu0 0.0
    %3881 = vmatpush1.msra.mxu0 %v3791
    %3882 = vmatprep.subr.mxu0 0.0
    %3883 = vmatpush1.msra.mxu0 %v3792
    %3884 = vmatprep.subr.mxu0 0.0
    %3885 = vmatpush1.msra.mxu0 %v3793
    %3886 = vmatprep.subr.mxu0 0.0
    %3887 = vmatpush1.msra.mxu0 %v3794
    %3888 = vmatprep.subr.mxu0 0.0
    %3889 = vmatpush1.msra.mxu0 %v3795
    %3890 = vmatprep.subr.mxu0 0.0
    %3891 = vmatpush1.msra.mxu0 %v3796
    %3892 = vmatprep.subr.mxu0 0.0
    %3893 = vmatpush1.msra.mxu0 %v3797
    %3894 = vmatprep.subr.mxu0 0.0
    %3895 = vmatpush1.msra.mxu0 %v3798
    %3896 = vmatprep.subr.mxu0 0.0
    %3897 = vmatpush1.msra.mxu0 %v3799
    %3898 = vmatprep.subr.mxu0 0.0
    %3899 = vmatpush1.msra.mxu0 %v3800
    %3900 = vmatprep.subr.mxu0 0.0
    %3901 = vmatpush1.msra.mxu0 %v3801
    %3902 = vmatprep.subr.mxu0 0.0
    %3903 = vmatpush1.msra.mxu0 %v3802
    %3904 = vmatprep.subr.mxu0 0.0
    %3905 = vmatpush1.msra.mxu0 %v3803
    %3906 = vmatprep.subr.mxu0 0.0
    %3907 = vmatpush1.msra.mxu0 %v3804
    %3908 = vmatprep.mubr.f32.mxu0 %v3770
    %3909 = vmatmul.mubr.f32.gmra.mrb[0].mxu0 %v3769
    %v3910 = vpop.f32.mrb[0].mxu0
    %v3911 = vadd.f32 %v3842, %v3910
    %v3912 = vpop.f32.mrb[0].mxu0
    %3913 = vdwg.mxu0
    %3914 = vmatprep.subr.mxu0 0.0
    %3915 = vmatpush1.msra.mxu0 %v3805
    %3916 = vmatprep.subr.mxu0 0.0
    %3917 = vmatpush1.msra.mxu0 %v3806
    %3918 = vmatprep.subr.mxu0 0.0
    %3919 = vmatpush1.msra.mxu0 %v3807
    %3920 = vmatprep.subr.mxu0 0.0
    %3921 = vmatpush1.msra.mxu0 %v3808
    %3922 = vmatprep.subr.mxu0 0.0
    %3923 = vmatpush1.msra.mxu0 %v3809
    %3924 = vmatprep.subr.mxu0 0.0
    %3925 = vmatpush1.msra.mxu0 %v3810
    %3926 = vmatprep.subr.mxu0 0.0
    %3927 = vmatpush1.msra.mxu0 %v3811
    %3928 = vmatprep.subr.mxu0 0.0
    %3929 = vmatpush1.msra.mxu0 %v3812
    %3930 = vmatprep.subr.mxu0 0.0
    %3931 = vmatpush1.msra.mxu0 %v3813
    %3932 = vmatprep.subr.mxu0 0.0
    %3933 = vmatpush1.msra.mxu0 %v3814
    %3934 = vmatprep.subr.mxu0 0.0
    %3935 = vmatpush1.msra.mxu0 %v3815
    %3936 = vmatprep.subr.mxu0 0.0
    %3937 = vmatpush1.msra.mxu0 %v3816
    %3938 = vmatprep.subr.mxu0 0.0
    %3939 = vmatpush1.msra.mxu0 %v3817
    %3940 = vmatprep.subr.mxu0 0.0
    %3941 = vmatpush1.msra.mxu0 %v3818
    %3942 = vmatprep.subr.mxu0 0.0
    %3943 = vmatpush1.msra.mxu0 %v3819
    %3944 = vmatprep.subr.mxu0 0.0
    %3945 = vmatpush1.msra.mxu0 %v3820
    %3946 = vmatprep.subr.mxu0 0.0
    %3947 = vmatpush1.msra.mxu0 %v3821
    %3948 = vmatprep.subr.mxu0 0.0
    %3949 = vmatpush1.msra.mxu0 %v3822
    %3950 = vmatprep.subr.mxu0 0.0
    %3951 = vmatpush1.msra.mxu0 %v3823
    %3952 = vmatprep.subr.mxu0 0.0
    %3953 = vmatpush1.msra.mxu0 %v3824
    %3954 = vmatprep.subr.mxu0 0.0
    %3955 = vmatpush1.msra.mxu0 %v3825
    %3956 = vmatprep.subr.mxu0 0.0
    %3957 = vmatpush1.msra.mxu0 %v3826
    %3958 = vmatprep.subr.mxu0 0.0
    %3959 = vmatpush1.msra.mxu0 %v3827
    %3960 = vmatprep.subr.mxu0 0.0
    %3961 = vmatpush1.msra.mxu0 %v3828
    %3962 = vmatprep.subr.mxu0 0.0
    %3963 = vmatpush1.msra.mxu0 %v3829
    %3964 = vmatprep.subr.mxu0 0.0
    %3965 = vmatpush1.msra.mxu0 %v3830
    %3966 = vmatprep.subr.mxu0 0.0
    %3967 = vmatpush1.msra.mxu0 %v3831
    %3968 = vmatprep.subr.mxu0 0.0
    %3969 = vmatpush1.msra.mxu0 %v3832
    %3970 = vmatprep.subr.mxu0 0.0
    %3971 = vmatpush1.msra.mxu0 %v3833
    %3972 = vmatprep.subr.mxu0 0.0
    %3973 = vmatpush1.msra.mxu0 %v3834
    %3974 = vmatprep.subr.mxu0 0.0
    %3975 = vmatpush1.msra.mxu0 %v3835
    %3976 = vmatprep.subr.mxu0 0.0
    %3977 = vmatpush1.msra.mxu0 %v3836
    %3978 = vmatprep.mubr.f32.mxu0 %v3772
    %3979 = vmatmul.mubr.f32.gmra.mrb[0].mxu0 %v3771
    %v3980 = vpop.f32.mrb[0].mxu0
    %v3981 = vadd.f32 %v3911, %v3980
    %v3982 = vpop.f32.mrb[0].mxu0
    %3983 = vdwg.mxu0
    %v3984 = vxor.u32 %v3981, 2147483648
    %v3985 = vmul.f32 %v3984, 1.442695
    %v3986 = vpow.pop %v3985
    %v3987 = vadd.f32 %v3986, 1.0
    %v3988 = vrcp.pop %v3987
    %v3989 = vmul.f32 1.0, %v3988
    %v3990 = vmul.f32 %v3989, 1.442695
    %v3991 = vpow.pop %v3990
    %vm3992 = vcmask 25600
    %v3993 = vsel %vm3992, %v3991, 0.0
    %3994 = vadd.xlane.f32.xlu0 %v3993
    %v3995 = vpop.xlane.xlu0 %3994
    %v3996 = vrcp.pop %v3995
    %v3997 = vmul.f32 %v3991, %v3996
    %3998 = vst.msk [vmem:[#allocation3] sm:$0x3] %vm3992, %v3997
    // Predicated region
    $region54: #{_lambda_.1} parent=1 // pred_check
      _
    $region55: #{_lambda_.1} parent=1 // pred_check_branch
      %4000 = sbr.rel (0) target = $region57
    $region56: #{_lambda_.1} parent=1 // pred_region
      %s4002 = ssub.s32 32, 32
      %4003 = vsyncadd [#allocation4], %s4002
      %s4005 = sshll.u32 [#allocation3], 4
      %s4006 = int_to_ptr.vmem [resolvable:$true] %s4005
      %4008 = dma.vmem_to_hbm [thread:$0]  %s4006, 32, %s13, [#allocation4]
    $region57: #{_lambda_.1} parent=1 // pred_fallthru
      _
    // Predicated region
    $region58: #{_lambda_.1} parent=1 // pred_check
      _
    $region59: #{_lambda_.1} parent=1 // pred_check_branch
      %4010 = sbr.rel (0) target = $region61
    $region60: #{_lambda_.1} parent=1 // pred_region
      %4011 = dma.done [#allocation4], 32
    $region61: #{_lambda_.1} parent=1 // pred_fallthru
      _
    %4012 = vsyncpa [#allocation4], 1

</llo_original>
